<compile_context>
chip_gen: v7x
topology: tpu7x:2x2x1
jax: 0.10.0
libtpu: 0.0.40
codegen_flags: <defaults>
</compile_context>

<pallas_src>
import math
import functools

import jax
import jax.numpy as jnp
from jax.experimental import pallas as pl
from jax.experimental.pallas import tpu as pltpu

# ------------------------- model hyper-parameters (small) -------------------------
VOCAB   = 50
N_HEAD  = 4
N_HID   = 64
N_LAYER = 2
EMB     = 32
MAX_LEN = 16
BATCH   = 2
SEQ     = 8
HEAD_D  = EMB // N_HEAD
LN_EPS  = 1e-5
VEC_W   = 128          # lane width of the pre-broadcast bias/gamma/beta slab

# Rows of the per-layer bias/LN slab.
R_BQ, R_BK, R_BV, R_BO, R_B1, R_B2, R_G1, R_BE1, R_G2, R_BE2 = range(10)
N_VEC_ROWS = 10

# TODO(synk): dropout (p=0.5) is stochastic training-time behaviour; implemented as
# identity (eval mode), matching model.eval() forward semantics.


# ------------------------------- Pallas kernel ------------------------------------

def _layer_norm(z, gamma, beta):
    # gamma/beta arrive pre-broadcast to (M, E); biased variance like torch LayerNorm.
    mean = jnp.mean(z, axis=-1, keepdims=True)
    var = jnp.mean((z - mean) ** 2, axis=-1, keepdims=True)
    return (z - mean) * jax.lax.rsqrt(var + LN_EPS) * gamma + beta


def fused_encoder_kernel(x_ref, wq_ref, wk_ref, wv_ref, wo_ref, w1_ref, w2_ref, vec_ref,
                         o_ref, *, batch, seq, emb, hid, n_head, n_layer):
    head_d = emb // n_head
    scale = 1.0 / math.sqrt(head_d)
    m = batch * seq
    bh = batch * n_head

    x = x_ref[...]                                                   # (M, E) = (B*S, E)

    # All weights are VMEM-resident; the static layer loop is unrolled so the activation
    # never leaves VMEM/registers between layers.
    for l in range(n_layer):
        wq, wk, wv = wq_ref[l], wk_ref[l], wv_ref[l]                 # (E, E) each
        wo = wo_ref[l]                                               # (E, E)
        w1, w2 = w1_ref[l], w2_ref[l]                                # (E, H), (H, E)

        def vec(row, n, _l=l):
            # Pre-broadcast (M, 128) row -> take the first n lanes (no sublane broadcast).
            return vec_ref[_l, row][:, :n]

        bq, bk, bv = vec(R_BQ, emb), vec(R_BK, emb), vec(R_BV, emb)
        bo, b1, b2 = vec(R_BO, emb), vec(R_B1, hid), vec(R_B2, emb)
        g1, be1 = vec(R_G1, emb), vec(R_BE1, emb)
        g2, be2 = vec(R_G2, emb), vec(R_BE2, emb)

        # ---- multi-head self attention ----------------------------------------------
        # Q/K/V projections: three separate, lane-aligned dots over all B*S rows at once.
        q = jnp.dot(x, wq, preferred_element_type=jnp.float32) + bq     # (M, E)
        k = jnp.dot(x, wk, preferred_element_type=jnp.float32) + bk
        v = jnp.dot(x, wv, preferred_element_type=jnp.float32) + bv

        # Head split (the S<->H swap is inherent to MHA at E=32); merge batch*head into a
        # single leading dim so the score/value contractions are plain 3-D batched einsums.
        def split_heads(t):
            t = t.reshape(batch, seq, n_head, head_d)
            return jnp.transpose(t, (0, 2, 1, 3)).reshape(bh, seq, head_d)

        qh, kh, vh = split_heads(q), split_heads(k), split_heads(v)     # (B*H, S, Dh)

        s = jnp.einsum('gqd,gkd->gqk', qh, kh,
                       preferred_element_type=jnp.float32) * scale      # (B*H, S, S)
        # Softmax over keys. Max-subtraction deliberately dropped (perf review): scores
        # are small bounded f32 here, and softmax is mathematically unchanged without it.
        p = jnp.exp(s)
        p = p * pl.reciprocal(jnp.sum(p, axis=-1, keepdims=True), approx=False)
        ctx = jnp.einsum('gqk,gkd->gqd', p, vh,
                         preferred_element_type=jnp.float32)             # (B*H, S, Dh)

        # Output projection as a per-head accumulate: attn = sum_h ctx_h @ Wo[h*Dh:(h+1)*Dh]
        # -> no head->feature transpose; the Wo row slices are sublane-aligned.
        ctx4 = ctx.reshape(batch, n_head, seq, head_d)
        attn = bo
        for h in range(n_head):
            attn = attn + jnp.dot(ctx4[:, h].reshape(m, head_d),
                                  wo[h * head_d:(h + 1) * head_d, :],
                                  preferred_element_type=jnp.float32)

        # ---- add & norm 1 ------------------------------------------------------------
        y = _layer_norm(x + attn, g1, be1)

        # ---- feed forward (relu) -------------------------------------------------------
        h1 = jnp.maximum(jnp.dot(y, w1, preferred_element_type=jnp.float32) + b1, 0.0)
        ff = jnp.dot(h1, w2, preferred_element_type=jnp.float32) + b2

        # ---- add & norm 2 --------------------------------------------------------------
        x = _layer_norm(y + ff, g2, be2)

    o_ref[...] = x                                                       # (M, E)


# ------------------------------- wrapper --------------------------------------------

@jax.jit
def sequence_encoder_forward(src, params):
    B, S = src.shape
    E, H = EMB, N_HID
    M = B * S

    # Embedding gather + positional-encoding add (pe indexed by the BATCH dimension,
    # faithfully reproducing the original module's batch_first/seq-first mix-up).
    # XLA fuses the add into the gather; not part of the Pallas kernel.
    x = jnp.take(params["emb_table"], src, axis=0) + params["pe"][:B][:, None, :]
    x = x.reshape(M, E).astype(jnp.float32)

    kernel = functools.partial(fused_encoder_kernel, batch=B, seq=S, emb=E, hid=H,
                               n_head=N_HEAD, n_layer=N_LAYER)
    vmem = pl.BlockSpec(memory_space=pltpu.MemorySpace.VMEM)
    out = pl.pallas_call(                 # single step: no grid, whole arrays in VMEM
        kernel,
        out_shape=jax.ShapeDtypeStruct((M, E), jnp.float32),
        in_specs=[vmem] * 8,
        out_specs=vmem,
    )(x, params["wq"], params["wk"], params["wv"], params["wo"],
      params["w1"], params["w2"], params["vec"])
    return out.reshape(B, S, E)


# ------------------------------- parameter construction ------------------------------

def make_positional_table(max_len, d_model):
    position = jnp.arange(max_len, dtype=jnp.float32)[:, None]
    div_term = jnp.exp(jnp.arange(0, d_model, 2, dtype=jnp.float32)
                       * (-math.log(10000.0) / d_model))
    pe = jnp.zeros((max_len, d_model), dtype=jnp.float32)
    pe = pe.at[:, 0::2].set(jnp.sin(position * div_term))
    pe = pe.at[:, 1::2].set(jnp.cos(position * div_term))
    return pe   # (max_len, d_model)


def _linear_init(key, fan_in, fan_out):
    # PyTorch nn.Linear default: U(-1/sqrt(fan_in), 1/sqrt(fan_in)); pre-transposed (in, out).
    kw, kb = jax.random.split(key)
    bound = 1.0 / math.sqrt(fan_in)
    w = jax.random.uniform(kw, (fan_in, fan_out), jnp.float32, -bound, bound)
    b = jax.random.uniform(kb, (fan_out,), jnp.float32, -bound, bound)
    return w, b


def _vec_row(v):
    v = v.reshape(-1).astype(jnp.float32)
    return jnp.pad(v, (0, VEC_W - v.shape[0]))


def make_params(key):
    assert N_HID <= VEC_W and EMB <= VEC_W
    M = BATCH * SEQ
    keys = jax.random.split(key, 1 + N_LAYER)
    emb_table = jax.random.uniform(keys[0], (VOCAB, EMB), jnp.float32, -1.0, 1.0)

    wq_l, wk_l, wv_l, wo_l, w1_l, w2_l, vec_l = ([] for _ in range(7))
    for li in range(N_LAYER):
        lk = jax.random.split(keys[1 + li], 6)
        wq, bq = _linear_init(lk[0], EMB, EMB)
        wk, bk = _linear_init(lk[1], EMB, EMB)
        wv, bv = _linear_init(lk[2], EMB, EMB)
        wo, bo = _linear_init(lk[3], EMB, EMB)
        w1, b1 = _linear_init(lk[4], EMB, N_HID)
        w2, b2 = _linear_init(lk[5], N_HID, EMB)
        g1 = jnp.ones((EMB,), jnp.float32); be1 = jnp.zeros((EMB,), jnp.float32)
        g2 = jnp.ones((EMB,), jnp.float32); be2 = jnp.zeros((EMB,), jnp.float32)

        rows = jnp.stack([_vec_row(t) for t in
                          (bq, bk, bv, bo, b1, b2, g1, be1, g2, be2)])    # (10, 128)
        # Pre-broadcast over the B*S rows so the kernel never does sublane broadcasts.
        vec_l.append(jnp.broadcast_to(rows[:, None, :], (N_VEC_ROWS, M, VEC_W)))
        wq_l.append(wq); wk_l.append(wk); wv_l.append(wv); wo_l.append(wo)
        w1_l.append(w1); w2_l.append(w2)

    return dict(emb_table=emb_table,
                pe=make_positional_table(MAX_LEN, EMB),
                wq=jnp.stack(wq_l), wk=jnp.stack(wk_l), wv=jnp.stack(wv_l),
                wo=jnp.stack(wo_l),                        # (L, E, E) each
                w1=jnp.stack(w1_l),                        # (L, E, H)
                w2=jnp.stack(w2_l),                        # (L, H, E)
                vec=jnp.stack(vec_l))                      # (L, 10, B*S, 128)


# ------------------------------------- main ------------------------------------------

if __name__ == "__main__":
    key = jax.random.PRNGKey(0)
    k_param, k_src = jax.random.split(key)
    params = make_params(k_param)
    src = jax.random.randint(k_src, (BATCH, SEQ), 0, VOCAB, dtype=jnp.int32)

    out = sequence_encoder_forward(src, params)
    out = jax.block_until_ready(out)
    assert out.shape == (BATCH, SEQ, EMB) and out.dtype == jnp.float32
    print("KERNEL_OK")
</pallas_src>

<mosaic_0001>
module attributes {stable_mosaic.version = 11 : i64} {
  func.func @fused_encoder_kernel(%arg0: memref<16x32xf32, #tpu.memory_space<vmem>>, %arg1: memref<2x32x32xf32, #tpu.memory_space<vmem>>, %arg2: memref<2x32x32xf32, #tpu.memory_space<vmem>>, %arg3: memref<2x32x32xf32, #tpu.memory_space<vmem>>, %arg4: memref<2x32x32xf32, #tpu.memory_space<vmem>>, %arg5: memref<2x32x64xf32, #tpu.memory_space<vmem>>, %arg6: memref<2x64x32xf32, #tpu.memory_space<vmem>>, %arg7: memref<2x10x16x128xf32, #tpu.memory_space<vmem>>, %arg8: memref<16x32xf32, #tpu.memory_space<vmem>>) attributes {dimension_semantics = [], scalar_prefetch = 0 : i64, scratch_operands = 0 : i64, tpu.core_type = #tpu.core_type<tc>} {
    %c0 = arith.constant 0 : index
    %c0_0 = arith.constant 0 : index
    %0 = vector.load %arg0[%c0, %c0_0] : memref<16x32xf32, #tpu.memory_space<vmem>>, vector<16x32xf32>
    %c0_1 = arith.constant 0 : index
    %c0_2 = arith.constant 0 : index
    %c0_3 = arith.constant 0 : index
    %1 = vector.load %arg1[%c0_1, %c0_2, %c0_3] : memref<2x32x32xf32, #tpu.memory_space<vmem>>, vector<1x32x32xf32>
    %2 = vector.shape_cast %1 : vector<1x32x32xf32> to vector<32x32xf32>
    %c0_4 = arith.constant 0 : index
    %c0_5 = arith.constant 0 : index
    %c0_6 = arith.constant 0 : index
    %3 = vector.load %arg2[%c0_4, %c0_5, %c0_6] : memref<2x32x32xf32, #tpu.memory_space<vmem>>, vector<1x32x32xf32>
    %4 = vector.shape_cast %3 : vector<1x32x32xf32> to vector<32x32xf32>
    %c0_7 = arith.constant 0 : index
    %c0_8 = arith.constant 0 : index
    %c0_9 = arith.constant 0 : index
    %5 = vector.load %arg3[%c0_7, %c0_8, %c0_9] : memref<2x32x32xf32, #tpu.memory_space<vmem>>, vector<1x32x32xf32>
    %6 = vector.shape_cast %5 : vector<1x32x32xf32> to vector<32x32xf32>
    %c0_10 = arith.constant 0 : index
    %c0_11 = arith.constant 0 : index
    %c0_12 = arith.constant 0 : index
    %7 = vector.load %arg4[%c0_10, %c0_11, %c0_12] : memref<2x32x32xf32, #tpu.memory_space<vmem>>, vector<1x32x32xf32>
    %8 = vector.shape_cast %7 : vector<1x32x32xf32> to vector<32x32xf32>
    %c0_13 = arith.constant 0 : index
    %c0_14 = arith.constant 0 : index
    %c0_15 = arith.constant 0 : index
    %9 = vector.load %arg5[%c0_13, %c0_14, %c0_15] : memref<2x32x64xf32, #tpu.memory_space<vmem>>, vector<1x32x64xf32>
    %10 = vector.shape_cast %9 : vector<1x32x64xf32> to vector<32x64xf32>
    %c0_16 = arith.constant 0 : index
    %c0_17 = arith.constant 0 : index
    %c0_18 = arith.constant 0 : index
    %11 = vector.load %arg6[%c0_16, %c0_17, %c0_18] : memref<2x64x32xf32, #tpu.memory_space<vmem>>, vector<1x64x32xf32>
    %12 = vector.shape_cast %11 : vector<1x64x32xf32> to vector<64x32xf32>
    %c0_19 = arith.constant 0 : index
    %c0_20 = arith.constant 0 : index
    %c0_21 = arith.constant 0 : index
    %c0_22 = arith.constant 0 : index
    %13 = vector.load %arg7[%c0_19, %c0_20, %c0_21, %c0_22] : memref<2x10x16x128xf32, #tpu.memory_space<vmem>>, vector<1x1x16x128xf32>
    %14 = vector.shape_cast %13 : vector<1x1x16x128xf32> to vector<16x128xf32>
    %15 = vector.extract_strided_slice %14 {offsets = [0, 0], sizes = [16, 32], strides = [1, 1]} : vector<16x128xf32> to vector<16x32xf32>
    %c0_23 = arith.constant 0 : index
    %c1 = arith.constant 1 : index
    %c0_24 = arith.constant 0 : index
    %c0_25 = arith.constant 0 : index
    %16 = vector.load %arg7[%c0_23, %c1, %c0_24, %c0_25] : memref<2x10x16x128xf32, #tpu.memory_space<vmem>>, vector<1x1x16x128xf32>
    %17 = vector.shape_cast %16 : vector<1x1x16x128xf32> to vector<16x128xf32>
    %18 = vector.extract_strided_slice %17 {offsets = [0, 0], sizes = [16, 32], strides = [1, 1]} : vector<16x128xf32> to vector<16x32xf32>
    %c0_26 = arith.constant 0 : index
    %c2 = arith.constant 2 : index
    %c0_27 = arith.constant 0 : index
    %c0_28 = arith.constant 0 : index
    %19 = vector.load %arg7[%c0_26, %c2, %c0_27, %c0_28] : memref<2x10x16x128xf32, #tpu.memory_space<vmem>>, vector<1x1x16x128xf32>
    %20 = vector.shape_cast %19 : vector<1x1x16x128xf32> to vector<16x128xf32>
    %21 = vector.extract_strided_slice %20 {offsets = [0, 0], sizes = [16, 32], strides = [1, 1]} : vector<16x128xf32> to vector<16x32xf32>
    %c0_29 = arith.constant 0 : index
    %c3 = arith.constant 3 : index
    %c0_30 = arith.constant 0 : index
    %c0_31 = arith.constant 0 : index
    %22 = vector.load %arg7[%c0_29, %c3, %c0_30, %c0_31] : memref<2x10x16x128xf32, #tpu.memory_space<vmem>>, vector<1x1x16x128xf32>
    %23 = vector.shape_cast %22 : vector<1x1x16x128xf32> to vector<16x128xf32>
    %24 = vector.extract_strided_slice %23 {offsets = [0, 0], sizes = [16, 32], strides = [1, 1]} : vector<16x128xf32> to vector<16x32xf32>
    %c0_32 = arith.constant 0 : index
    %c4 = arith.constant 4 : index
    %c0_33 = arith.constant 0 : index
    %c0_34 = arith.constant 0 : index
    %25 = vector.load %arg7[%c0_32, %c4, %c0_33, %c0_34] : memref<2x10x16x128xf32, #tpu.memory_space<vmem>>, vector<1x1x16x128xf32>
    %26 = vector.shape_cast %25 : vector<1x1x16x128xf32> to vector<16x128xf32>
    %27 = vector.extract_strided_slice %26 {offsets = [0, 0], sizes = [16, 64], strides = [1, 1]} : vector<16x128xf32> to vector<16x64xf32>
    %c0_35 = arith.constant 0 : index
    %c5 = arith.constant 5 : index
    %c0_36 = arith.constant 0 : index
    %c0_37 = arith.constant 0 : index
    %28 = vector.load %arg7[%c0_35, %c5, %c0_36, %c0_37] : memref<2x10x16x128xf32, #tpu.memory_space<vmem>>, vector<1x1x16x128xf32>
    %29 = vector.shape_cast %28 : vector<1x1x16x128xf32> to vector<16x128xf32>
    %30 = vector.extract_strided_slice %29 {offsets = [0, 0], sizes = [16, 32], strides = [1, 1]} : vector<16x128xf32> to vector<16x32xf32>
    %c0_38 = arith.constant 0 : index
    %c6 = arith.constant 6 : index
    %c0_39 = arith.constant 0 : index
    %c0_40 = arith.constant 0 : index
    %31 = vector.load %arg7[%c0_38, %c6, %c0_39, %c0_40] : memref<2x10x16x128xf32, #tpu.memory_space<vmem>>, vector<1x1x16x128xf32>
    %32 = vector.shape_cast %31 : vector<1x1x16x128xf32> to vector<16x128xf32>
    %33 = vector.extract_strided_slice %32 {offsets = [0, 0], sizes = [16, 32], strides = [1, 1]} : vector<16x128xf32> to vector<16x32xf32>
    %c0_41 = arith.constant 0 : index
    %c7 = arith.constant 7 : index
    %c0_42 = arith.constant 0 : index
    %c0_43 = arith.constant 0 : index
    %34 = vector.load %arg7[%c0_41, %c7, %c0_42, %c0_43] : memref<2x10x16x128xf32, #tpu.memory_space<vmem>>, vector<1x1x16x128xf32>
    %35 = vector.shape_cast %34 : vector<1x1x16x128xf32> to vector<16x128xf32>
    %36 = vector.extract_strided_slice %35 {offsets = [0, 0], sizes = [16, 32], strides = [1, 1]} : vector<16x128xf32> to vector<16x32xf32>
    %c0_44 = arith.constant 0 : index
    %c8 = arith.constant 8 : index
    %c0_45 = arith.constant 0 : index
    %c0_46 = arith.constant 0 : index
    %37 = vector.load %arg7[%c0_44, %c8, %c0_45, %c0_46] : memref<2x10x16x128xf32, #tpu.memory_space<vmem>>, vector<1x1x16x128xf32>
    %38 = vector.shape_cast %37 : vector<1x1x16x128xf32> to vector<16x128xf32>
    %39 = vector.extract_strided_slice %38 {offsets = [0, 0], sizes = [16, 32], strides = [1, 1]} : vector<16x128xf32> to vector<16x32xf32>
    %c0_47 = arith.constant 0 : index
    %c9 = arith.constant 9 : index
    %c0_48 = arith.constant 0 : index
    %c0_49 = arith.constant 0 : index
    %40 = vector.load %arg7[%c0_47, %c9, %c0_48, %c0_49] : memref<2x10x16x128xf32, #tpu.memory_space<vmem>>, vector<1x1x16x128xf32>
    %41 = vector.shape_cast %40 : vector<1x1x16x128xf32> to vector<16x128xf32>
    %42 = vector.extract_strided_slice %41 {offsets = [0, 0], sizes = [16, 32], strides = [1, 1]} : vector<16x128xf32> to vector<16x32xf32>
    %cst = arith.constant dense<0.000000e+00> : vector<16x32xf32>
    %43 = tpu.matmul %0, %2, %cst {dimension_numbers = #tpu.dot_dimension_numbers<[1], [0], [0], [1], [0, 0, 1, 1], [], []>} : vector<16x32xf32>, vector<32x32xf32>, vector<16x32xf32> -> vector<16x32xf32>
    %44 = arith.addf %43, %15 : vector<16x32xf32>
    %cst_50 = arith.constant dense<0.000000e+00> : vector<16x32xf32>
    %45 = tpu.matmul %0, %4, %cst_50 {dimension_numbers = #tpu.dot_dimension_numbers<[1], [0], [0], [1], [0, 0, 1, 1], [], []>} : vector<16x32xf32>, vector<32x32xf32>, vector<16x32xf32> -> vector<16x32xf32>
    %46 = arith.addf %45, %18 : vector<16x32xf32>
    %cst_51 = arith.constant dense<0.000000e+00> : vector<16x32xf32>
    %47 = tpu.matmul %0, %6, %cst_51 {dimension_numbers = #tpu.dot_dimension_numbers<[1], [0], [0], [1], [0, 0, 1, 1], [], []>} : vector<16x32xf32>, vector<32x32xf32>, vector<16x32xf32> -> vector<16x32xf32>
    %48 = arith.addf %47, %21 : vector<16x32xf32>
    %49 = vector.shape_cast %44 : vector<16x32xf32> to vector<2x8x4x8xf32>
    %50 = tpu.transpose %49, [0, 2, 1, 3] : vector<2x8x4x8xf32> -> vector<2x4x8x8xf32>
    %51 = vector.shape_cast %50 : vector<2x4x8x8xf32> to vector<8x8x8xf32>
    %52 = vector.shape_cast %46 : vector<16x32xf32> to vector<2x8x4x8xf32>
    %53 = tpu.transpose %52, [0, 2, 1, 3] : vector<2x8x4x8xf32> -> vector<2x4x8x8xf32>
    %54 = vector.shape_cast %53 : vector<2x4x8x8xf32> to vector<8x8x8xf32>
    %55 = vector.shape_cast %48 : vector<16x32xf32> to vector<2x8x4x8xf32>
    %56 = tpu.transpose %55, [0, 2, 1, 3] : vector<2x8x4x8xf32> -> vector<2x4x8x8xf32>
    %57 = vector.shape_cast %56 : vector<2x4x8x8xf32> to vector<8x8x8xf32>
    "tpu.trace_start"() <{level = 10 : i32, message = "gqd,gkd->gqk"}> : () -> ()
    %cst_52 = arith.constant dense<0.000000e+00> : vector<8x8x8xf32>
    %58 = tpu.matmul %51, %54, %cst_52 {dimension_numbers = #tpu.dot_dimension_numbers<[2], [2], [1], [1], [0, 0, 0, 1, 1, 1], [0], [0]>} : vector<8x8x8xf32>, vector<8x8x8xf32>, vector<8x8x8xf32> -> vector<8x8x8xf32>
    "tpu.trace_stop"() : () -> ()
    %cst_53 = arith.constant 0.353553385 : f32
    %59 = vector.broadcast %cst_53 : f32 to vector<8x8x8xf32>
    %60 = arith.mulf %58, %59 : vector<8x8x8xf32>
    %61 = math.exp %60 : vector<8x8x8xf32>
    %cst_54 = arith.constant dense<0.000000e+00> : vector<8x8xf32>
    %62 = vector.multi_reduction <add>, %61, %cst_54 [2] : vector<8x8x8xf32> to vector<8x8xf32>
    %63 = vector.shape_cast %62 : vector<8x8xf32> to vector<8x8x1xf32>
    %64 = tpu.reciprocal %63 : vector<8x8x1xf32> -> vector<8x8x1xf32>
    %65 = vector.broadcast %64 : vector<8x8x1xf32> to vector<8x8x8xf32>
    %66 = arith.mulf %61, %65 : vector<8x8x8xf32>
    "tpu.trace_start"() <{level = 10 : i32, message = "gqk,gkd->gqd"}> : () -> ()
    %cst_55 = arith.constant dense<0.000000e+00> : vector<8x8x8xf32>
    %67 = tpu.matmul %66, %57, %cst_55 {dimension_numbers = #tpu.dot_dimension_numbers<[2], [1], [1], [2], [0, 0, 0, 1, 1, 2], [0], [0]>} : vector<8x8x8xf32>, vector<8x8x8xf32>, vector<8x8x8xf32> -> vector<8x8x8xf32>
    "tpu.trace_stop"() : () -> ()
    %68 = vector.shape_cast %67 : vector<8x8x8xf32> to vector<2x4x8x8xf32>
    %69 = vector.extract_strided_slice %68 {offsets = [0, 0, 0, 0], sizes = [2, 1, 8, 8], strides = [1, 1, 1, 1]} : vector<2x4x8x8xf32> to vector<2x1x8x8xf32>
    %70 = vector.shape_cast %69 : vector<2x1x8x8xf32> to vector<2x8x8xf32>
    %71 = vector.shape_cast %70 : vector<2x8x8xf32> to vector<16x8xf32>
    %72 = vector.extract_strided_slice %8 {offsets = [0, 0], sizes = [8, 32], strides = [1, 1]} : vector<32x32xf32> to vector<8x32xf32>
    %cst_56 = arith.constant dense<0.000000e+00> : vector<16x32xf32>
    %73 = tpu.matmul %71, %72, %cst_56 {dimension_numbers = #tpu.dot_dimension_numbers<[1], [0], [0], [1], [0, 0, 1, 1], [], []>} : vector<16x8xf32>, vector<8x32xf32>, vector<16x32xf32> -> vector<16x32xf32>
    %74 = arith.addf %24, %73 : vector<16x32xf32>
    %75 = vector.extract_strided_slice %68 {offsets = [0, 1, 0, 0], sizes = [2, 1, 8, 8], strides = [1, 1, 1, 1]} : vector<2x4x8x8xf32> to vector<2x1x8x8xf32>
    %76 = vector.shape_cast %75 : vector<2x1x8x8xf32> to vector<2x8x8xf32>
    %77 = vector.shape_cast %76 : vector<2x8x8xf32> to vector<16x8xf32>
    %78 = vector.extract_strided_slice %8 {offsets = [8, 0], sizes = [8, 32], strides = [1, 1]} : vector<32x32xf32> to vector<8x32xf32>
    %cst_57 = arith.constant dense<0.000000e+00> : vector<16x32xf32>
    %79 = tpu.matmul %77, %78, %cst_57 {dimension_numbers = #tpu.dot_dimension_numbers<[1], [0], [0], [1], [0, 0, 1, 1], [], []>} : vector<16x8xf32>, vector<8x32xf32>, vector<16x32xf32> -> vector<16x32xf32>
    %80 = arith.addf %74, %79 : vector<16x32xf32>
    %81 = vector.extract_strided_slice %68 {offsets = [0, 2, 0, 0], sizes = [2, 1, 8, 8], strides = [1, 1, 1, 1]} : vector<2x4x8x8xf32> to vector<2x1x8x8xf32>
    %82 = vector.shape_cast %81 : vector<2x1x8x8xf32> to vector<2x8x8xf32>
    %83 = vector.shape_cast %82 : vector<2x8x8xf32> to vector<16x8xf32>
    %84 = vector.extract_strided_slice %8 {offsets = [16, 0], sizes = [8, 32], strides = [1, 1]} : vector<32x32xf32> to vector<8x32xf32>
    %cst_58 = arith.constant dense<0.000000e+00> : vector<16x32xf32>
    %85 = tpu.matmul %83, %84, %cst_58 {dimension_numbers = #tpu.dot_dimension_numbers<[1], [0], [0], [1], [0, 0, 1, 1], [], []>} : vector<16x8xf32>, vector<8x32xf32>, vector<16x32xf32> -> vector<16x32xf32>
    %86 = arith.addf %80, %85 : vector<16x32xf32>
    %87 = vector.extract_strided_slice %68 {offsets = [0, 3, 0, 0], sizes = [2, 1, 8, 8], strides = [1, 1, 1, 1]} : vector<2x4x8x8xf32> to vector<2x1x8x8xf32>
    %88 = vector.shape_cast %87 : vector<2x1x8x8xf32> to vector<2x8x8xf32>
    %89 = vector.shape_cast %88 : vector<2x8x8xf32> to vector<16x8xf32>
    %90 = vector.extract_strided_slice %8 {offsets = [24, 0], sizes = [8, 32], strides = [1, 1]} : vector<32x32xf32> to vector<8x32xf32>
    %cst_59 = arith.constant dense<0.000000e+00> : vector<16x32xf32>
    %91 = tpu.matmul %89, %90, %cst_59 {dimension_numbers = #tpu.dot_dimension_numbers<[1], [0], [0], [1], [0, 0, 1, 1], [], []>} : vector<16x8xf32>, vector<8x32xf32>, vector<16x32xf32> -> vector<16x32xf32>
    %92 = arith.addf %86, %91 : vector<16x32xf32>
    %93 = arith.addf %0, %92 : vector<16x32xf32>
    %cst_60 = arith.constant dense<0.000000e+00> : vector<16xf32>
    %94 = vector.multi_reduction <add>, %93, %cst_60 [1] : vector<16x32xf32> to vector<16xf32>
    %95 = vector.shape_cast %94 : vector<16xf32> to vector<16x1xf32>
    %cst_61 = arith.constant 3.200000e+01 : f32
    %96 = vector.broadcast %cst_61 : f32 to vector<16x1xf32>
    %97 = arith.divf %95, %96 : vector<16x1xf32>
    %98 = vector.broadcast %97 : vector<16x1xf32> to vector<16x32xf32>
    %99 = arith.subf %93, %98 : vector<16x32xf32>
    %100 = arith.mulf %99, %99 : vector<16x32xf32>
    %cst_62 = arith.constant dense<0.000000e+00> : vector<16xf32>
    %101 = vector.multi_reduction <add>, %100, %cst_62 [1] : vector<16x32xf32> to vector<16xf32>
    %102 = vector.shape_cast %101 : vector<16xf32> to vector<16x1xf32>
    %cst_63 = arith.constant 3.200000e+01 : f32
    %103 = vector.broadcast %cst_63 : f32 to vector<16x1xf32>
    %104 = arith.divf %102, %103 : vector<16x1xf32>
    %105 = vector.broadcast %97 : vector<16x1xf32> to vector<16x32xf32>
    %106 = arith.subf %93, %105 : vector<16x32xf32>
    %cst_64 = arith.constant 9.99999974E-6 : f32
    %107 = vector.broadcast %cst_64 : f32 to vector<16x1xf32>
    %108 = arith.addf %104, %107 : vector<16x1xf32>
    %109 = math.rsqrt %108 : vector<16x1xf32>
    %110 = vector.broadcast %109 : vector<16x1xf32> to vector<16x32xf32>
    %111 = arith.mulf %106, %110 : vector<16x32xf32>
    %112 = arith.mulf %111, %33 : vector<16x32xf32>
    %113 = arith.addf %112, %36 : vector<16x32xf32>
    %cst_65 = arith.constant dense<0.000000e+00> : vector<16x64xf32>
    %114 = tpu.matmul %113, %10, %cst_65 {dimension_numbers = #tpu.dot_dimension_numbers<[1], [0], [0], [1], [0, 0, 1, 1], [], []>} : vector<16x32xf32>, vector<32x64xf32>, vector<16x64xf32> -> vector<16x64xf32>
    %115 = arith.addf %114, %27 : vector<16x64xf32>
    %cst_66 = arith.constant 0.000000e+00 : f32
    %116 = vector.broadcast %cst_66 : f32 to vector<16x64xf32>
    %117 = arith.maximumf %115, %116 : vector<16x64xf32>
    %cst_67 = arith.constant dense<0.000000e+00> : vector<16x32xf32>
    %118 = tpu.matmul %117, %12, %cst_67 {dimension_numbers = #tpu.dot_dimension_numbers<[1], [0], [0], [1], [0, 0, 1, 1], [], []>} : vector<16x64xf32>, vector<64x32xf32>, vector<16x32xf32> -> vector<16x32xf32>
    %119 = arith.addf %118, %30 : vector<16x32xf32>
    %120 = arith.addf %113, %119 : vector<16x32xf32>
    %cst_68 = arith.constant dense<0.000000e+00> : vector<16xf32>
    %121 = vector.multi_reduction <add>, %120, %cst_68 [1] : vector<16x32xf32> to vector<16xf32>
    %122 = vector.shape_cast %121 : vector<16xf32> to vector<16x1xf32>
    %cst_69 = arith.constant 3.200000e+01 : f32
    %123 = vector.broadcast %cst_69 : f32 to vector<16x1xf32>
    %124 = arith.divf %122, %123 : vector<16x1xf32>
    %125 = vector.broadcast %124 : vector<16x1xf32> to vector<16x32xf32>
    %126 = arith.subf %120, %125 : vector<16x32xf32>
    %127 = arith.mulf %126, %126 : vector<16x32xf32>
    %cst_70 = arith.constant dense<0.000000e+00> : vector<16xf32>
    %128 = vector.multi_reduction <add>, %127, %cst_70 [1] : vector<16x32xf32> to vector<16xf32>
    %129 = vector.shape_cast %128 : vector<16xf32> to vector<16x1xf32>
    %cst_71 = arith.constant 3.200000e+01 : f32
    %130 = vector.broadcast %cst_71 : f32 to vector<16x1xf32>
    %131 = arith.divf %129, %130 : vector<16x1xf32>
    %132 = vector.broadcast %124 : vector<16x1xf32> to vector<16x32xf32>
    %133 = arith.subf %120, %132 : vector<16x32xf32>
    %cst_72 = arith.constant 9.99999974E-6 : f32
    %134 = vector.broadcast %cst_72 : f32 to vector<16x1xf32>
    %135 = arith.addf %131, %134 : vector<16x1xf32>
    %136 = math.rsqrt %135 : vector<16x1xf32>
    %137 = vector.broadcast %136 : vector<16x1xf32> to vector<16x32xf32>
    %138 = arith.mulf %133, %137 : vector<16x32xf32>
    %139 = arith.mulf %138, %39 : vector<16x32xf32>
    %140 = arith.addf %139, %42 : vector<16x32xf32>
    %c1_73 = arith.constant 1 : index
    %c0_74 = arith.constant 0 : index
    %c0_75 = arith.constant 0 : index
    %141 = vector.load %arg1[%c1_73, %c0_74, %c0_75] : memref<2x32x32xf32, #tpu.memory_space<vmem>>, vector<1x32x32xf32>
    %142 = vector.shape_cast %141 : vector<1x32x32xf32> to vector<32x32xf32>
    %c1_76 = arith.constant 1 : index
    %c0_77 = arith.constant 0 : index
    %c0_78 = arith.constant 0 : index
    %143 = vector.load %arg2[%c1_76, %c0_77, %c0_78] : memref<2x32x32xf32, #tpu.memory_space<vmem>>, vector<1x32x32xf32>
    %144 = vector.shape_cast %143 : vector<1x32x32xf32> to vector<32x32xf32>
    %c1_79 = arith.constant 1 : index
    %c0_80 = arith.constant 0 : index
    %c0_81 = arith.constant 0 : index
    %145 = vector.load %arg3[%c1_79, %c0_80, %c0_81] : memref<2x32x32xf32, #tpu.memory_space<vmem>>, vector<1x32x32xf32>
    %146 = vector.shape_cast %145 : vector<1x32x32xf32> to vector<32x32xf32>
    %c1_82 = arith.constant 1 : index
    %c0_83 = arith.constant 0 : index
    %c0_84 = arith.constant 0 : index
    %147 = vector.load %arg4[%c1_82, %c0_83, %c0_84] : memref<2x32x32xf32, #tpu.memory_space<vmem>>, vector<1x32x32xf32>
    %148 = vector.shape_cast %147 : vector<1x32x32xf32> to vector<32x32xf32>
    %c1_85 = arith.constant 1 : index
    %c0_86 = arith.constant 0 : index
    %c0_87 = arith.constant 0 : index
    %149 = vector.load %arg5[%c1_85, %c0_86, %c0_87] : memref<2x32x64xf32, #tpu.memory_space<vmem>>, vector<1x32x64xf32>
    %150 = vector.shape_cast %149 : vector<1x32x64xf32> to vector<32x64xf32>
    %c1_88 = arith.constant 1 : index
    %c0_89 = arith.constant 0 : index
    %c0_90 = arith.constant 0 : index
    %151 = vector.load %arg6[%c1_88, %c0_89, %c0_90] : memref<2x64x32xf32, #tpu.memory_space<vmem>>, vector<1x64x32xf32>
    %152 = vector.shape_cast %151 : vector<1x64x32xf32> to vector<64x32xf32>
    %c1_91 = arith.constant 1 : index
    %c0_92 = arith.constant 0 : index
    %c0_93 = arith.constant 0 : index
    %c0_94 = arith.constant 0 : index
    %153 = vector.load %arg7[%c1_91, %c0_92, %c0_93, %c0_94] : memref<2x10x16x128xf32, #tpu.memory_space<vmem>>, vector<1x1x16x128xf32>
    %154 = vector.shape_cast %153 : vector<1x1x16x128xf32> to vector<16x128xf32>
    %155 = vector.extract_strided_slice %154 {offsets = [0, 0], sizes = [16, 32], strides = [1, 1]} : vector<16x128xf32> to vector<16x32xf32>
    %c1_95 = arith.constant 1 : index
    %c1_96 = arith.constant 1 : index
    %c0_97 = arith.constant 0 : index
    %c0_98 = arith.constant 0 : index
    %156 = vector.load %arg7[%c1_95, %c1_96, %c0_97, %c0_98] : memref<2x10x16x128xf32, #tpu.memory_space<vmem>>, vector<1x1x16x128xf32>
    %157 = vector.shape_cast %156 : vector<1x1x16x128xf32> to vector<16x128xf32>
    %158 = vector.extract_strided_slice %157 {offsets = [0, 0], sizes = [16, 32], strides = [1, 1]} : vector<16x128xf32> to vector<16x32xf32>
    %c1_99 = arith.constant 1 : index
    %c2_100 = arith.constant 2 : index
    %c0_101 = arith.constant 0 : index
    %c0_102 = arith.constant 0 : index
    %159 = vector.load %arg7[%c1_99, %c2_100, %c0_101, %c0_102] : memref<2x10x16x128xf32, #tpu.memory_space<vmem>>, vector<1x1x16x128xf32>
    %160 = vector.shape_cast %159 : vector<1x1x16x128xf32> to vector<16x128xf32>
    %161 = vector.extract_strided_slice %160 {offsets = [0, 0], sizes = [16, 32], strides = [1, 1]} : vector<16x128xf32> to vector<16x32xf32>
    %c1_103 = arith.constant 1 : index
    %c3_104 = arith.constant 3 : index
    %c0_105 = arith.constant 0 : index
    %c0_106 = arith.constant 0 : index
    %162 = vector.load %arg7[%c1_103, %c3_104, %c0_105, %c0_106] : memref<2x10x16x128xf32, #tpu.memory_space<vmem>>, vector<1x1x16x128xf32>
    %163 = vector.shape_cast %162 : vector<1x1x16x128xf32> to vector<16x128xf32>
    %164 = vector.extract_strided_slice %163 {offsets = [0, 0], sizes = [16, 32], strides = [1, 1]} : vector<16x128xf32> to vector<16x32xf32>
    %c1_107 = arith.constant 1 : index
    %c4_108 = arith.constant 4 : index
    %c0_109 = arith.constant 0 : index
    %c0_110 = arith.constant 0 : index
    %165 = vector.load %arg7[%c1_107, %c4_108, %c0_109, %c0_110] : memref<2x10x16x128xf32, #tpu.memory_space<vmem>>, vector<1x1x16x128xf32>
    %166 = vector.shape_cast %165 : vector<1x1x16x128xf32> to vector<16x128xf32>
    %167 = vector.extract_strided_slice %166 {offsets = [0, 0], sizes = [16, 64], strides = [1, 1]} : vector<16x128xf32> to vector<16x64xf32>
    %c1_111 = arith.constant 1 : index
    %c5_112 = arith.constant 5 : index
    %c0_113 = arith.constant 0 : index
    %c0_114 = arith.constant 0 : index
    %168 = vector.load %arg7[%c1_111, %c5_112, %c0_113, %c0_114] : memref<2x10x16x128xf32, #tpu.memory_space<vmem>>, vector<1x1x16x128xf32>
    %169 = vector.shape_cast %168 : vector<1x1x16x128xf32> to vector<16x128xf32>
    %170 = vector.extract_strided_slice %169 {offsets = [0, 0], sizes = [16, 32], strides = [1, 1]} : vector<16x128xf32> to vector<16x32xf32>
    %c1_115 = arith.constant 1 : index
    %c6_116 = arith.constant 6 : index
    %c0_117 = arith.constant 0 : index
    %c0_118 = arith.constant 0 : index
    %171 = vector.load %arg7[%c1_115, %c6_116, %c0_117, %c0_118] : memref<2x10x16x128xf32, #tpu.memory_space<vmem>>, vector<1x1x16x128xf32>
    %172 = vector.shape_cast %171 : vector<1x1x16x128xf32> to vector<16x128xf32>
    %173 = vector.extract_strided_slice %172 {offsets = [0, 0], sizes = [16, 32], strides = [1, 1]} : vector<16x128xf32> to vector<16x32xf32>
    %c1_119 = arith.constant 1 : index
    %c7_120 = arith.constant 7 : index
    %c0_121 = arith.constant 0 : index
    %c0_122 = arith.constant 0 : index
    %174 = vector.load %arg7[%c1_119, %c7_120, %c0_121, %c0_122] : memref<2x10x16x128xf32, #tpu.memory_space<vmem>>, vector<1x1x16x128xf32>
    %175 = vector.shape_cast %174 : vector<1x1x16x128xf32> to vector<16x128xf32>
    %176 = vector.extract_strided_slice %175 {offsets = [0, 0], sizes = [16, 32], strides = [1, 1]} : vector<16x128xf32> to vector<16x32xf32>
    %c1_123 = arith.constant 1 : index
    %c8_124 = arith.constant 8 : index
    %c0_125 = arith.constant 0 : index
    %c0_126 = arith.constant 0 : index
    %177 = vector.load %arg7[%c1_123, %c8_124, %c0_125, %c0_126] : memref<2x10x16x128xf32, #tpu.memory_space<vmem>>, vector<1x1x16x128xf32>
    %178 = vector.shape_cast %177 : vector<1x1x16x128xf32> to vector<16x128xf32>
    %179 = vector.extract_strided_slice %178 {offsets = [0, 0], sizes = [16, 32], strides = [1, 1]} : vector<16x128xf32> to vector<16x32xf32>
    %c1_127 = arith.constant 1 : index
    %c9_128 = arith.constant 9 : index
    %c0_129 = arith.constant 0 : index
    %c0_130 = arith.constant 0 : index
    %180 = vector.load %arg7[%c1_127, %c9_128, %c0_129, %c0_130] : memref<2x10x16x128xf32, #tpu.memory_space<vmem>>, vector<1x1x16x128xf32>
    %181 = vector.shape_cast %180 : vector<1x1x16x128xf32> to vector<16x128xf32>
    %182 = vector.extract_strided_slice %181 {offsets = [0, 0], sizes = [16, 32], strides = [1, 1]} : vector<16x128xf32> to vector<16x32xf32>
    %cst_131 = arith.constant dense<0.000000e+00> : vector<16x32xf32>
    %183 = tpu.matmul %140, %142, %cst_131 {dimension_numbers = #tpu.dot_dimension_numbers<[1], [0], [0], [1], [0, 0, 1, 1], [], []>} : vector<16x32xf32>, vector<32x32xf32>, vector<16x32xf32> -> vector<16x32xf32>
    %184 = arith.addf %183, %155 : vector<16x32xf32>
    %cst_132 = arith.constant dense<0.000000e+00> : vector<16x32xf32>
    %185 = tpu.matmul %140, %144, %cst_132 {dimension_numbers = #tpu.dot_dimension_numbers<[1], [0], [0], [1], [0, 0, 1, 1], [], []>} : vector<16x32xf32>, vector<32x32xf32>, vector<16x32xf32> -> vector<16x32xf32>
    %186 = arith.addf %185, %158 : vector<16x32xf32>
    %cst_133 = arith.constant dense<0.000000e+00> : vector<16x32xf32>
    %187 = tpu.matmul %140, %146, %cst_133 {dimension_numbers = #tpu.dot_dimension_numbers<[1], [0], [0], [1], [0, 0, 1, 1], [], []>} : vector<16x32xf32>, vector<32x32xf32>, vector<16x32xf32> -> vector<16x32xf32>
    %188 = arith.addf %187, %161 : vector<16x32xf32>
    %189 = vector.shape_cast %184 : vector<16x32xf32> to vector<2x8x4x8xf32>
    %190 = tpu.transpose %189, [0, 2, 1, 3] : vector<2x8x4x8xf32> -> vector<2x4x8x8xf32>
    %191 = vector.shape_cast %190 : vector<2x4x8x8xf32> to vector<8x8x8xf32>
    %192 = vector.shape_cast %186 : vector<16x32xf32> to vector<2x8x4x8xf32>
    %193 = tpu.transpose %192, [0, 2, 1, 3] : vector<2x8x4x8xf32> -> vector<2x4x8x8xf32>
    %194 = vector.shape_cast %193 : vector<2x4x8x8xf32> to vector<8x8x8xf32>
    %195 = vector.shape_cast %188 : vector<16x32xf32> to vector<2x8x4x8xf32>
    %196 = tpu.transpose %195, [0, 2, 1, 3] : vector<2x8x4x8xf32> -> vector<2x4x8x8xf32>
    %197 = vector.shape_cast %196 : vector<2x4x8x8xf32> to vector<8x8x8xf32>
    "tpu.trace_start"() <{level = 10 : i32, message = "gqd,gkd->gqk"}> : () -> ()
    %cst_134 = arith.constant dense<0.000000e+00> : vector<8x8x8xf32>
    %198 = tpu.matmul %191, %194, %cst_134 {dimension_numbers = #tpu.dot_dimension_numbers<[2], [2], [1], [1], [0, 0, 0, 1, 1, 1], [0], [0]>} : vector<8x8x8xf32>, vector<8x8x8xf32>, vector<8x8x8xf32> -> vector<8x8x8xf32>
    "tpu.trace_stop"() : () -> ()
    %cst_135 = arith.constant 0.353553385 : f32
    %199 = vector.broadcast %cst_135 : f32 to vector<8x8x8xf32>
    %200 = arith.mulf %198, %199 : vector<8x8x8xf32>
    %201 = math.exp %200 : vector<8x8x8xf32>
    %cst_136 = arith.constant dense<0.000000e+00> : vector<8x8xf32>
    %202 = vector.multi_reduction <add>, %201, %cst_136 [2] : vector<8x8x8xf32> to vector<8x8xf32>
    %203 = vector.shape_cast %202 : vector<8x8xf32> to vector<8x8x1xf32>
    %204 = tpu.reciprocal %203 : vector<8x8x1xf32> -> vector<8x8x1xf32>
    %205 = vector.broadcast %204 : vector<8x8x1xf32> to vector<8x8x8xf32>
    %206 = arith.mulf %201, %205 : vector<8x8x8xf32>
    "tpu.trace_start"() <{level = 10 : i32, message = "gqk,gkd->gqd"}> : () -> ()
    %cst_137 = arith.constant dense<0.000000e+00> : vector<8x8x8xf32>
    %207 = tpu.matmul %206, %197, %cst_137 {dimension_numbers = #tpu.dot_dimension_numbers<[2], [1], [1], [2], [0, 0, 0, 1, 1, 2], [0], [0]>} : vector<8x8x8xf32>, vector<8x8x8xf32>, vector<8x8x8xf32> -> vector<8x8x8xf32>
    "tpu.trace_stop"() : () -> ()
    %208 = vector.shape_cast %207 : vector<8x8x8xf32> to vector<2x4x8x8xf32>
    %209 = vector.extract_strided_slice %208 {offsets = [0, 0, 0, 0], sizes = [2, 1, 8, 8], strides = [1, 1, 1, 1]} : vector<2x4x8x8xf32> to vector<2x1x8x8xf32>
    %210 = vector.shape_cast %209 : vector<2x1x8x8xf32> to vector<2x8x8xf32>
    %211 = vector.shape_cast %210 : vector<2x8x8xf32> to vector<16x8xf32>
    %212 = vector.extract_strided_slice %148 {offsets = [0, 0], sizes = [8, 32], strides = [1, 1]} : vector<32x32xf32> to vector<8x32xf32>
    %cst_138 = arith.constant dense<0.000000e+00> : vector<16x32xf32>
    %213 = tpu.matmul %211, %212, %cst_138 {dimension_numbers = #tpu.dot_dimension_numbers<[1], [0], [0], [1], [0, 0, 1, 1], [], []>} : vector<16x8xf32>, vector<8x32xf32>, vector<16x32xf32> -> vector<16x32xf32>
    %214 = arith.addf %164, %213 : vector<16x32xf32>
    %215 = vector.extract_strided_slice %208 {offsets = [0, 1, 0, 0], sizes = [2, 1, 8, 8], strides = [1, 1, 1, 1]} : vector<2x4x8x8xf32> to vector<2x1x8x8xf32>
    %216 = vector.shape_cast %215 : vector<2x1x8x8xf32> to vector<2x8x8xf32>
    %217 = vector.shape_cast %216 : vector<2x8x8xf32> to vector<16x8xf32>
    %218 = vector.extract_strided_slice %148 {offsets = [8, 0], sizes = [8, 32], strides = [1, 1]} : vector<32x32xf32> to vector<8x32xf32>
    %cst_139 = arith.constant dense<0.000000e+00> : vector<16x32xf32>
    %219 = tpu.matmul %217, %218, %cst_139 {dimension_numbers = #tpu.dot_dimension_numbers<[1], [0], [0], [1], [0, 0, 1, 1], [], []>} : vector<16x8xf32>, vector<8x32xf32>, vector<16x32xf32> -> vector<16x32xf32>
    %220 = arith.addf %214, %219 : vector<16x32xf32>
    %221 = vector.extract_strided_slice %208 {offsets = [0, 2, 0, 0], sizes = [2, 1, 8, 8], strides = [1, 1, 1, 1]} : vector<2x4x8x8xf32> to vector<2x1x8x8xf32>
    %222 = vector.shape_cast %221 : vector<2x1x8x8xf32> to vector<2x8x8xf32>
    %223 = vector.shape_cast %222 : vector<2x8x8xf32> to vector<16x8xf32>
    %224 = vector.extract_strided_slice %148 {offsets = [16, 0], sizes = [8, 32], strides = [1, 1]} : vector<32x32xf32> to vector<8x32xf32>
    %cst_140 = arith.constant dense<0.000000e+00> : vector<16x32xf32>
    %225 = tpu.matmul %223, %224, %cst_140 {dimension_numbers = #tpu.dot_dimension_numbers<[1], [0], [0], [1], [0, 0, 1, 1], [], []>} : vector<16x8xf32>, vector<8x32xf32>, vector<16x32xf32> -> vector<16x32xf32>
    %226 = arith.addf %220, %225 : vector<16x32xf32>
    %227 = vector.extract_strided_slice %208 {offsets = [0, 3, 0, 0], sizes = [2, 1, 8, 8], strides = [1, 1, 1, 1]} : vector<2x4x8x8xf32> to vector<2x1x8x8xf32>
    %228 = vector.shape_cast %227 : vector<2x1x8x8xf32> to vector<2x8x8xf32>
    %229 = vector.shape_cast %228 : vector<2x8x8xf32> to vector<16x8xf32>
    %230 = vector.extract_strided_slice %148 {offsets = [24, 0], sizes = [8, 32], strides = [1, 1]} : vector<32x32xf32> to vector<8x32xf32>
    %cst_141 = arith.constant dense<0.000000e+00> : vector<16x32xf32>
    %231 = tpu.matmul %229, %230, %cst_141 {dimension_numbers = #tpu.dot_dimension_numbers<[1], [0], [0], [1], [0, 0, 1, 1], [], []>} : vector<16x8xf32>, vector<8x32xf32>, vector<16x32xf32> -> vector<16x32xf32>
    %232 = arith.addf %226, %231 : vector<16x32xf32>
    %233 = arith.addf %140, %232 : vector<16x32xf32>
    %cst_142 = arith.constant dense<0.000000e+00> : vector<16xf32>
    %234 = vector.multi_reduction <add>, %233, %cst_142 [1] : vector<16x32xf32> to vector<16xf32>
    %235 = vector.shape_cast %234 : vector<16xf32> to vector<16x1xf32>
    %cst_143 = arith.constant 3.200000e+01 : f32
    %236 = vector.broadcast %cst_143 : f32 to vector<16x1xf32>
    %237 = arith.divf %235, %236 : vector<16x1xf32>
    %238 = vector.broadcast %237 : vector<16x1xf32> to vector<16x32xf32>
    %239 = arith.subf %233, %238 : vector<16x32xf32>
    %240 = arith.mulf %239, %239 : vector<16x32xf32>
    %cst_144 = arith.constant dense<0.000000e+00> : vector<16xf32>
    %241 = vector.multi_reduction <add>, %240, %cst_144 [1] : vector<16x32xf32> to vector<16xf32>
    %242 = vector.shape_cast %241 : vector<16xf32> to vector<16x1xf32>
    %cst_145 = arith.constant 3.200000e+01 : f32
    %243 = vector.broadcast %cst_145 : f32 to vector<16x1xf32>
    %244 = arith.divf %242, %243 : vector<16x1xf32>
    %245 = vector.broadcast %237 : vector<16x1xf32> to vector<16x32xf32>
    %246 = arith.subf %233, %245 : vector<16x32xf32>
    %cst_146 = arith.constant 9.99999974E-6 : f32
    %247 = vector.broadcast %cst_146 : f32 to vector<16x1xf32>
    %248 = arith.addf %244, %247 : vector<16x1xf32>
    %249 = math.rsqrt %248 : vector<16x1xf32>
    %250 = vector.broadcast %249 : vector<16x1xf32> to vector<16x32xf32>
    %251 = arith.mulf %246, %250 : vector<16x32xf32>
    %252 = arith.mulf %251, %173 : vector<16x32xf32>
    %253 = arith.addf %252, %176 : vector<16x32xf32>
    %cst_147 = arith.constant dense<0.000000e+00> : vector<16x64xf32>
    %254 = tpu.matmul %253, %150, %cst_147 {dimension_numbers = #tpu.dot_dimension_numbers<[1], [0], [0], [1], [0, 0, 1, 1], [], []>} : vector<16x32xf32>, vector<32x64xf32>, vector<16x64xf32> -> vector<16x64xf32>
    %255 = arith.addf %254, %167 : vector<16x64xf32>
    %cst_148 = arith.constant 0.000000e+00 : f32
    %256 = vector.broadcast %cst_148 : f32 to vector<16x64xf32>
    %257 = arith.maximumf %255, %256 : vector<16x64xf32>
    %cst_149 = arith.constant dense<0.000000e+00> : vector<16x32xf32>
    %258 = tpu.matmul %257, %152, %cst_149 {dimension_numbers = #tpu.dot_dimension_numbers<[1], [0], [0], [1], [0, 0, 1, 1], [], []>} : vector<16x64xf32>, vector<64x32xf32>, vector<16x32xf32> -> vector<16x32xf32>
    %259 = arith.addf %258, %170 : vector<16x32xf32>
    %260 = arith.addf %253, %259 : vector<16x32xf32>
    %cst_150 = arith.constant dense<0.000000e+00> : vector<16xf32>
    %261 = vector.multi_reduction <add>, %260, %cst_150 [1] : vector<16x32xf32> to vector<16xf32>
    %262 = vector.shape_cast %261 : vector<16xf32> to vector<16x1xf32>
    %cst_151 = arith.constant 3.200000e+01 : f32
    %263 = vector.broadcast %cst_151 : f32 to vector<16x1xf32>
    %264 = arith.divf %262, %263 : vector<16x1xf32>
    %265 = vector.broadcast %264 : vector<16x1xf32> to vector<16x32xf32>
    %266 = arith.subf %260, %265 : vector<16x32xf32>
    %267 = arith.mulf %266, %266 : vector<16x32xf32>
    %cst_152 = arith.constant dense<0.000000e+00> : vector<16xf32>
    %268 = vector.multi_reduction <add>, %267, %cst_152 [1] : vector<16x32xf32> to vector<16xf32>
    %269 = vector.shape_cast %268 : vector<16xf32> to vector<16x1xf32>
    %cst_153 = arith.constant 3.200000e+01 : f32
    %270 = vector.broadcast %cst_153 : f32 to vector<16x1xf32>
    %271 = arith.divf %269, %270 : vector<16x1xf32>
    %272 = vector.broadcast %264 : vector<16x1xf32> to vector<16x32xf32>
    %273 = arith.subf %260, %272 : vector<16x32xf32>
    %cst_154 = arith.constant 9.99999974E-6 : f32
    %274 = vector.broadcast %cst_154 : f32 to vector<16x1xf32>
    %275 = arith.addf %271, %274 : vector<16x1xf32>
    %276 = math.rsqrt %275 : vector<16x1xf32>
    %277 = vector.broadcast %276 : vector<16x1xf32> to vector<16x32xf32>
    %278 = arith.mulf %273, %277 : vector<16x32xf32>
    %279 = arith.mulf %278, %179 : vector<16x32xf32>
    %280 = arith.addf %279, %182 : vector<16x32xf32>
    %c0_155 = arith.constant 0 : index
    %c0_156 = arith.constant 0 : index
    %281 = vector.load %arg8[%c0_155, %c0_156] : memref<16x32xf32, #tpu.memory_space<vmem>>, vector<16x32xf32>
    tpu.vector_store %arg8[%c0_155, %c0_156], %280 {strides = array<i32>} : memref<16x32xf32, #tpu.memory_space<vmem>>, vector<16x32xf32>,
    return
  }
}

</mosaic_0001>

<llo_original>
// kernel: sequence_encoder_forward.1
$region0: #{sequence_encoder_forward.1}
  #allocation0 [shape = 'u32[]', space=smem, size = 0x4, offset = 0x4, fixed_abs, tag = 'smem constant byte address 0x4 - core index']
  #allocation1 [shape = 'u32[144,128]{1,0:T(1,128)}', space=vmem, size = 0x12000, scoped, tag = 'internal scratch']
  %s0 = inlined_call_operand.vmem [shape: f32[16,32], index: 0, kind: input, shape index: {}]
  %s1 = inlined_call_operand.vmem [shape: f32[2,32,32], index: 1, kind: input, shape index: {}]
  %s2 = inlined_call_operand.hbm [shape: f32[2,32,32], index: 2, kind: input, shape index: {}]
  %s3 = inlined_call_operand.vmem [shape: f32[2,32,32], index: 3, kind: input, shape index: {}]
  %s4 = inlined_call_operand.hbm [shape: f32[2,32,32], index: 4, kind: input, shape index: {}]
  %s5 = inlined_call_operand.hbm [shape: f32[2,32,64], index: 5, kind: input, shape index: {}]
  %s6 = inlined_call_operand.vmem [shape: f32[2,64,32], index: 6, kind: input, shape index: {}]
  %s7 = inlined_call_operand.vmem [shape: f32[2,10,16,128], index: 7, kind: input, shape index: {}]
  %s8 = inlined_call_operand.hbm [shape: f32[16,32], index: 8, kind: output, shape index: {}]
  %s9 = sld [smem:[#allocation0]]
  $region54: #{sequence_encoder_forward.1} parent=0
    _
  %s11 = ssub.s32 1, %s9
  %s12 = scalar_select 0, %s11, %s9
  $region1: #{sequence_encoder_forward.1} parent=0
    #allocation2 [shape = 'u8[32768]{0}', space=vmem, size = 0x8000, scoped, tag = 'input window, operand 2, single buffered']
    #allocation3 [shape = 's32[1]{0}', space=sflag, size = 0x4, scoped, tag = 'scoped memory for sequence_encoder_forward.1']
    #allocation4 [shape = 's32[1]{0}', space=sflag, size = 0x4, scoped, tag = 'scoped memory for sequence_encoder_forward.1']
    #allocation5 [shape = 'u8[32768]{0}', space=vmem, size = 0x8000, scoped, tag = 'input window, operand 4, single buffered']
    #allocation6 [shape = 's32[1]{0}', space=sflag, size = 0x4, scoped, tag = 'scoped memory for sequence_encoder_forward.1']
    #allocation7 [shape = 'u8[32768]{0}', space=vmem, size = 0x8000, scoped, tag = 'input window, operand 5, single buffered']
    #allocation8 [shape = 'u8[8192]{0}', space=vmem, size = 0x2000, scoped, tag = 'output window, operand 0, single buffered']
    %13 = vsyncpa [#allocation3], 0
    %14 = vsyncpa [#allocation6], 0
    %15 = vsyncpa [#allocation4], 0
    // Predicated region
    $region2: #{sequence_encoder_forward.1} parent=1 // pred_check
      _
    $region3: #{sequence_encoder_forward.1} parent=1 // pred_check_branch
      %17 = sbr.rel (0) target = $region5
    $region4: #{sequence_encoder_forward.1} parent=1 // pred_region
      _
    $region5: #{sequence_encoder_forward.1} parent=1 // pred_fallthru
      _
    // Predicated region
    $region6: #{sequence_encoder_forward.1} parent=1 // pred_check
      _
    $region7: #{sequence_encoder_forward.1} parent=1 // pred_check_branch
      %19 = sbr.rel (0) target = $region9
    $region8: #{sequence_encoder_forward.1} parent=1 // pred_region
      _
    $region9: #{sequence_encoder_forward.1} parent=1 // pred_fallthru
      _
    // Predicated region
    $region10: #{sequence_encoder_forward.1} parent=1 // pred_check
      _
    $region11: #{sequence_encoder_forward.1} parent=1 // pred_check_branch
      %21 = sbr.rel (0) target = $region13
    $region12: #{sequence_encoder_forward.1} parent=1 // pred_region
      %s23 = ssub.s32 1024, 1024
      %24 = vsyncadd [#allocation3], %s23
      %s25 = sshll.u32 [#allocation2], 4
      %s26 = int_to_ptr.vmem [resolvable:$true] %s25
      %31 = dma.hbm_to_vmem [thread:$0]  %s2, 1024, %s26, [#allocation3], 128, 128, 8
    $region13: #{sequence_encoder_forward.1} parent=1 // pred_fallthru
      _
    // Predicated region
    $region14: #{sequence_encoder_forward.1} parent=1 // pred_check
      _
    $region15: #{sequence_encoder_forward.1} parent=1 // pred_check_branch
      %33 = sbr.rel (0) target = $region17
    $region16: #{sequence_encoder_forward.1} parent=1 // pred_region
      _
    $region17: #{sequence_encoder_forward.1} parent=1 // pred_fallthru
      _
    // Predicated region
    $region18: #{sequence_encoder_forward.1} parent=1 // pred_check
      _
    $region19: #{sequence_encoder_forward.1} parent=1 // pred_check_branch
      %35 = sbr.rel (0) target = $region21
    $region20: #{sequence_encoder_forward.1} parent=1 // pred_region
      %s37 = ssub.s32 1024, 1024
      %38 = vsyncadd [#allocation6], %s37
      %s39 = sshll.u32 [#allocation5], 4
      %s40 = int_to_ptr.vmem [resolvable:$true] %s39
      %45 = dma.hbm_to_vmem [thread:$0]  %s4, 1024, %s40, [#allocation6], 128, 128, 8
    $region21: #{sequence_encoder_forward.1} parent=1 // pred_fallthru
      _
    // Predicated region
    $region22: #{sequence_encoder_forward.1} parent=1 // pred_check
      _
    $region23: #{sequence_encoder_forward.1} parent=1 // pred_check_branch
      %47 = sbr.rel (0) target = $region25
    $region24: #{sequence_encoder_forward.1} parent=1 // pred_region
      %s49 = ssub.s32 1024, 1024
      %50 = vsyncadd [#allocation6], %s49
      %s51 = sshll.u32 [#allocation7], 4
      %s52 = int_to_ptr.vmem [resolvable:$true] %s51
      %57 = dma.hbm_to_vmem [thread:$0]  %s5, 1024, %s52, [#allocation6], 128, 128, 8
    $region25: #{sequence_encoder_forward.1} parent=1 // pred_fallthru
      _
    // Predicated region
    $region26: #{sequence_encoder_forward.1} parent=1 // pred_check
      _
    $region27: #{sequence_encoder_forward.1} parent=1 // pred_check_branch
      %59 = sbr.rel (0) target = $region29
    $region28: #{sequence_encoder_forward.1} parent=1 // pred_region
      _
    $region29: #{sequence_encoder_forward.1} parent=1 // pred_fallthru
      _
    // Predicated region
    $region30: #{sequence_encoder_forward.1} parent=1 // pred_check
      _
    $region31: #{sequence_encoder_forward.1} parent=1 // pred_check_branch
      %61 = sbr.rel (0) target = $region33
    $region32: #{sequence_encoder_forward.1} parent=1 // pred_region
      _
    $region33: #{sequence_encoder_forward.1} parent=1 // pred_fallthru
      _
    // Predicated region
    $region34: #{sequence_encoder_forward.1} parent=1 // pred_check
      _
    $region35: #{sequence_encoder_forward.1} parent=1 // pred_check_branch
      %63 = sbr.rel (0) target = $region37
    $region36: #{sequence_encoder_forward.1} parent=1 // pred_region
      %64 = dma.done [#allocation3], 1024
    $region37: #{sequence_encoder_forward.1} parent=1 // pred_fallthru
      _
    // Predicated region
    $region38: #{sequence_encoder_forward.1} parent=1 // pred_check
      _
    $region39: #{sequence_encoder_forward.1} parent=1 // pred_check_branch
      %66 = sbr.rel (0) target = $region41
    $region40: #{sequence_encoder_forward.1} parent=1 // pred_region
      %67 = dma.done [#allocation6], 1024
    $region41: #{sequence_encoder_forward.1} parent=1 // pred_fallthru
      _
    // Predicated region
    $region42: #{sequence_encoder_forward.1} parent=1 // pred_check
      _
    $region43: #{sequence_encoder_forward.1} parent=1 // pred_check_branch
      %69 = sbr.rel (0) target = $region45
    $region44: #{sequence_encoder_forward.1} parent=1 // pred_region
      %70 = dma.done [#allocation6], 1024
    $region45: #{sequence_encoder_forward.1} parent=1 // pred_fallthru
      _
    %v71 = vld [vmem:[%s0] sm:$0xff]
    %v72 = vld [vmem:[%s0 + $0x8] sm:$0xff]
    %v73 = vld [vmem:[%s1] sm:$0xff]
    %v74 = vld [vmem:[%s1 + $0x8] sm:$0xff]
    %v75 = vld [vmem:[%s1 + $0x10] sm:$0xff]
    %v76 = vld [vmem:[%s1 + $0x18] sm:$0xff]
    %v77 = vld [vmem:[#allocation2] sm:$0xff]
    %v78 = vld [vmem:[#allocation2 + $0x8] sm:$0xff]
    %v79 = vld [vmem:[#allocation2 + $0x10] sm:$0xff]
    %v80 = vld [vmem:[#allocation2 + $0x18] sm:$0xff]
    %v81 = vld [vmem:[%s3] sm:$0xff]
    %v82 = vld [vmem:[%s3 + $0x8] sm:$0xff]
    %v83 = vld [vmem:[%s3 + $0x10] sm:$0xff]
    %v84 = vld [vmem:[%s3 + $0x18] sm:$0xff]
    %v85 = vld [vmem:[#allocation5] sm:$0xff]
    %v86 = vld [vmem:[#allocation5 + $0x8] sm:$0xff]
    %v87 = vld [vmem:[#allocation5 + $0x10] sm:$0xff]
    %v88 = vld [vmem:[#allocation5 + $0x18] sm:$0xff]
    %v89 = vld [vmem:[#allocation7] sm:$0xff]
    %v90 = vld [vmem:[#allocation7 + $0x8] sm:$0xff]
    %v91 = vld [vmem:[#allocation7 + $0x10] sm:$0xff]
    %v92 = vld [vmem:[#allocation7 + $0x18] sm:$0xff]
    %v93 = vld [vmem:[%s6] sm:$0xff]
    %v94 = vld [vmem:[%s6 + $0x8] sm:$0xff]
    %v95 = vld [vmem:[%s6 + $0x10] sm:$0xff]
    %v96 = vld [vmem:[%s6 + $0x18] sm:$0xff]
    %v97 = vld [vmem:[%s6 + $0x20] sm:$0xff]
    %v98 = vld [vmem:[%s6 + $0x28] sm:$0xff]
    %v99 = vld [vmem:[%s6 + $0x30] sm:$0xff]
    %v100 = vld [vmem:[%s6 + $0x38] sm:$0xff]
    %v101 = vld [vmem:[%s7] sm:$0xff]
    %v102 = vld [vmem:[%s7 + $0x8] sm:$0xff]
    %s103 = scalar_lea.vmem %s7, 16
    %v104 = vld [vmem:[%s103] sm:$0xff]
    %v105 = vld [vmem:[%s103 + $0x8] sm:$0xff]
    %s106 = scalar_lea.vmem %s7, 32
    %v107 = vld [vmem:[%s106] sm:$0xff]
    %v108 = vld [vmem:[%s106 + $0x8] sm:$0xff]
    %s109 = scalar_lea.vmem %s7, 48
    %v110 = vld [vmem:[%s109] sm:$0xff]
    %v111 = vld [vmem:[%s109 + $0x8] sm:$0xff]
    %s112 = scalar_lea.vmem %s7, 64
    %v113 = vld [vmem:[%s112] sm:$0xff]
    %v114 = vld [vmem:[%s112 + $0x8] sm:$0xff]
    %s115 = scalar_lea.vmem %s7, 80
    %v116 = vld [vmem:[%s115] sm:$0xff]
    %v117 = vld [vmem:[%s115 + $0x8] sm:$0xff]
    %s118 = scalar_lea.vmem %s7, 96
    %v119 = vld [vmem:[%s118] sm:$0xff]
    %v120 = vld [vmem:[%s118 + $0x8] sm:$0xff]
    %s121 = scalar_lea.vmem %s7, 112
    %v122 = vld [vmem:[%s121] sm:$0xff]
    %v123 = vld [vmem:[%s121 + $0x8] sm:$0xff]
    %s124 = scalar_lea.vmem %s7, 128
    %v125 = vld [vmem:[%s124] sm:$0xff]
    %v126 = vld [vmem:[%s124 + $0x8] sm:$0xff]
    %s127 = scalar_lea.vmem %s7, 144
    %v128 = vld [vmem:[%s127] sm:$0xff]
    %v129 = vld [vmem:[%s127 + $0x8] sm:$0xff]
    %vm130 = vcmask 261120
    %v132 = vsel %vm130, %v71, 0
    %v135 = vsel %vm130, %v72, 0
    %137 = vmatprep.subr.mxu0 0.0
    %138 = vmatpush1.msra.mxu0 %v73
    %139 = vmatprep.subr.mxu0 0.0
    %140 = vmatpush1.msra.mxu0 %v74
    %141 = vmatprep.subr.mxu0 0.0
    %142 = vmatpush1.msra.mxu0 %v75
    %143 = vmatprep.subr.mxu0 0.0
    %144 = vmatpush1.msra.mxu0 %v76
    %145 = vmatprep.subr.mxu0 0.0
    %146 = vmatpush1.msra.mxu0 0.0
    %147 = vmatprep.subr.mxu0 0.0
    %148 = vmatpush1.msra.mxu0 0.0
    %149 = vmatprep.subr.mxu0 0.0
    %150 = vmatpush1.msra.mxu0 0.0
    %151 = vmatprep.subr.mxu0 0.0
    %152 = vmatpush1.msra.mxu0 0.0
    %153 = vmatprep.subr.mxu0 0.0
    %154 = vmatpush1.msra.mxu0 0.0
    %155 = vmatprep.subr.mxu0 0.0
    %156 = vmatpush1.msra.mxu0 0.0
    %157 = vmatprep.subr.mxu0 0.0
    %158 = vmatpush1.msra.mxu0 0.0
    %159 = vmatprep.subr.mxu0 0.0
    %160 = vmatpush1.msra.mxu0 0.0
    %161 = vmatprep.subr.mxu0 0.0
    %162 = vmatpush1.msra.mxu0 0.0
    %163 = vmatprep.subr.mxu0 0.0
    %164 = vmatpush1.msra.mxu0 0.0
    %165 = vmatprep.subr.mxu0 0.0
    %166 = vmatpush1.msra.mxu0 0.0
    %167 = vmatprep.subr.mxu0 0.0
    %168 = vmatpush1.msra.mxu0 0.0
    %169 = vmatprep.subr.mxu0 0.0
    %170 = vmatpush1.msra.mxu0 0.0
    %171 = vmatprep.subr.mxu0 0.0
    %172 = vmatpush1.msra.mxu0 0.0
    %173 = vmatprep.subr.mxu0 0.0
    %174 = vmatpush1.msra.mxu0 0.0
    %175 = vmatprep.subr.mxu0 0.0
    %176 = vmatpush1.msra.mxu0 0.0
    %177 = vmatprep.subr.mxu0 0.0
    %178 = vmatpush1.msra.mxu0 0.0
    %179 = vmatprep.subr.mxu0 0.0
    %180 = vmatpush1.msra.mxu0 0.0
    %181 = vmatprep.subr.mxu0 0.0
    %182 = vmatpush1.msra.mxu0 0.0
    %183 = vmatprep.subr.mxu0 0.0
    %184 = vmatpush1.msra.mxu0 0.0
    %185 = vmatprep.subr.mxu0 0.0
    %186 = vmatpush1.msra.mxu0 0.0
    %187 = vmatprep.subr.mxu0 0.0
    %188 = vmatpush1.msra.mxu0 0.0
    %189 = vmatprep.subr.mxu0 0.0
    %190 = vmatpush1.msra.mxu0 0.0
    %191 = vmatprep.subr.mxu0 0.0
    %192 = vmatpush1.msra.mxu0 0.0
    %193 = vmatprep.subr.mxu0 0.0
    %194 = vmatpush1.msra.mxu0 0.0
    %195 = vmatprep.subr.mxu0 0.0
    %196 = vmatpush1.msra.mxu0 0.0
    %197 = vmatprep.subr.mxu0 0.0
    %198 = vmatpush1.msra.mxu0 0.0
    %199 = vmatprep.subr.mxu0 0.0
    %200 = vmatpush1.msra.mxu0 0.0
    %201 = vmatprep.mubr.f32.mxu0 0.0
    %202 = vmatmul.mubr.f32.gmra.mrb[0].mxu0 %v132
    %v203 = vpop.f32.mrb[0].mxu0
    %v204 = vadd.f32 %v101, %v203
    %v205 = vpop.f32.mrb[0].mxu0
    %206 = vmatprep.mubr.f32.mxu0 0.0
    %207 = vmatmul.mubr.f32.gmra.mrb[0].mxu0 %v135
    %v208 = vpop.f32.mrb[0].mxu0
    %v209 = vadd.f32 %v102, %v208
    %v210 = vpop.f32.mrb[0].mxu0
    %211 = vdwg.mxu0
    %212 = vmatprep.subr.mxu0 0.0
    %213 = vmatpush1.msra.mxu0 %v77
    %214 = vmatprep.subr.mxu0 0.0
    %215 = vmatpush1.msra.mxu0 %v78
    %216 = vmatprep.subr.mxu0 0.0
    %217 = vmatpush1.msra.mxu0 %v79
    %218 = vmatprep.subr.mxu0 0.0
    %219 = vmatpush1.msra.mxu0 %v80
    %220 = vmatprep.subr.mxu0 0.0
    %221 = vmatpush1.msra.mxu0 0.0
    %222 = vmatprep.subr.mxu0 0.0
    %223 = vmatpush1.msra.mxu0 0.0
    %224 = vmatprep.subr.mxu0 0.0
    %225 = vmatpush1.msra.mxu0 0.0
    %226 = vmatprep.subr.mxu0 0.0
    %227 = vmatpush1.msra.mxu0 0.0
    %228 = vmatprep.subr.mxu0 0.0
    %229 = vmatpush1.msra.mxu0 0.0
    %230 = vmatprep.subr.mxu0 0.0
    %231 = vmatpush1.msra.mxu0 0.0
    %232 = vmatprep.subr.mxu0 0.0
    %233 = vmatpush1.msra.mxu0 0.0
    %234 = vmatprep.subr.mxu0 0.0
    %235 = vmatpush1.msra.mxu0 0.0
    %236 = vmatprep.subr.mxu0 0.0
    %237 = vmatpush1.msra.mxu0 0.0
    %238 = vmatprep.subr.mxu0 0.0
    %239 = vmatpush1.msra.mxu0 0.0
    %240 = vmatprep.subr.mxu0 0.0
    %241 = vmatpush1.msra.mxu0 0.0
    %242 = vmatprep.subr.mxu0 0.0
    %243 = vmatpush1.msra.mxu0 0.0
    %244 = vmatprep.subr.mxu0 0.0
    %245 = vmatpush1.msra.mxu0 0.0
    %246 = vmatprep.subr.mxu0 0.0
    %247 = vmatpush1.msra.mxu0 0.0
    %248 = vmatprep.subr.mxu0 0.0
    %249 = vmatpush1.msra.mxu0 0.0
    %250 = vmatprep.subr.mxu0 0.0
    %251 = vmatpush1.msra.mxu0 0.0
    %252 = vmatprep.subr.mxu0 0.0
    %253 = vmatpush1.msra.mxu0 0.0
    %254 = vmatprep.subr.mxu0 0.0
    %255 = vmatpush1.msra.mxu0 0.0
    %256 = vmatprep.subr.mxu0 0.0
    %257 = vmatpush1.msra.mxu0 0.0
    %258 = vmatprep.subr.mxu0 0.0
    %259 = vmatpush1.msra.mxu0 0.0
    %260 = vmatprep.subr.mxu0 0.0
    %261 = vmatpush1.msra.mxu0 0.0
    %262 = vmatprep.subr.mxu0 0.0
    %263 = vmatpush1.msra.mxu0 0.0
    %264 = vmatprep.subr.mxu0 0.0
    %265 = vmatpush1.msra.mxu0 0.0
    %266 = vmatprep.subr.mxu0 0.0
    %267 = vmatpush1.msra.mxu0 0.0
    %268 = vmatprep.subr.mxu0 0.0
    %269 = vmatpush1.msra.mxu0 0.0
    %270 = vmatprep.subr.mxu0 0.0
    %271 = vmatpush1.msra.mxu0 0.0
    %272 = vmatprep.subr.mxu0 0.0
    %273 = vmatpush1.msra.mxu0 0.0
    %274 = vmatprep.subr.mxu0 0.0
    %275 = vmatpush1.msra.mxu0 0.0
    %276 = vmatprep.mubr.f32.mxu0 0.0
    %277 = vmatmul.mubr.f32.gmra.mrb[0].mxu0 %v132
    %v278 = vpop.f32.mrb[0].mxu0
    %v279 = vadd.f32 %v104, %v278
    %v280 = vpop.f32.mrb[0].mxu0
    %281 = vmatprep.mubr.f32.mxu0 0.0
    %282 = vmatmul.mubr.f32.gmra.mrb[0].mxu0 %v135
    %v283 = vpop.f32.mrb[0].mxu0
    %v284 = vadd.f32 %v105, %v283
    %v285 = vpop.f32.mrb[0].mxu0
    %286 = vdwg.mxu0
    %287 = vmatprep.subr.mxu0 0.0
    %288 = vmatpush1.msra.mxu0 %v81
    %289 = vmatprep.subr.mxu0 0.0
    %290 = vmatpush1.msra.mxu0 %v82
    %291 = vmatprep.subr.mxu0 0.0
    %292 = vmatpush1.msra.mxu0 %v83
    %293 = vmatprep.subr.mxu0 0.0
    %294 = vmatpush1.msra.mxu0 %v84
    %295 = vmatprep.subr.mxu0 0.0
    %296 = vmatpush1.msra.mxu0 0.0
    %297 = vmatprep.subr.mxu0 0.0
    %298 = vmatpush1.msra.mxu0 0.0
    %299 = vmatprep.subr.mxu0 0.0
    %300 = vmatpush1.msra.mxu0 0.0
    %301 = vmatprep.subr.mxu0 0.0
    %302 = vmatpush1.msra.mxu0 0.0
    %303 = vmatprep.subr.mxu0 0.0
    %304 = vmatpush1.msra.mxu0 0.0
    %305 = vmatprep.subr.mxu0 0.0
    %306 = vmatpush1.msra.mxu0 0.0
    %307 = vmatprep.subr.mxu0 0.0
    %308 = vmatpush1.msra.mxu0 0.0
    %309 = vmatprep.subr.mxu0 0.0
    %310 = vmatpush1.msra.mxu0 0.0
    %311 = vmatprep.subr.mxu0 0.0
    %312 = vmatpush1.msra.mxu0 0.0
    %313 = vmatprep.subr.mxu0 0.0
    %314 = vmatpush1.msra.mxu0 0.0
    %315 = vmatprep.subr.mxu0 0.0
    %316 = vmatpush1.msra.mxu0 0.0
    %317 = vmatprep.subr.mxu0 0.0
    %318 = vmatpush1.msra.mxu0 0.0
    %319 = vmatprep.subr.mxu0 0.0
    %320 = vmatpush1.msra.mxu0 0.0
    %321 = vmatprep.subr.mxu0 0.0
    %322 = vmatpush1.msra.mxu0 0.0
    %323 = vmatprep.subr.mxu0 0.0
    %324 = vmatpush1.msra.mxu0 0.0
    %325 = vmatprep.subr.mxu0 0.0
    %326 = vmatpush1.msra.mxu0 0.0
    %327 = vmatprep.subr.mxu0 0.0
    %328 = vmatpush1.msra.mxu0 0.0
    %329 = vmatprep.subr.mxu0 0.0
    %330 = vmatpush1.msra.mxu0 0.0
    %331 = vmatprep.subr.mxu0 0.0
    %332 = vmatpush1.msra.mxu0 0.0
    %333 = vmatprep.subr.mxu0 0.0
    %334 = vmatpush1.msra.mxu0 0.0
    %335 = vmatprep.subr.mxu0 0.0
    %336 = vmatpush1.msra.mxu0 0.0
    %337 = vmatprep.subr.mxu0 0.0
    %338 = vmatpush1.msra.mxu0 0.0
    %339 = vmatprep.subr.mxu0 0.0
    %340 = vmatpush1.msra.mxu0 0.0
    %341 = vmatprep.subr.mxu0 0.0
    %342 = vmatpush1.msra.mxu0 0.0
    %343 = vmatprep.subr.mxu0 0.0
    %344 = vmatpush1.msra.mxu0 0.0
    %345 = vmatprep.subr.mxu0 0.0
    %346 = vmatpush1.msra.mxu0 0.0
    %347 = vmatprep.subr.mxu0 0.0
    %348 = vmatpush1.msra.mxu0 0.0
    %349 = vmatprep.subr.mxu0 0.0
    %350 = vmatpush1.msra.mxu0 0.0
    %351 = vmatprep.mubr.f32.mxu0 0.0
    %352 = vmatmul.mubr.f32.gmra.mrb[0].mxu0 %v132
    %v353 = vpop.f32.mrb[0].mxu0
    %v354 = vadd.f32 %v107, %v353
    %v355 = vpop.f32.mrb[0].mxu0
    %356 = vmatprep.mubr.f32.mxu0 0.0
    %357 = vmatmul.mubr.f32.gmra.mrb[0].mxu0 %v135
    %v358 = vpop.f32.mrb[0].mxu0
    %v359 = vadd.f32 %v108, %v358
    %v360 = vpop.f32.mrb[0].mxu0
    %361 = vdwg.mxu0
    %364 = vrot.lane.b32.xlu0 %v204, 120
    %v365 = vpop.permute.xlu0 %364
    %366 = vrot.lane.b32.xlu0 %v209, 120
    %v367 = vpop.permute.xlu0 %366
    %370 = vrot.lane.b32.xlu0 %v204, 112
    %v371 = vpop.permute.xlu0 %370
    %372 = vrot.lane.b32.xlu0 %v209, 112
    %v373 = vpop.permute.xlu0 %372
    %376 = vrot.lane.b32.xlu0 %v204, 104
    %v377 = vpop.permute.xlu0 %376
    %378 = vrot.lane.b32.xlu0 %v209, 104
    %v379 = vpop.permute.xlu0 %378
    %v382 = vcombine.low %v204, %v371
    %v383 = vcombine.high %v204, %v371
    %v385 = vunpack.c.l.s4 1983009808
    %v386 = vunpack.c.0.s8 %v385
    %v387 = vlaneseq
    %v388 = vshrl.u32 %v387, 7
    %v389 = vsub.s32 %v386, %v388
    %v390 = vrot.slane %v382, %v389
    %v392 = vunpack.c.l.s4 1983009808
    %v393 = vunpack.c.0.s8 %v392
    %v394 = vlaneseq
    %v395 = vshrl.u32 %v394, 7
    %v396 = vsub.s32 %v393, %v395
    %v397 = vrot.slane %v383, %v396
    %v398 = vcombine.low %v365, %v377
    %v399 = vcombine.high %v365, %v377
    %v401 = vunpack.c.l.s4 1983009808
    %v402 = vunpack.c.0.s8 %v401
    %v403 = vlaneseq
    %v404 = vshrl.u32 %v403, 7
    %v405 = vsub.s32 %v402, %v404
    %v406 = vrot.slane %v398, %v405
    %v408 = vunpack.c.l.s4 1983009808
    %v409 = vunpack.c.0.s8 %v408
    %v410 = vlaneseq
    %v411 = vshrl.u32 %v410, 7
    %v412 = vsub.s32 %v409, %v411
    %v413 = vrot.slane %v399, %v412
    %v414 = vcombine.low %v390, %v406
    %v415 = vcombine.high %v390, %v406
    %v417 = vunpack.c.l.s4 1934713408
    %v418 = vunpack.c.0.s8 %v417
    %v419 = vlaneseq
    %v420 = vshrl.u32 %v419, 7
    %v421 = vsub.s32 %v418, %v420
    %v422 = vrot.slane %v414, %v421
    %v424 = vunpack.c.l.s4 1934713408
    %v425 = vunpack.c.0.s8 %v424
    %v426 = vlaneseq
    %v427 = vshrl.u32 %v426, 7
    %v428 = vsub.s32 %v425, %v427
    %v429 = vrot.slane %v415, %v428
    %v430 = vcombine.low %v397, %v413
    %v431 = vcombine.high %v397, %v413
    %v433 = vunpack.c.l.s4 1934713408
    %v434 = vunpack.c.0.s8 %v433
    %v435 = vlaneseq
    %v436 = vshrl.u32 %v435, 7
    %v437 = vsub.s32 %v434, %v436
    %v438 = vrot.slane %v430, %v437
    %v440 = vunpack.c.l.s4 1934713408
    %v441 = vunpack.c.0.s8 %v440
    %v442 = vlaneseq
    %v443 = vshrl.u32 %v442, 7
    %v444 = vsub.s32 %v441, %v443
    %v445 = vrot.slane %v431, %v444
    %v446 = vcombine.high %v422, 0.0
    %v447 = vcombine.high %v429, 0.0
    %v448 = vcombine.high %v438, 0.0
    %v449 = vcombine.high %v445, 0.0
    %v450 = vcombine.low %v209, %v373
    %v451 = vcombine.high %v209, %v373
    %v453 = vunpack.c.l.s4 1983009808
    %v454 = vunpack.c.0.s8 %v453
    %v455 = vlaneseq
    %v456 = vshrl.u32 %v455, 7
    %v457 = vsub.s32 %v454, %v456
    %v458 = vrot.slane %v450, %v457
    %v460 = vunpack.c.l.s4 1983009808
    %v461 = vunpack.c.0.s8 %v460
    %v462 = vlaneseq
    %v463 = vshrl.u32 %v462, 7
    %v464 = vsub.s32 %v461, %v463
    %v465 = vrot.slane %v451, %v464
    %v466 = vcombine.low %v367, %v379
    %v467 = vcombine.high %v367, %v379
    %v469 = vunpack.c.l.s4 1983009808
    %v470 = vunpack.c.0.s8 %v469
    %v471 = vlaneseq
    %v472 = vshrl.u32 %v471, 7
    %v473 = vsub.s32 %v470, %v472
    %v474 = vrot.slane %v466, %v473
    %v476 = vunpack.c.l.s4 1983009808
    %v477 = vunpack.c.0.s8 %v476
    %v478 = vlaneseq
    %v479 = vshrl.u32 %v478, 7
    %v480 = vsub.s32 %v477, %v479
    %v481 = vrot.slane %v467, %v480
    %v482 = vcombine.low %v458, %v474
    %v483 = vcombine.high %v458, %v474
    %v485 = vunpack.c.l.s4 1934713408
    %v486 = vunpack.c.0.s8 %v485
    %v487 = vlaneseq
    %v488 = vshrl.u32 %v487, 7
    %v489 = vsub.s32 %v486, %v488
    %v490 = vrot.slane %v482, %v489
    %v492 = vunpack.c.l.s4 1934713408
    %v493 = vunpack.c.0.s8 %v492
    %v494 = vlaneseq
    %v495 = vshrl.u32 %v494, 7
    %v496 = vsub.s32 %v493, %v495
    %v497 = vrot.slane %v483, %v496
    %v498 = vcombine.low %v465, %v481
    %v499 = vcombine.high %v465, %v481
    %v501 = vunpack.c.l.s4 1934713408
    %v502 = vunpack.c.0.s8 %v501
    %v503 = vlaneseq
    %v504 = vshrl.u32 %v503, 7
    %v505 = vsub.s32 %v502, %v504
    %v506 = vrot.slane %v498, %v505
    %v508 = vunpack.c.l.s4 1934713408
    %v509 = vunpack.c.0.s8 %v508
    %v510 = vlaneseq
    %v511 = vshrl.u32 %v510, 7
    %v512 = vsub.s32 %v509, %v511
    %v513 = vrot.slane %v499, %v512
    %v514 = vcombine.high %v490, 0.0
    %v515 = vcombine.high %v497, 0.0
    %v516 = vcombine.high %v506, 0.0
    %v517 = vcombine.high %v513, 0.0
    %v518 = vcombine.low %v422, %v429
    %v520 = vunpack.c.l.s4 1983009808
    %v521 = vunpack.c.0.s8 %v520
    %v522 = vlaneseq
    %v523 = vshrl.u32 %v522, 7
    %v524 = vsub.s32 %v521, %v523
    %v525 = vrot.slane %v518, %v524
    %v526 = vcombine.low %v446, %v447
    %v528 = vunpack.c.l.s4 1983009808
    %v529 = vunpack.c.0.s8 %v528
    %v530 = vlaneseq
    %v531 = vshrl.u32 %v530, 7
    %v532 = vsub.s32 %v529, %v531
    %v533 = vrot.slane %v526, %v532
    %v534 = vcombine.low %v438, %v445
    %v536 = vunpack.c.l.s4 1983009808
    %v537 = vunpack.c.0.s8 %v536
    %v538 = vlaneseq
    %v539 = vshrl.u32 %v538, 7
    %v540 = vsub.s32 %v537, %v539
    %v541 = vrot.slane %v534, %v540
    %v542 = vcombine.low %v448, %v449
    %v544 = vunpack.c.l.s4 1983009808
    %v545 = vunpack.c.0.s8 %v544
    %v546 = vlaneseq
    %v547 = vshrl.u32 %v546, 7
    %v548 = vsub.s32 %v545, %v547
    %v549 = vrot.slane %v542, %v548
    %v550 = vcombine.low %v525, %v533
    %v551 = vcombine.high %v525, %v533
    %v553 = vunpack.c.l.s4 1934713408
    %v554 = vunpack.c.0.s8 %v553
    %v555 = vlaneseq
    %v556 = vshrl.u32 %v555, 7
    %v557 = vsub.s32 %v554, %v556
    %v558 = vrot.slane %v550, %v557
    %v560 = vunpack.c.l.s4 1934713408
    %v561 = vunpack.c.0.s8 %v560
    %v562 = vlaneseq
    %v563 = vshrl.u32 %v562, 7
    %v564 = vsub.s32 %v561, %v563
    %v565 = vrot.slane %v551, %v564
    %v566 = vcombine.low %v541, %v549
    %v567 = vcombine.high %v541, %v549
    %v569 = vunpack.c.l.s4 1934713408
    %v570 = vunpack.c.0.s8 %v569
    %v571 = vlaneseq
    %v572 = vshrl.u32 %v571, 7
    %v573 = vsub.s32 %v570, %v572
    %v574 = vrot.slane %v566, %v573
    %v576 = vunpack.c.l.s4 1934713408
    %v577 = vunpack.c.0.s8 %v576
    %v578 = vlaneseq
    %v579 = vshrl.u32 %v578, 7
    %v580 = vsub.s32 %v577, %v579
    %v581 = vrot.slane %v567, %v580
    %v582 = vcombine.low %v558, %v574
    %v583 = vcombine.high %v558, %v574
    %v584 = vcombine.low %v565, %v581
    %v585 = vcombine.high %v565, %v581
    %v586 = vcombine.low %v490, %v497
    %v588 = vunpack.c.l.s4 1983009808
    %v589 = vunpack.c.0.s8 %v588
    %v590 = vlaneseq
    %v591 = vshrl.u32 %v590, 7
    %v592 = vsub.s32 %v589, %v591
    %v593 = vrot.slane %v586, %v592
    %v594 = vcombine.low %v514, %v515
    %v596 = vunpack.c.l.s4 1983009808
    %v597 = vunpack.c.0.s8 %v596
    %v598 = vlaneseq
    %v599 = vshrl.u32 %v598, 7
    %v600 = vsub.s32 %v597, %v599
    %v601 = vrot.slane %v594, %v600
    %v602 = vcombine.low %v506, %v513
    %v604 = vunpack.c.l.s4 1983009808
    %v605 = vunpack.c.0.s8 %v604
    %v606 = vlaneseq
    %v607 = vshrl.u32 %v606, 7
    %v608 = vsub.s32 %v605, %v607
    %v609 = vrot.slane %v602, %v608
    %v610 = vcombine.low %v516, %v517
    %v612 = vunpack.c.l.s4 1983009808
    %v613 = vunpack.c.0.s8 %v612
    %v614 = vlaneseq
    %v615 = vshrl.u32 %v614, 7
    %v616 = vsub.s32 %v613, %v615
    %v617 = vrot.slane %v610, %v616
    %v618 = vcombine.low %v593, %v601
    %v619 = vcombine.high %v593, %v601
    %v621 = vunpack.c.l.s4 1934713408
    %v622 = vunpack.c.0.s8 %v621
    %v623 = vlaneseq
    %v624 = vshrl.u32 %v623, 7
    %v625 = vsub.s32 %v622, %v624
    %v626 = vrot.slane %v618, %v625
    %v628 = vunpack.c.l.s4 1934713408
    %v629 = vunpack.c.0.s8 %v628
    %v630 = vlaneseq
    %v631 = vshrl.u32 %v630, 7
    %v632 = vsub.s32 %v629, %v631
    %v633 = vrot.slane %v619, %v632
    %v634 = vcombine.low %v609, %v617
    %v635 = vcombine.high %v609, %v617
    %v637 = vunpack.c.l.s4 1934713408
    %v638 = vunpack.c.0.s8 %v637
    %v639 = vlaneseq
    %v640 = vshrl.u32 %v639, 7
    %v641 = vsub.s32 %v638, %v640
    %v642 = vrot.slane %v634, %v641
    %v644 = vunpack.c.l.s4 1934713408
    %v645 = vunpack.c.0.s8 %v644
    %v646 = vlaneseq
    %v647 = vshrl.u32 %v646, 7
    %v648 = vsub.s32 %v645, %v647
    %v649 = vrot.slane %v635, %v648
    %v650 = vcombine.low %v626, %v642
    %v651 = vcombine.high %v626, %v642
    %v652 = vcombine.low %v633, %v649
    %v653 = vcombine.high %v633, %v649
    %656 = vrot.lane.b32.xlu0 %v279, 120
    %v657 = vpop.permute.xlu0 %656
    %658 = vrot.lane.b32.xlu0 %v284, 120
    %v659 = vpop.permute.xlu0 %658
    %662 = vrot.lane.b32.xlu0 %v279, 112
    %v663 = vpop.permute.xlu0 %662
    %664 = vrot.lane.b32.xlu0 %v284, 112
    %v665 = vpop.permute.xlu0 %664
    %668 = vrot.lane.b32.xlu0 %v279, 104
    %v669 = vpop.permute.xlu0 %668
    %670 = vrot.lane.b32.xlu0 %v284, 104
    %v671 = vpop.permute.xlu0 %670
    %v674 = vcombine.low %v279, %v663
    %v675 = vcombine.high %v279, %v663
    %v677 = vunpack.c.l.s4 1983009808
    %v678 = vunpack.c.0.s8 %v677
    %v679 = vlaneseq
    %v680 = vshrl.u32 %v679, 7
    %v681 = vsub.s32 %v678, %v680
    %v682 = vrot.slane %v674, %v681
    %v684 = vunpack.c.l.s4 1983009808
    %v685 = vunpack.c.0.s8 %v684
    %v686 = vlaneseq
    %v687 = vshrl.u32 %v686, 7
    %v688 = vsub.s32 %v685, %v687
    %v689 = vrot.slane %v675, %v688
    %v690 = vcombine.low %v657, %v669
    %v691 = vcombine.high %v657, %v669
    %v693 = vunpack.c.l.s4 1983009808
    %v694 = vunpack.c.0.s8 %v693
    %v695 = vlaneseq
    %v696 = vshrl.u32 %v695, 7
    %v697 = vsub.s32 %v694, %v696
    %v698 = vrot.slane %v690, %v697
    %v700 = vunpack.c.l.s4 1983009808
    %v701 = vunpack.c.0.s8 %v700
    %v702 = vlaneseq
    %v703 = vshrl.u32 %v702, 7
    %v704 = vsub.s32 %v701, %v703
    %v705 = vrot.slane %v691, %v704
    %v706 = vcombine.low %v682, %v698
    %v707 = vcombine.high %v682, %v698
    %v709 = vunpack.c.l.s4 1934713408
    %v710 = vunpack.c.0.s8 %v709
    %v711 = vlaneseq
    %v712 = vshrl.u32 %v711, 7
    %v713 = vsub.s32 %v710, %v712
    %v714 = vrot.slane %v706, %v713
    %v716 = vunpack.c.l.s4 1934713408
    %v717 = vunpack.c.0.s8 %v716
    %v718 = vlaneseq
    %v719 = vshrl.u32 %v718, 7
    %v720 = vsub.s32 %v717, %v719
    %v721 = vrot.slane %v707, %v720
    %v722 = vcombine.low %v689, %v705
    %v723 = vcombine.high %v689, %v705
    %v725 = vunpack.c.l.s4 1934713408
    %v726 = vunpack.c.0.s8 %v725
    %v727 = vlaneseq
    %v728 = vshrl.u32 %v727, 7
    %v729 = vsub.s32 %v726, %v728
    %v730 = vrot.slane %v722, %v729
    %v732 = vunpack.c.l.s4 1934713408
    %v733 = vunpack.c.0.s8 %v732
    %v734 = vlaneseq
    %v735 = vshrl.u32 %v734, 7
    %v736 = vsub.s32 %v733, %v735
    %v737 = vrot.slane %v723, %v736
    %v738 = vcombine.high %v714, 0.0
    %v739 = vcombine.high %v721, 0.0
    %v740 = vcombine.high %v730, 0.0
    %v741 = vcombine.high %v737, 0.0
    %v742 = vcombine.low %v284, %v665
    %v743 = vcombine.high %v284, %v665
    %v745 = vunpack.c.l.s4 1983009808
    %v746 = vunpack.c.0.s8 %v745
    %v747 = vlaneseq
    %v748 = vshrl.u32 %v747, 7
    %v749 = vsub.s32 %v746, %v748
    %v750 = vrot.slane %v742, %v749
    %v752 = vunpack.c.l.s4 1983009808
    %v753 = vunpack.c.0.s8 %v752
    %v754 = vlaneseq
    %v755 = vshrl.u32 %v754, 7
    %v756 = vsub.s32 %v753, %v755
    %v757 = vrot.slane %v743, %v756
    %v758 = vcombine.low %v659, %v671
    %v759 = vcombine.high %v659, %v671
    %v761 = vunpack.c.l.s4 1983009808
    %v762 = vunpack.c.0.s8 %v761
    %v763 = vlaneseq
    %v764 = vshrl.u32 %v763, 7
    %v765 = vsub.s32 %v762, %v764
    %v766 = vrot.slane %v758, %v765
    %v768 = vunpack.c.l.s4 1983009808
    %v769 = vunpack.c.0.s8 %v768
    %v770 = vlaneseq
    %v771 = vshrl.u32 %v770, 7
    %v772 = vsub.s32 %v769, %v771
    %v773 = vrot.slane %v759, %v772
    %v774 = vcombine.low %v750, %v766
    %v775 = vcombine.high %v750, %v766
    %v777 = vunpack.c.l.s4 1934713408
    %v778 = vunpack.c.0.s8 %v777
    %v779 = vlaneseq
    %v780 = vshrl.u32 %v779, 7
    %v781 = vsub.s32 %v778, %v780
    %v782 = vrot.slane %v774, %v781
    %v784 = vunpack.c.l.s4 1934713408
    %v785 = vunpack.c.0.s8 %v784
    %v786 = vlaneseq
    %v787 = vshrl.u32 %v786, 7
    %v788 = vsub.s32 %v785, %v787
    %v789 = vrot.slane %v775, %v788
    %v790 = vcombine.low %v757, %v773
    %v791 = vcombine.high %v757, %v773
    %v793 = vunpack.c.l.s4 1934713408
    %v794 = vunpack.c.0.s8 %v793
    %v795 = vlaneseq
    %v796 = vshrl.u32 %v795, 7
    %v797 = vsub.s32 %v794, %v796
    %v798 = vrot.slane %v790, %v797
    %v800 = vunpack.c.l.s4 1934713408
    %v801 = vunpack.c.0.s8 %v800
    %v802 = vlaneseq
    %v803 = vshrl.u32 %v802, 7
    %v804 = vsub.s32 %v801, %v803
    %v805 = vrot.slane %v791, %v804
    %v806 = vcombine.high %v782, 0.0
    %v807 = vcombine.high %v789, 0.0
    %v808 = vcombine.high %v798, 0.0
    %v809 = vcombine.high %v805, 0.0
    %v810 = vcombine.low %v714, %v721
    %v812 = vunpack.c.l.s4 1983009808
    %v813 = vunpack.c.0.s8 %v812
    %v814 = vlaneseq
    %v815 = vshrl.u32 %v814, 7
    %v816 = vsub.s32 %v813, %v815
    %v817 = vrot.slane %v810, %v816
    %v818 = vcombine.low %v738, %v739
    %v820 = vunpack.c.l.s4 1983009808
    %v821 = vunpack.c.0.s8 %v820
    %v822 = vlaneseq
    %v823 = vshrl.u32 %v822, 7
    %v824 = vsub.s32 %v821, %v823
    %v825 = vrot.slane %v818, %v824
    %v826 = vcombine.low %v730, %v737
    %v828 = vunpack.c.l.s4 1983009808
    %v829 = vunpack.c.0.s8 %v828
    %v830 = vlaneseq
    %v831 = vshrl.u32 %v830, 7
    %v832 = vsub.s32 %v829, %v831
    %v833 = vrot.slane %v826, %v832
    %v834 = vcombine.low %v740, %v741
    %v836 = vunpack.c.l.s4 1983009808
    %v837 = vunpack.c.0.s8 %v836
    %v838 = vlaneseq
    %v839 = vshrl.u32 %v838, 7
    %v840 = vsub.s32 %v837, %v839
    %v841 = vrot.slane %v834, %v840
    %v842 = vcombine.low %v817, %v825
    %v843 = vcombine.high %v817, %v825
    %v845 = vunpack.c.l.s4 1934713408
    %v846 = vunpack.c.0.s8 %v845
    %v847 = vlaneseq
    %v848 = vshrl.u32 %v847, 7
    %v849 = vsub.s32 %v846, %v848
    %v850 = vrot.slane %v842, %v849
    %v852 = vunpack.c.l.s4 1934713408
    %v853 = vunpack.c.0.s8 %v852
    %v854 = vlaneseq
    %v855 = vshrl.u32 %v854, 7
    %v856 = vsub.s32 %v853, %v855
    %v857 = vrot.slane %v843, %v856
    %v858 = vcombine.low %v833, %v841
    %v859 = vcombine.high %v833, %v841
    %v861 = vunpack.c.l.s4 1934713408
    %v862 = vunpack.c.0.s8 %v861
    %v863 = vlaneseq
    %v864 = vshrl.u32 %v863, 7
    %v865 = vsub.s32 %v862, %v864
    %v866 = vrot.slane %v858, %v865
    %v868 = vunpack.c.l.s4 1934713408
    %v869 = vunpack.c.0.s8 %v868
    %v870 = vlaneseq
    %v871 = vshrl.u32 %v870, 7
    %v872 = vsub.s32 %v869, %v871
    %v873 = vrot.slane %v859, %v872
    %v874 = vcombine.low %v850, %v866
    %v875 = vcombine.high %v850, %v866
    %v876 = vcombine.low %v857, %v873
    %v877 = vcombine.high %v857, %v873
    %v878 = vcombine.low %v782, %v789
    %v880 = vunpack.c.l.s4 1983009808
    %v881 = vunpack.c.0.s8 %v880
    %v882 = vlaneseq
    %v883 = vshrl.u32 %v882, 7
    %v884 = vsub.s32 %v881, %v883
    %v885 = vrot.slane %v878, %v884
    %v886 = vcombine.low %v806, %v807
    %v888 = vunpack.c.l.s4 1983009808
    %v889 = vunpack.c.0.s8 %v888
    %v890 = vlaneseq
    %v891 = vshrl.u32 %v890, 7
    %v892 = vsub.s32 %v889, %v891
    %v893 = vrot.slane %v886, %v892
    %v894 = vcombine.low %v798, %v805
    %v896 = vunpack.c.l.s4 1983009808
    %v897 = vunpack.c.0.s8 %v896
    %v898 = vlaneseq
    %v899 = vshrl.u32 %v898, 7
    %v900 = vsub.s32 %v897, %v899
    %v901 = vrot.slane %v894, %v900
    %v902 = vcombine.low %v808, %v809
    %v904 = vunpack.c.l.s4 1983009808
    %v905 = vunpack.c.0.s8 %v904
    %v906 = vlaneseq
    %v907 = vshrl.u32 %v906, 7
    %v908 = vsub.s32 %v905, %v907
    %v909 = vrot.slane %v902, %v908
    %v910 = vcombine.low %v885, %v893
    %v911 = vcombine.high %v885, %v893
    %v913 = vunpack.c.l.s4 1934713408
    %v914 = vunpack.c.0.s8 %v913
    %v915 = vlaneseq
    %v916 = vshrl.u32 %v915, 7
    %v917 = vsub.s32 %v914, %v916
    %v918 = vrot.slane %v910, %v917
    %v920 = vunpack.c.l.s4 1934713408
    %v921 = vunpack.c.0.s8 %v920
    %v922 = vlaneseq
    %v923 = vshrl.u32 %v922, 7
    %v924 = vsub.s32 %v921, %v923
    %v925 = vrot.slane %v911, %v924
    %v926 = vcombine.low %v901, %v909
    %v927 = vcombine.high %v901, %v909
    %v929 = vunpack.c.l.s4 1934713408
    %v930 = vunpack.c.0.s8 %v929
    %v931 = vlaneseq
    %v932 = vshrl.u32 %v931, 7
    %v933 = vsub.s32 %v930, %v932
    %v934 = vrot.slane %v926, %v933
    %v936 = vunpack.c.l.s4 1934713408
    %v937 = vunpack.c.0.s8 %v936
    %v938 = vlaneseq
    %v939 = vshrl.u32 %v938, 7
    %v940 = vsub.s32 %v937, %v939
    %v941 = vrot.slane %v927, %v940
    %v942 = vcombine.low %v918, %v934
    %v943 = vcombine.high %v918, %v934
    %v944 = vcombine.low %v925, %v941
    %v945 = vcombine.high %v925, %v941
    %948 = vrot.lane.b32.xlu0 %v354, 120
    %v949 = vpop.permute.xlu0 %948
    %950 = vrot.lane.b32.xlu0 %v359, 120
    %v951 = vpop.permute.xlu0 %950
    %954 = vrot.lane.b32.xlu0 %v354, 112
    %v955 = vpop.permute.xlu0 %954
    %956 = vrot.lane.b32.xlu0 %v359, 112
    %v957 = vpop.permute.xlu0 %956
    %960 = vrot.lane.b32.xlu0 %v354, 104
    %v961 = vpop.permute.xlu0 %960
    %962 = vrot.lane.b32.xlu0 %v359, 104
    %v963 = vpop.permute.xlu0 %962
    %v966 = vcombine.low %v354, %v955
    %v967 = vcombine.high %v354, %v955
    %v969 = vunpack.c.l.s4 1983009808
    %v970 = vunpack.c.0.s8 %v969
    %v971 = vlaneseq
    %v972 = vshrl.u32 %v971, 7
    %v973 = vsub.s32 %v970, %v972
    %v974 = vrot.slane %v966, %v973
    %v976 = vunpack.c.l.s4 1983009808
    %v977 = vunpack.c.0.s8 %v976
    %v978 = vlaneseq
    %v979 = vshrl.u32 %v978, 7
    %v980 = vsub.s32 %v977, %v979
    %v981 = vrot.slane %v967, %v980
    %v982 = vcombine.low %v949, %v961
    %v983 = vcombine.high %v949, %v961
    %v985 = vunpack.c.l.s4 1983009808
    %v986 = vunpack.c.0.s8 %v985
    %v987 = vlaneseq
    %v988 = vshrl.u32 %v987, 7
    %v989 = vsub.s32 %v986, %v988
    %v990 = vrot.slane %v982, %v989
    %v992 = vunpack.c.l.s4 1983009808
    %v993 = vunpack.c.0.s8 %v992
    %v994 = vlaneseq
    %v995 = vshrl.u32 %v994, 7
    %v996 = vsub.s32 %v993, %v995
    %v997 = vrot.slane %v983, %v996
    %v998 = vcombine.low %v974, %v990
    %v999 = vcombine.high %v974, %v990
    %v1001 = vunpack.c.l.s4 1934713408
    %v1002 = vunpack.c.0.s8 %v1001
    %v1003 = vlaneseq
    %v1004 = vshrl.u32 %v1003, 7
    %v1005 = vsub.s32 %v1002, %v1004
    %v1006 = vrot.slane %v998, %v1005
    %v1008 = vunpack.c.l.s4 1934713408
    %v1009 = vunpack.c.0.s8 %v1008
    %v1010 = vlaneseq
    %v1011 = vshrl.u32 %v1010, 7
    %v1012 = vsub.s32 %v1009, %v1011
    %v1013 = vrot.slane %v999, %v1012
    %v1014 = vcombine.low %v981, %v997
    %v1015 = vcombine.high %v981, %v997
    %v1017 = vunpack.c.l.s4 1934713408
    %v1018 = vunpack.c.0.s8 %v1017
    %v1019 = vlaneseq
    %v1020 = vshrl.u32 %v1019, 7
    %v1021 = vsub.s32 %v1018, %v1020
    %v1022 = vrot.slane %v1014, %v1021
    %v1024 = vunpack.c.l.s4 1934713408
    %v1025 = vunpack.c.0.s8 %v1024
    %v1026 = vlaneseq
    %v1027 = vshrl.u32 %v1026, 7
    %v1028 = vsub.s32 %v1025, %v1027
    %v1029 = vrot.slane %v1015, %v1028
    %v1030 = vcombine.high %v1006, 0.0
    %v1031 = vcombine.high %v1013, 0.0
    %v1032 = vcombine.high %v1022, 0.0
    %v1033 = vcombine.high %v1029, 0.0
    %v1034 = vcombine.low %v359, %v957
    %v1035 = vcombine.high %v359, %v957
    %v1037 = vunpack.c.l.s4 1983009808
    %v1038 = vunpack.c.0.s8 %v1037
    %v1039 = vlaneseq
    %v1040 = vshrl.u32 %v1039, 7
    %v1041 = vsub.s32 %v1038, %v1040
    %v1042 = vrot.slane %v1034, %v1041
    %v1044 = vunpack.c.l.s4 1983009808
    %v1045 = vunpack.c.0.s8 %v1044
    %v1046 = vlaneseq
    %v1047 = vshrl.u32 %v1046, 7
    %v1048 = vsub.s32 %v1045, %v1047
    %v1049 = vrot.slane %v1035, %v1048
    %v1050 = vcombine.low %v951, %v963
    %v1051 = vcombine.high %v951, %v963
    %v1053 = vunpack.c.l.s4 1983009808
    %v1054 = vunpack.c.0.s8 %v1053
    %v1055 = vlaneseq
    %v1056 = vshrl.u32 %v1055, 7
    %v1057 = vsub.s32 %v1054, %v1056
    %v1058 = vrot.slane %v1050, %v1057
    %v1060 = vunpack.c.l.s4 1983009808
    %v1061 = vunpack.c.0.s8 %v1060
    %v1062 = vlaneseq
    %v1063 = vshrl.u32 %v1062, 7
    %v1064 = vsub.s32 %v1061, %v1063
    %v1065 = vrot.slane %v1051, %v1064
    %v1066 = vcombine.low %v1042, %v1058
    %v1067 = vcombine.high %v1042, %v1058
    %v1069 = vunpack.c.l.s4 1934713408
    %v1070 = vunpack.c.0.s8 %v1069
    %v1071 = vlaneseq
    %v1072 = vshrl.u32 %v1071, 7
    %v1073 = vsub.s32 %v1070, %v1072
    %v1074 = vrot.slane %v1066, %v1073
    %v1076 = vunpack.c.l.s4 1934713408
    %v1077 = vunpack.c.0.s8 %v1076
    %v1078 = vlaneseq
    %v1079 = vshrl.u32 %v1078, 7
    %v1080 = vsub.s32 %v1077, %v1079
    %v1081 = vrot.slane %v1067, %v1080
    %v1082 = vcombine.low %v1049, %v1065
    %v1083 = vcombine.high %v1049, %v1065
    %v1085 = vunpack.c.l.s4 1934713408
    %v1086 = vunpack.c.0.s8 %v1085
    %v1087 = vlaneseq
    %v1088 = vshrl.u32 %v1087, 7
    %v1089 = vsub.s32 %v1086, %v1088
    %v1090 = vrot.slane %v1082, %v1089
    %v1092 = vunpack.c.l.s4 1934713408
    %v1093 = vunpack.c.0.s8 %v1092
    %v1094 = vlaneseq
    %v1095 = vshrl.u32 %v1094, 7
    %v1096 = vsub.s32 %v1093, %v1095
    %v1097 = vrot.slane %v1083, %v1096
    %v1098 = vcombine.high %v1074, 0.0
    %v1099 = vcombine.high %v1081, 0.0
    %v1100 = vcombine.high %v1090, 0.0
    %v1101 = vcombine.high %v1097, 0.0
    %v1102 = vcombine.low %v1006, %v1013
    %v1104 = vunpack.c.l.s4 1983009808
    %v1105 = vunpack.c.0.s8 %v1104
    %v1106 = vlaneseq
    %v1107 = vshrl.u32 %v1106, 7
    %v1108 = vsub.s32 %v1105, %v1107
    %v1109 = vrot.slane %v1102, %v1108
    %v1110 = vcombine.low %v1030, %v1031
    %v1112 = vunpack.c.l.s4 1983009808
    %v1113 = vunpack.c.0.s8 %v1112
    %v1114 = vlaneseq
    %v1115 = vshrl.u32 %v1114, 7
    %v1116 = vsub.s32 %v1113, %v1115
    %v1117 = vrot.slane %v1110, %v1116
    %v1118 = vcombine.low %v1022, %v1029
    %v1120 = vunpack.c.l.s4 1983009808
    %v1121 = vunpack.c.0.s8 %v1120
    %v1122 = vlaneseq
    %v1123 = vshrl.u32 %v1122, 7
    %v1124 = vsub.s32 %v1121, %v1123
    %v1125 = vrot.slane %v1118, %v1124
    %v1126 = vcombine.low %v1032, %v1033
    %v1128 = vunpack.c.l.s4 1983009808
    %v1129 = vunpack.c.0.s8 %v1128
    %v1130 = vlaneseq
    %v1131 = vshrl.u32 %v1130, 7
    %v1132 = vsub.s32 %v1129, %v1131
    %v1133 = vrot.slane %v1126, %v1132
    %v1134 = vcombine.low %v1109, %v1117
    %v1135 = vcombine.high %v1109, %v1117
    %v1137 = vunpack.c.l.s4 1934713408
    %v1138 = vunpack.c.0.s8 %v1137
    %v1139 = vlaneseq
    %v1140 = vshrl.u32 %v1139, 7
    %v1141 = vsub.s32 %v1138, %v1140
    %v1142 = vrot.slane %v1134, %v1141
    %v1144 = vunpack.c.l.s4 1934713408
    %v1145 = vunpack.c.0.s8 %v1144
    %v1146 = vlaneseq
    %v1147 = vshrl.u32 %v1146, 7
    %v1148 = vsub.s32 %v1145, %v1147
    %v1149 = vrot.slane %v1135, %v1148
    %v1150 = vcombine.low %v1125, %v1133
    %v1151 = vcombine.high %v1125, %v1133
    %v1153 = vunpack.c.l.s4 1934713408
    %v1154 = vunpack.c.0.s8 %v1153
    %v1155 = vlaneseq
    %v1156 = vshrl.u32 %v1155, 7
    %v1157 = vsub.s32 %v1154, %v1156
    %v1158 = vrot.slane %v1150, %v1157
    %v1160 = vunpack.c.l.s4 1934713408
    %v1161 = vunpack.c.0.s8 %v1160
    %v1162 = vlaneseq
    %v1163 = vshrl.u32 %v1162, 7
    %v1164 = vsub.s32 %v1161, %v1163
    %v1165 = vrot.slane %v1151, %v1164
    %v1166 = vcombine.low %v1142, %v1158
    %v1167 = vcombine.high %v1142, %v1158
    %v1168 = vcombine.low %v1149, %v1165
    %v1169 = vcombine.high %v1149, %v1165
    %v1170 = vcombine.low %v1074, %v1081
    %v1172 = vunpack.c.l.s4 1983009808
    %v1173 = vunpack.c.0.s8 %v1172
    %v1174 = vlaneseq
    %v1175 = vshrl.u32 %v1174, 7
    %v1176 = vsub.s32 %v1173, %v1175
    %v1177 = vrot.slane %v1170, %v1176
    %v1178 = vcombine.low %v1098, %v1099
    %v1180 = vunpack.c.l.s4 1983009808
    %v1181 = vunpack.c.0.s8 %v1180
    %v1182 = vlaneseq
    %v1183 = vshrl.u32 %v1182, 7
    %v1184 = vsub.s32 %v1181, %v1183
    %v1185 = vrot.slane %v1178, %v1184
    %v1186 = vcombine.low %v1090, %v1097
    %v1188 = vunpack.c.l.s4 1983009808
    %v1189 = vunpack.c.0.s8 %v1188
    %v1190 = vlaneseq
    %v1191 = vshrl.u32 %v1190, 7
    %v1192 = vsub.s32 %v1189, %v1191
    %v1193 = vrot.slane %v1186, %v1192
    %v1194 = vcombine.low %v1100, %v1101
    %v1196 = vunpack.c.l.s4 1983009808
    %v1197 = vunpack.c.0.s8 %v1196
    %v1198 = vlaneseq
    %v1199 = vshrl.u32 %v1198, 7
    %v1200 = vsub.s32 %v1197, %v1199
    %v1201 = vrot.slane %v1194, %v1200
    %v1202 = vcombine.low %v1177, %v1185
    %v1203 = vcombine.high %v1177, %v1185
    %v1205 = vunpack.c.l.s4 1934713408
    %v1206 = vunpack.c.0.s8 %v1205
    %v1207 = vlaneseq
    %v1208 = vshrl.u32 %v1207, 7
    %v1209 = vsub.s32 %v1206, %v1208
    %v1210 = vrot.slane %v1202, %v1209
    %v1212 = vunpack.c.l.s4 1934713408
    %v1213 = vunpack.c.0.s8 %v1212
    %v1214 = vlaneseq
    %v1215 = vshrl.u32 %v1214, 7
    %v1216 = vsub.s32 %v1213, %v1215
    %v1217 = vrot.slane %v1203, %v1216
    %v1218 = vcombine.low %v1193, %v1201
    %v1219 = vcombine.high %v1193, %v1201
    %v1221 = vunpack.c.l.s4 1934713408
    %v1222 = vunpack.c.0.s8 %v1221
    %v1223 = vlaneseq
    %v1224 = vshrl.u32 %v1223, 7
    %v1225 = vsub.s32 %v1222, %v1224
    %v1226 = vrot.slane %v1218, %v1225
    %v1228 = vunpack.c.l.s4 1934713408
    %v1229 = vunpack.c.0.s8 %v1228
    %v1230 = vlaneseq
    %v1231 = vshrl.u32 %v1230, 7
    %v1232 = vsub.s32 %v1229, %v1231
    %v1233 = vrot.slane %v1219, %v1232
    %v1234 = vcombine.low %v1210, %v1226
    %v1235 = vcombine.high %v1210, %v1226
    %v1236 = vcombine.low %v1217, %v1233
    %v1237 = vcombine.high %v1217, %v1233
    %vm1238 = vcmask 64512
    %v1240 = vsel %vm1238, %v582, 0
    %v1243 = vsel %vm1238, %v874, 0
    %1245 = vmatprep.subr.mxu0 0.0
    %1246 = vmatpush1.xpose.msra.mxu0 %v1243
    %1247 = vmatprep.subr.mxu0 0.0
    %1248 = vmatpush1.xpose.msra.mxu0 0.0
    %1249 = vmatprep.subr.mxu0 0.0
    %1250 = vmatpush1.xpose.msra.mxu0 0.0
    %1251 = vmatprep.subr.mxu0 0.0
    %1252 = vmatpush1.xpose.msra.mxu0 0.0
    %1253 = vmatprep.subr.mxu0 0.0
    %1254 = vmatpush1.xpose.msra.mxu0 0.0
    %1255 = vmatprep.subr.mxu0 0.0
    %1256 = vmatpush1.xpose.msra.mxu0 0.0
    %1257 = vmatprep.subr.mxu0 0.0
    %1258 = vmatpush1.xpose.msra.mxu0 0.0
    %1259 = vmatprep.subr.mxu0 0.0
    %1260 = vmatpush1.xpose.msra.mxu0 0.0
    %1261 = vmatprep.subr.mxu0 0.0
    %1262 = vmatpush1.xpose.msra.mxu0 0.0
    %1263 = vmatprep.subr.mxu0 0.0
    %1264 = vmatpush1.xpose.msra.mxu0 0.0
    %1265 = vmatprep.subr.mxu0 0.0
    %1266 = vmatpush1.xpose.msra.mxu0 0.0
    %1267 = vmatprep.subr.mxu0 0.0
    %1268 = vmatpush1.xpose.msra.mxu0 0.0
    %1269 = vmatprep.subr.mxu0 0.0
    %1270 = vmatpush1.xpose.msra.mxu0 0.0
    %1271 = vmatprep.subr.mxu0 0.0
    %1272 = vmatpush1.xpose.msra.mxu0 0.0
    %1273 = vmatprep.subr.mxu0 0.0
    %1274 = vmatpush1.xpose.msra.mxu0 0.0
    %1275 = vmatprep.subr.mxu0 0.0
    %1276 = vmatpush1.xpose.msra.mxu0 0.0
    %1277 = vmatprep.subr.mxu0 0.0
    %1278 = vmatpush1.xpose.msra.mxu0 0.0
    %1279 = vmatprep.subr.mxu0 0.0
    %1280 = vmatpush1.xpose.msra.mxu0 0.0
    %1281 = vmatprep.subr.mxu0 0.0
    %1282 = vmatpush1.xpose.msra.mxu0 0.0
    %1283 = vmatprep.subr.mxu0 0.0
    %1284 = vmatpush1.xpose.msra.mxu0 0.0
    %1285 = vmatprep.subr.mxu0 0.0
    %1286 = vmatpush1.xpose.msra.mxu0 0.0
    %1287 = vmatprep.subr.mxu0 0.0
    %1288 = vmatpush1.xpose.msra.mxu0 0.0
    %1289 = vmatprep.subr.mxu0 0.0
    %1290 = vmatpush1.xpose.msra.mxu0 0.0
    %1291 = vmatprep.subr.mxu0 0.0
    %1292 = vmatpush1.xpose.msra.mxu0 0.0
    %1293 = vmatprep.subr.mxu0 0.0
    %1294 = vmatpush1.xpose.msra.mxu0 0.0
    %1295 = vmatprep.subr.mxu0 0.0
    %1296 = vmatpush1.xpose.msra.mxu0 0.0
    %1297 = vmatprep.subr.mxu0 0.0
    %1298 = vmatpush1.xpose.msra.mxu0 0.0
    %1299 = vmatprep.subr.mxu0 0.0
    %1300 = vmatpush1.xpose.msra.mxu0 0.0
    %1301 = vmatprep.subr.mxu0 0.0
    %1302 = vmatpush1.xpose.msra.mxu0 0.0
    %1303 = vmatprep.subr.mxu0 0.0
    %1304 = vmatpush1.xpose.msra.mxu0 0.0
    %1305 = vmatprep.subr.mxu0 0.0
    %1306 = vmatpush1.xpose.msra.mxu0 0.0
    %1307 = vmatprep.subr.mxu0 0.0
    %1308 = vmatpush1.xpose.msra.mxu0 0.0
    %1309 = vmatprep.mubr.f32.mxu0 0.0
    %1310 = vmatmul.mubr.f32.gmra.mrb[0].mxu0 %v1240
    %v1311 = vpop.f32.mrb[0].mxu0
    %v1312 = vadd.f32 0.0, %v1311
    %v1313 = vpop.f32.mrb[0].mxu0
    %1314 = vdwg.mxu0
    %v1316 = vsel %vm1238, %v583, 0
    %v1319 = vsel %vm1238, %v875, 0
    %1321 = vmatprep.subr.mxu0 0.0
    %1322 = vmatpush1.xpose.msra.mxu0 %v1319
    %1323 = vmatprep.subr.mxu0 0.0
    %1324 = vmatpush1.xpose.msra.mxu0 0.0
    %1325 = vmatprep.subr.mxu0 0.0
    %1326 = vmatpush1.xpose.msra.mxu0 0.0
    %1327 = vmatprep.subr.mxu0 0.0
    %1328 = vmatpush1.xpose.msra.mxu0 0.0
    %1329 = vmatprep.subr.mxu0 0.0
    %1330 = vmatpush1.xpose.msra.mxu0 0.0
    %1331 = vmatprep.subr.mxu0 0.0
    %1332 = vmatpush1.xpose.msra.mxu0 0.0
    %1333 = vmatprep.subr.mxu0 0.0
    %1334 = vmatpush1.xpose.msra.mxu0 0.0
    %1335 = vmatprep.subr.mxu0 0.0
    %1336 = vmatpush1.xpose.msra.mxu0 0.0
    %1337 = vmatprep.subr.mxu0 0.0
    %1338 = vmatpush1.xpose.msra.mxu0 0.0
    %1339 = vmatprep.subr.mxu0 0.0
    %1340 = vmatpush1.xpose.msra.mxu0 0.0
    %1341 = vmatprep.subr.mxu0 0.0
    %1342 = vmatpush1.xpose.msra.mxu0 0.0
    %1343 = vmatprep.subr.mxu0 0.0
    %1344 = vmatpush1.xpose.msra.mxu0 0.0
    %1345 = vmatprep.subr.mxu0 0.0
    %1346 = vmatpush1.xpose.msra.mxu0 0.0
    %1347 = vmatprep.subr.mxu0 0.0
    %1348 = vmatpush1.xpose.msra.mxu0 0.0
    %1349 = vmatprep.subr.mxu0 0.0
    %1350 = vmatpush1.xpose.msra.mxu0 0.0
    %1351 = vmatprep.subr.mxu0 0.0
    %1352 = vmatpush1.xpose.msra.mxu0 0.0
    %1353 = vmatprep.subr.mxu0 0.0
    %1354 = vmatpush1.xpose.msra.mxu0 0.0
    %1355 = vmatprep.subr.mxu0 0.0
    %1356 = vmatpush1.xpose.msra.mxu0 0.0
    %1357 = vmatprep.subr.mxu0 0.0
    %1358 = vmatpush1.xpose.msra.mxu0 0.0
    %1359 = vmatprep.subr.mxu0 0.0
    %1360 = vmatpush1.xpose.msra.mxu0 0.0
    %1361 = vmatprep.subr.mxu0 0.0
    %1362 = vmatpush1.xpose.msra.mxu0 0.0
    %1363 = vmatprep.subr.mxu0 0.0
    %1364 = vmatpush1.xpose.msra.mxu0 0.0
    %1365 = vmatprep.subr.mxu0 0.0
    %1366 = vmatpush1.xpose.msra.mxu0 0.0
    %1367 = vmatprep.subr.mxu0 0.0
    %1368 = vmatpush1.xpose.msra.mxu0 0.0
    %1369 = vmatprep.subr.mxu0 0.0
    %1370 = vmatpush1.xpose.msra.mxu0 0.0
    %1371 = vmatprep.subr.mxu0 0.0
    %1372 = vmatpush1.xpose.msra.mxu0 0.0
    %1373 = vmatprep.subr.mxu0 0.0
    %1374 = vmatpush1.xpose.msra.mxu0 0.0
    %1375 = vmatprep.subr.mxu0 0.0
    %1376 = vmatpush1.xpose.msra.mxu0 0.0
    %1377 = vmatprep.subr.mxu0 0.0
    %1378 = vmatpush1.xpose.msra.mxu0 0.0
    %1379 = vmatprep.subr.mxu0 0.0
    %1380 = vmatpush1.xpose.msra.mxu0 0.0
    %1381 = vmatprep.subr.mxu0 0.0
    %1382 = vmatpush1.xpose.msra.mxu0 0.0
    %1383 = vmatprep.subr.mxu0 0.0
    %1384 = vmatpush1.xpose.msra.mxu0 0.0
    %1385 = vmatprep.mubr.f32.mxu0 0.0
    %1386 = vmatmul.mubr.f32.gmra.mrb[0].mxu0 %v1316
    %v1387 = vpop.f32.mrb[0].mxu0
    %v1388 = vadd.f32 0.0, %v1387
    %v1389 = vpop.f32.mrb[0].mxu0
    %1390 = vdwg.mxu0
    %v1392 = vsel %vm1238, %v584, 0
    %v1395 = vsel %vm1238, %v876, 0
    %1397 = vmatprep.subr.mxu0 0.0
    %1398 = vmatpush1.xpose.msra.mxu0 %v1395
    %1399 = vmatprep.subr.mxu0 0.0
    %1400 = vmatpush1.xpose.msra.mxu0 0.0
    %1401 = vmatprep.subr.mxu0 0.0
    %1402 = vmatpush1.xpose.msra.mxu0 0.0
    %1403 = vmatprep.subr.mxu0 0.0
    %1404 = vmatpush1.xpose.msra.mxu0 0.0
    %1405 = vmatprep.subr.mxu0 0.0
    %1406 = vmatpush1.xpose.msra.mxu0 0.0
    %1407 = vmatprep.subr.mxu0 0.0
    %1408 = vmatpush1.xpose.msra.mxu0 0.0
    %1409 = vmatprep.subr.mxu0 0.0
    %1410 = vmatpush1.xpose.msra.mxu0 0.0
    %1411 = vmatprep.subr.mxu0 0.0
    %1412 = vmatpush1.xpose.msra.mxu0 0.0
    %1413 = vmatprep.subr.mxu0 0.0
    %1414 = vmatpush1.xpose.msra.mxu0 0.0
    %1415 = vmatprep.subr.mxu0 0.0
    %1416 = vmatpush1.xpose.msra.mxu0 0.0
    %1417 = vmatprep.subr.mxu0 0.0
    %1418 = vmatpush1.xpose.msra.mxu0 0.0
    %1419 = vmatprep.subr.mxu0 0.0
    %1420 = vmatpush1.xpose.msra.mxu0 0.0
    %1421 = vmatprep.subr.mxu0 0.0
    %1422 = vmatpush1.xpose.msra.mxu0 0.0
    %1423 = vmatprep.subr.mxu0 0.0
    %1424 = vmatpush1.xpose.msra.mxu0 0.0
    %1425 = vmatprep.subr.mxu0 0.0
    %1426 = vmatpush1.xpose.msra.mxu0 0.0
    %1427 = vmatprep.subr.mxu0 0.0
    %1428 = vmatpush1.xpose.msra.mxu0 0.0
    %1429 = vmatprep.subr.mxu0 0.0
    %1430 = vmatpush1.xpose.msra.mxu0 0.0
    %1431 = vmatprep.subr.mxu0 0.0
    %1432 = vmatpush1.xpose.msra.mxu0 0.0
    %1433 = vmatprep.subr.mxu0 0.0
    %1434 = vmatpush1.xpose.msra.mxu0 0.0
    %1435 = vmatprep.subr.mxu0 0.0
    %1436 = vmatpush1.xpose.msra.mxu0 0.0
    %1437 = vmatprep.subr.mxu0 0.0
    %1438 = vmatpush1.xpose.msra.mxu0 0.0
    %1439 = vmatprep.subr.mxu0 0.0
    %1440 = vmatpush1.xpose.msra.mxu0 0.0
    %1441 = vmatprep.subr.mxu0 0.0
    %1442 = vmatpush1.xpose.msra.mxu0 0.0
    %1443 = vmatprep.subr.mxu0 0.0
    %1444 = vmatpush1.xpose.msra.mxu0 0.0
    %1445 = vmatprep.subr.mxu0 0.0
    %1446 = vmatpush1.xpose.msra.mxu0 0.0
    %1447 = vmatprep.subr.mxu0 0.0
    %1448 = vmatpush1.xpose.msra.mxu0 0.0
    %1449 = vmatprep.subr.mxu0 0.0
    %1450 = vmatpush1.xpose.msra.mxu0 0.0
    %1451 = vmatprep.subr.mxu0 0.0
    %1452 = vmatpush1.xpose.msra.mxu0 0.0
    %1453 = vmatprep.subr.mxu0 0.0
    %1454 = vmatpush1.xpose.msra.mxu0 0.0
    %1455 = vmatprep.subr.mxu0 0.0
    %1456 = vmatpush1.xpose.msra.mxu0 0.0
    %1457 = vmatprep.subr.mxu0 0.0
    %1458 = vmatpush1.xpose.msra.mxu0 0.0
    %1459 = vmatprep.subr.mxu0 0.0
    %1460 = vmatpush1.xpose.msra.mxu0 0.0
    %1461 = vmatprep.mubr.f32.mxu0 0.0
    %1462 = vmatmul.mubr.f32.gmra.mrb[0].mxu0 %v1392
    %v1463 = vpop.f32.mrb[0].mxu0
    %v1464 = vadd.f32 0.0, %v1463
    %v1465 = vpop.f32.mrb[0].mxu0
    %1466 = vdwg.mxu0
    %v1468 = vsel %vm1238, %v585, 0
    %v1471 = vsel %vm1238, %v877, 0
    %1473 = vmatprep.subr.mxu0 0.0
    %1474 = vmatpush1.xpose.msra.mxu0 %v1471
    %1475 = vmatprep.subr.mxu0 0.0
    %1476 = vmatpush1.xpose.msra.mxu0 0.0
    %1477 = vmatprep.subr.mxu0 0.0
    %1478 = vmatpush1.xpose.msra.mxu0 0.0
    %1479 = vmatprep.subr.mxu0 0.0
    %1480 = vmatpush1.xpose.msra.mxu0 0.0
    %1481 = vmatprep.subr.mxu0 0.0
    %1482 = vmatpush1.xpose.msra.mxu0 0.0
    %1483 = vmatprep.subr.mxu0 0.0
    %1484 = vmatpush1.xpose.msra.mxu0 0.0
    %1485 = vmatprep.subr.mxu0 0.0
    %1486 = vmatpush1.xpose.msra.mxu0 0.0
    %1487 = vmatprep.subr.mxu0 0.0
    %1488 = vmatpush1.xpose.msra.mxu0 0.0
    %1489 = vmatprep.subr.mxu0 0.0
    %1490 = vmatpush1.xpose.msra.mxu0 0.0
    %1491 = vmatprep.subr.mxu0 0.0
    %1492 = vmatpush1.xpose.msra.mxu0 0.0
    %1493 = vmatprep.subr.mxu0 0.0
    %1494 = vmatpush1.xpose.msra.mxu0 0.0
    %1495 = vmatprep.subr.mxu0 0.0
    %1496 = vmatpush1.xpose.msra.mxu0 0.0
    %1497 = vmatprep.subr.mxu0 0.0
    %1498 = vmatpush1.xpose.msra.mxu0 0.0
    %1499 = vmatprep.subr.mxu0 0.0
    %1500 = vmatpush1.xpose.msra.mxu0 0.0
    %1501 = vmatprep.subr.mxu0 0.0
    %1502 = vmatpush1.xpose.msra.mxu0 0.0
    %1503 = vmatprep.subr.mxu0 0.0
    %1504 = vmatpush1.xpose.msra.mxu0 0.0
    %1505 = vmatprep.subr.mxu0 0.0
    %1506 = vmatpush1.xpose.msra.mxu0 0.0
    %1507 = vmatprep.subr.mxu0 0.0
    %1508 = vmatpush1.xpose.msra.mxu0 0.0
    %1509 = vmatprep.subr.mxu0 0.0
    %1510 = vmatpush1.xpose.msra.mxu0 0.0
    %1511 = vmatprep.subr.mxu0 0.0
    %1512 = vmatpush1.xpose.msra.mxu0 0.0
    %1513 = vmatprep.subr.mxu0 0.0
    %1514 = vmatpush1.xpose.msra.mxu0 0.0
    %1515 = vmatprep.subr.mxu0 0.0
    %1516 = vmatpush1.xpose.msra.mxu0 0.0
    %1517 = vmatprep.subr.mxu0 0.0
    %1518 = vmatpush1.xpose.msra.mxu0 0.0
    %1519 = vmatprep.subr.mxu0 0.0
    %1520 = vmatpush1.xpose.msra.mxu0 0.0
    %1521 = vmatprep.subr.mxu0 0.0
    %1522 = vmatpush1.xpose.msra.mxu0 0.0
    %1523 = vmatprep.subr.mxu0 0.0
    %1524 = vmatpush1.xpose.msra.mxu0 0.0
    %1525 = vmatprep.subr.mxu0 0.0
    %1526 = vmatpush1.xpose.msra.mxu0 0.0
    %1527 = vmatprep.subr.mxu0 0.0
    %1528 = vmatpush1.xpose.msra.mxu0 0.0
    %1529 = vmatprep.subr.mxu0 0.0
    %1530 = vmatpush1.xpose.msra.mxu0 0.0
    %1531 = vmatprep.subr.mxu0 0.0
    %1532 = vmatpush1.xpose.msra.mxu0 0.0
    %1533 = vmatprep.subr.mxu0 0.0
    %1534 = vmatpush1.xpose.msra.mxu0 0.0
    %1535 = vmatprep.subr.mxu0 0.0
    %1536 = vmatpush1.xpose.msra.mxu0 0.0
    %1537 = vmatprep.mubr.f32.mxu0 0.0
    %1538 = vmatmul.mubr.f32.gmra.mrb[0].mxu0 %v1468
    %v1539 = vpop.f32.mrb[0].mxu0
    %v1540 = vadd.f32 0.0, %v1539
    %v1541 = vpop.f32.mrb[0].mxu0
    %1542 = vdwg.mxu0
    %v1544 = vsel %vm1238, %v650, 0
    %v1547 = vsel %vm1238, %v942, 0
    %1549 = vmatprep.subr.mxu0 0.0
    %1550 = vmatpush1.xpose.msra.mxu0 %v1547
    %1551 = vmatprep.subr.mxu0 0.0
    %1552 = vmatpush1.xpose.msra.mxu0 0.0
    %1553 = vmatprep.subr.mxu0 0.0
    %1554 = vmatpush1.xpose.msra.mxu0 0.0
    %1555 = vmatprep.subr.mxu0 0.0
    %1556 = vmatpush1.xpose.msra.mxu0 0.0
    %1557 = vmatprep.subr.mxu0 0.0
    %1558 = vmatpush1.xpose.msra.mxu0 0.0
    %1559 = vmatprep.subr.mxu0 0.0
    %1560 = vmatpush1.xpose.msra.mxu0 0.0
    %1561 = vmatprep.subr.mxu0 0.0
    %1562 = vmatpush1.xpose.msra.mxu0 0.0
    %1563 = vmatprep.subr.mxu0 0.0
    %1564 = vmatpush1.xpose.msra.mxu0 0.0
    %1565 = vmatprep.subr.mxu0 0.0
    %1566 = vmatpush1.xpose.msra.mxu0 0.0
    %1567 = vmatprep.subr.mxu0 0.0
    %1568 = vmatpush1.xpose.msra.mxu0 0.0
    %1569 = vmatprep.subr.mxu0 0.0
    %1570 = vmatpush1.xpose.msra.mxu0 0.0
    %1571 = vmatprep.subr.mxu0 0.0
    %1572 = vmatpush1.xpose.msra.mxu0 0.0
    %1573 = vmatprep.subr.mxu0 0.0
    %1574 = vmatpush1.xpose.msra.mxu0 0.0
    %1575 = vmatprep.subr.mxu0 0.0
    %1576 = vmatpush1.xpose.msra.mxu0 0.0
    %1577 = vmatprep.subr.mxu0 0.0
    %1578 = vmatpush1.xpose.msra.mxu0 0.0
    %1579 = vmatprep.subr.mxu0 0.0
    %1580 = vmatpush1.xpose.msra.mxu0 0.0
    %1581 = vmatprep.subr.mxu0 0.0
    %1582 = vmatpush1.xpose.msra.mxu0 0.0
    %1583 = vmatprep.subr.mxu0 0.0
    %1584 = vmatpush1.xpose.msra.mxu0 0.0
    %1585 = vmatprep.subr.mxu0 0.0
    %1586 = vmatpush1.xpose.msra.mxu0 0.0
    %1587 = vmatprep.subr.mxu0 0.0
    %1588 = vmatpush1.xpose.msra.mxu0 0.0
    %1589 = vmatprep.subr.mxu0 0.0
    %1590 = vmatpush1.xpose.msra.mxu0 0.0
    %1591 = vmatprep.subr.mxu0 0.0
    %1592 = vmatpush1.xpose.msra.mxu0 0.0
    %1593 = vmatprep.subr.mxu0 0.0
    %1594 = vmatpush1.xpose.msra.mxu0 0.0
    %1595 = vmatprep.subr.mxu0 0.0
    %1596 = vmatpush1.xpose.msra.mxu0 0.0
    %1597 = vmatprep.subr.mxu0 0.0
    %1598 = vmatpush1.xpose.msra.mxu0 0.0
    %1599 = vmatprep.subr.mxu0 0.0
    %1600 = vmatpush1.xpose.msra.mxu0 0.0
    %1601 = vmatprep.subr.mxu0 0.0
    %1602 = vmatpush1.xpose.msra.mxu0 0.0
    %1603 = vmatprep.subr.mxu0 0.0
    %1604 = vmatpush1.xpose.msra.mxu0 0.0
    %1605 = vmatprep.subr.mxu0 0.0
    %1606 = vmatpush1.xpose.msra.mxu0 0.0
    %1607 = vmatprep.subr.mxu0 0.0
    %1608 = vmatpush1.xpose.msra.mxu0 0.0
    %1609 = vmatprep.subr.mxu0 0.0
    %1610 = vmatpush1.xpose.msra.mxu0 0.0
    %1611 = vmatprep.subr.mxu0 0.0
    %1612 = vmatpush1.xpose.msra.mxu0 0.0
    %1613 = vmatprep.mubr.f32.mxu0 0.0
    %1614 = vmatmul.mubr.f32.gmra.mrb[0].mxu0 %v1544
    %v1615 = vpop.f32.mrb[0].mxu0
    %v1616 = vadd.f32 0.0, %v1615
    %v1617 = vpop.f32.mrb[0].mxu0
    %1618 = vdwg.mxu0
    %v1620 = vsel %vm1238, %v651, 0
    %v1623 = vsel %vm1238, %v943, 0
    %1625 = vmatprep.subr.mxu0 0.0
    %1626 = vmatpush1.xpose.msra.mxu0 %v1623
    %1627 = vmatprep.subr.mxu0 0.0
    %1628 = vmatpush1.xpose.msra.mxu0 0.0
    %1629 = vmatprep.subr.mxu0 0.0
    %1630 = vmatpush1.xpose.msra.mxu0 0.0
    %1631 = vmatprep.subr.mxu0 0.0
    %1632 = vmatpush1.xpose.msra.mxu0 0.0
    %1633 = vmatprep.subr.mxu0 0.0
    %1634 = vmatpush1.xpose.msra.mxu0 0.0
    %1635 = vmatprep.subr.mxu0 0.0
    %1636 = vmatpush1.xpose.msra.mxu0 0.0
    %1637 = vmatprep.subr.mxu0 0.0
    %1638 = vmatpush1.xpose.msra.mxu0 0.0
    %1639 = vmatprep.subr.mxu0 0.0
    %1640 = vmatpush1.xpose.msra.mxu0 0.0
    %1641 = vmatprep.subr.mxu0 0.0
    %1642 = vmatpush1.xpose.msra.mxu0 0.0
    %1643 = vmatprep.subr.mxu0 0.0
    %1644 = vmatpush1.xpose.msra.mxu0 0.0
    %1645 = vmatprep.subr.mxu0 0.0
    %1646 = vmatpush1.xpose.msra.mxu0 0.0
    %1647 = vmatprep.subr.mxu0 0.0
    %1648 = vmatpush1.xpose.msra.mxu0 0.0
    %1649 = vmatprep.subr.mxu0 0.0
    %1650 = vmatpush1.xpose.msra.mxu0 0.0
    %1651 = vmatprep.subr.mxu0 0.0
    %1652 = vmatpush1.xpose.msra.mxu0 0.0
    %1653 = vmatprep.subr.mxu0 0.0
    %1654 = vmatpush1.xpose.msra.mxu0 0.0
    %1655 = vmatprep.subr.mxu0 0.0
    %1656 = vmatpush1.xpose.msra.mxu0 0.0
    %1657 = vmatprep.subr.mxu0 0.0
    %1658 = vmatpush1.xpose.msra.mxu0 0.0
    %1659 = vmatprep.subr.mxu0 0.0
    %1660 = vmatpush1.xpose.msra.mxu0 0.0
    %1661 = vmatprep.subr.mxu0 0.0
    %1662 = vmatpush1.xpose.msra.mxu0 0.0
    %1663 = vmatprep.subr.mxu0 0.0
    %1664 = vmatpush1.xpose.msra.mxu0 0.0
    %1665 = vmatprep.subr.mxu0 0.0
    %1666 = vmatpush1.xpose.msra.mxu0 0.0
    %1667 = vmatprep.subr.mxu0 0.0
    %1668 = vmatpush1.xpose.msra.mxu0 0.0
    %1669 = vmatprep.subr.mxu0 0.0
    %1670 = vmatpush1.xpose.msra.mxu0 0.0
    %1671 = vmatprep.subr.mxu0 0.0
    %1672 = vmatpush1.xpose.msra.mxu0 0.0
    %1673 = vmatprep.subr.mxu0 0.0
    %1674 = vmatpush1.xpose.msra.mxu0 0.0
    %1675 = vmatprep.subr.mxu0 0.0
    %1676 = vmatpush1.xpose.msra.mxu0 0.0
    %1677 = vmatprep.subr.mxu0 0.0
    %1678 = vmatpush1.xpose.msra.mxu0 0.0
    %1679 = vmatprep.subr.mxu0 0.0
    %1680 = vmatpush1.xpose.msra.mxu0 0.0
    %1681 = vmatprep.subr.mxu0 0.0
    %1682 = vmatpush1.xpose.msra.mxu0 0.0
    %1683 = vmatprep.subr.mxu0 0.0
    %1684 = vmatpush1.xpose.msra.mxu0 0.0
    %1685 = vmatprep.subr.mxu0 0.0
    %1686 = vmatpush1.xpose.msra.mxu0 0.0
    %1687 = vmatprep.subr.mxu0 0.0
    %1688 = vmatpush1.xpose.msra.mxu0 0.0
    %1689 = vmatprep.mubr.f32.mxu0 0.0
    %1690 = vmatmul.mubr.f32.gmra.mrb[0].mxu0 %v1620
    %v1691 = vpop.f32.mrb[0].mxu0
    %v1692 = vadd.f32 0.0, %v1691
    %v1693 = vpop.f32.mrb[0].mxu0
    %1694 = vdwg.mxu0
    %v1696 = vsel %vm1238, %v652, 0
    %v1699 = vsel %vm1238, %v944, 0
    %1701 = vmatprep.subr.mxu0 0.0
    %1702 = vmatpush1.xpose.msra.mxu0 %v1699
    %1703 = vmatprep.subr.mxu0 0.0
    %1704 = vmatpush1.xpose.msra.mxu0 0.0
    %1705 = vmatprep.subr.mxu0 0.0
    %1706 = vmatpush1.xpose.msra.mxu0 0.0
    %1707 = vmatprep.subr.mxu0 0.0
    %1708 = vmatpush1.xpose.msra.mxu0 0.0
    %1709 = vmatprep.subr.mxu0 0.0
    %1710 = vmatpush1.xpose.msra.mxu0 0.0
    %1711 = vmatprep.subr.mxu0 0.0
    %1712 = vmatpush1.xpose.msra.mxu0 0.0
    %1713 = vmatprep.subr.mxu0 0.0
    %1714 = vmatpush1.xpose.msra.mxu0 0.0
    %1715 = vmatprep.subr.mxu0 0.0
    %1716 = vmatpush1.xpose.msra.mxu0 0.0
    %1717 = vmatprep.subr.mxu0 0.0
    %1718 = vmatpush1.xpose.msra.mxu0 0.0
    %1719 = vmatprep.subr.mxu0 0.0
    %1720 = vmatpush1.xpose.msra.mxu0 0.0
    %1721 = vmatprep.subr.mxu0 0.0
    %1722 = vmatpush1.xpose.msra.mxu0 0.0
    %1723 = vmatprep.subr.mxu0 0.0
    %1724 = vmatpush1.xpose.msra.mxu0 0.0
    %1725 = vmatprep.subr.mxu0 0.0
    %1726 = vmatpush1.xpose.msra.mxu0 0.0
    %1727 = vmatprep.subr.mxu0 0.0
    %1728 = vmatpush1.xpose.msra.mxu0 0.0
    %1729 = vmatprep.subr.mxu0 0.0
    %1730 = vmatpush1.xpose.msra.mxu0 0.0
    %1731 = vmatprep.subr.mxu0 0.0
    %1732 = vmatpush1.xpose.msra.mxu0 0.0
    %1733 = vmatprep.subr.mxu0 0.0
    %1734 = vmatpush1.xpose.msra.mxu0 0.0
    %1735 = vmatprep.subr.mxu0 0.0
    %1736 = vmatpush1.xpose.msra.mxu0 0.0
    %1737 = vmatprep.subr.mxu0 0.0
    %1738 = vmatpush1.xpose.msra.mxu0 0.0
    %1739 = vmatprep.subr.mxu0 0.0
    %1740 = vmatpush1.xpose.msra.mxu0 0.0
    %1741 = vmatprep.subr.mxu0 0.0
    %1742 = vmatpush1.xpose.msra.mxu0 0.0
    %1743 = vmatprep.subr.mxu0 0.0
    %1744 = vmatpush1.xpose.msra.mxu0 0.0
    %1745 = vmatprep.subr.mxu0 0.0
    %1746 = vmatpush1.xpose.msra.mxu0 0.0
    %1747 = vmatprep.subr.mxu0 0.0
    %1748 = vmatpush1.xpose.msra.mxu0 0.0
    %1749 = vmatprep.subr.mxu0 0.0
    %1750 = vmatpush1.xpose.msra.mxu0 0.0
    %1751 = vmatprep.subr.mxu0 0.0
    %1752 = vmatpush1.xpose.msra.mxu0 0.0
    %1753 = vmatprep.subr.mxu0 0.0
    %1754 = vmatpush1.xpose.msra.mxu0 0.0
    %1755 = vmatprep.subr.mxu0 0.0
    %1756 = vmatpush1.xpose.msra.mxu0 0.0
    %1757 = vmatprep.subr.mxu0 0.0
    %1758 = vmatpush1.xpose.msra.mxu0 0.0
    %1759 = vmatprep.subr.mxu0 0.0
    %1760 = vmatpush1.xpose.msra.mxu0 0.0
    %1761 = vmatprep.subr.mxu0 0.0
    %1762 = vmatpush1.xpose.msra.mxu0 0.0
    %1763 = vmatprep.subr.mxu0 0.0
    %1764 = vmatpush1.xpose.msra.mxu0 0.0
    %1765 = vmatprep.mubr.f32.mxu0 0.0
    %1766 = vmatmul.mubr.f32.gmra.mrb[0].mxu0 %v1696
    %v1767 = vpop.f32.mrb[0].mxu0
    %v1768 = vadd.f32 0.0, %v1767
    %v1769 = vpop.f32.mrb[0].mxu0
    %1770 = vdwg.mxu0
    %v1772 = vsel %vm1238, %v653, 0
    %v1775 = vsel %vm1238, %v945, 0
    %1777 = vmatprep.subr.mxu0 0.0
    %1778 = vmatpush1.xpose.msra.mxu0 %v1775
    %1779 = vmatprep.subr.mxu0 0.0
    %1780 = vmatpush1.xpose.msra.mxu0 0.0
    %1781 = vmatprep.subr.mxu0 0.0
    %1782 = vmatpush1.xpose.msra.mxu0 0.0
    %1783 = vmatprep.subr.mxu0 0.0
    %1784 = vmatpush1.xpose.msra.mxu0 0.0
    %1785 = vmatprep.subr.mxu0 0.0
    %1786 = vmatpush1.xpose.msra.mxu0 0.0
    %1787 = vmatprep.subr.mxu0 0.0
    %1788 = vmatpush1.xpose.msra.mxu0 0.0
    %1789 = vmatprep.subr.mxu0 0.0
    %1790 = vmatpush1.xpose.msra.mxu0 0.0
    %1791 = vmatprep.subr.mxu0 0.0
    %1792 = vmatpush1.xpose.msra.mxu0 0.0
    %1793 = vmatprep.subr.mxu0 0.0
    %1794 = vmatpush1.xpose.msra.mxu0 0.0
    %1795 = vmatprep.subr.mxu0 0.0
    %1796 = vmatpush1.xpose.msra.mxu0 0.0
    %1797 = vmatprep.subr.mxu0 0.0
    %1798 = vmatpush1.xpose.msra.mxu0 0.0
    %1799 = vmatprep.subr.mxu0 0.0
    %1800 = vmatpush1.xpose.msra.mxu0 0.0
    %1801 = vmatprep.subr.mxu0 0.0
    %1802 = vmatpush1.xpose.msra.mxu0 0.0
    %1803 = vmatprep.subr.mxu0 0.0
    %1804 = vmatpush1.xpose.msra.mxu0 0.0
    %1805 = vmatprep.subr.mxu0 0.0
    %1806 = vmatpush1.xpose.msra.mxu0 0.0
    %1807 = vmatprep.subr.mxu0 0.0
    %1808 = vmatpush1.xpose.msra.mxu0 0.0
    %1809 = vmatprep.subr.mxu0 0.0
    %1810 = vmatpush1.xpose.msra.mxu0 0.0
    %1811 = vmatprep.subr.mxu0 0.0
    %1812 = vmatpush1.xpose.msra.mxu0 0.0
    %1813 = vmatprep.subr.mxu0 0.0
    %1814 = vmatpush1.xpose.msra.mxu0 0.0
    %1815 = vmatprep.subr.mxu0 0.0
    %1816 = vmatpush1.xpose.msra.mxu0 0.0
    %1817 = vmatprep.subr.mxu0 0.0
    %1818 = vmatpush1.xpose.msra.mxu0 0.0
    %1819 = vmatprep.subr.mxu0 0.0
    %1820 = vmatpush1.xpose.msra.mxu0 0.0
    %1821 = vmatprep.subr.mxu0 0.0
    %1822 = vmatpush1.xpose.msra.mxu0 0.0
    %1823 = vmatprep.subr.mxu0 0.0
    %1824 = vmatpush1.xpose.msra.mxu0 0.0
    %1825 = vmatprep.subr.mxu0 0.0
    %1826 = vmatpush1.xpose.msra.mxu0 0.0
    %1827 = vmatprep.subr.mxu0 0.0
    %1828 = vmatpush1.xpose.msra.mxu0 0.0
    %1829 = vmatprep.subr.mxu0 0.0
    %1830 = vmatpush1.xpose.msra.mxu0 0.0
    %1831 = vmatprep.subr.mxu0 0.0
    %1832 = vmatpush1.xpose.msra.mxu0 0.0
    %1833 = vmatprep.subr.mxu0 0.0
    %1834 = vmatpush1.xpose.msra.mxu0 0.0
    %1835 = vmatprep.subr.mxu0 0.0
    %1836 = vmatpush1.xpose.msra.mxu0 0.0
    %1837 = vmatprep.subr.mxu0 0.0
    %1838 = vmatpush1.xpose.msra.mxu0 0.0
    %1839 = vmatprep.subr.mxu0 0.0
    %1840 = vmatpush1.xpose.msra.mxu0 0.0
    %1841 = vmatprep.mubr.f32.mxu0 0.0
    %1842 = vmatmul.mubr.f32.gmra.mrb[0].mxu0 %v1772
    %v1843 = vpop.f32.mrb[0].mxu0
    %v1844 = vadd.f32 0.0, %v1843
    %v1845 = vpop.f32.mrb[0].mxu0
    %1846 = vdwg.mxu0
    %v1847 = vmul.f32 %v1312, 0.35355338
    %v1848 = vmul.f32 %v1388, 0.35355338
    %v1849 = vmul.f32 %v1464, 0.35355338
    %v1850 = vmul.f32 %v1540, 0.35355338
    %v1851 = vmul.f32 %v1616, 0.35355338
    %v1852 = vmul.f32 %v1692, 0.35355338
    %v1853 = vmul.f32 %v1768, 0.35355338
    %v1854 = vmul.f32 %v1844, 0.35355338
    %v1855 = vmul.f32 %v1847, 1.442695
    %v1856 = vpow.pop %v1855
    %v1857 = vmul.f32 %v1848, 1.442695
    %v1858 = vpow.pop %v1857
    %v1859 = vmul.f32 %v1849, 1.442695
    %v1860 = vpow.pop %v1859
    %v1861 = vmul.f32 %v1850, 1.442695
    %v1862 = vpow.pop %v1861
    %v1863 = vmul.f32 %v1851, 1.442695
    %v1864 = vpow.pop %v1863
    %v1865 = vmul.f32 %v1852, 1.442695
    %v1866 = vpow.pop %v1865
    %v1867 = vmul.f32 %v1853, 1.442695
    %v1868 = vpow.pop %v1867
    %v1869 = vmul.f32 %v1854, 1.442695
    %v1870 = vpow.pop %v1869
    %v1871 = vsel %vm1238, %v1856, 0.0
    %1872 = vadd.xlane.f32.xlu0 %v1871
    %v1873 = vpop.xlane.xlu0 %1872
    %v1874 = vsel %vm1238, %v1858, 0.0
    %1875 = vadd.xlane.f32.xlu0 %v1874
    %v1876 = vpop.xlane.xlu0 %1875
    %v1877 = vsel %vm1238, %v1860, 0.0
    %1878 = vadd.xlane.f32.xlu0 %v1877
    %v1879 = vpop.xlane.xlu0 %1878
    %v1880 = vsel %vm1238, %v1862, 0.0
    %1881 = vadd.xlane.f32.xlu0 %v1880
    %v1882 = vpop.xlane.xlu0 %1881
    %v1883 = vsel %vm1238, %v1864, 0.0
    %1884 = vadd.xlane.f32.xlu0 %v1883
    %v1885 = vpop.xlane.xlu0 %1884
    %v1886 = vsel %vm1238, %v1866, 0.0
    %1887 = vadd.xlane.f32.xlu0 %v1886
    %v1888 = vpop.xlane.xlu0 %1887
    %v1889 = vsel %vm1238, %v1868, 0.0
    %1890 = vadd.xlane.f32.xlu0 %v1889
    %v1891 = vpop.xlane.xlu0 %1890
    %v1892 = vsel %vm1238, %v1870, 0.0
    %1893 = vadd.xlane.f32.xlu0 %v1892
    %v1894 = vpop.xlane.xlu0 %1893
    %v1895 = vrcp.pop %v1873
    %v1896 = vrcp.pop %v1876
    %v1897 = vrcp.pop %v1879
    %v1898 = vrcp.pop %v1882
    %v1899 = vrcp.pop %v1885
    %v1900 = vrcp.pop %v1888
    %v1901 = vrcp.pop %v1891
    %v1902 = vrcp.pop %v1894
    %v1903 = vmul.f32 %v1856, %v1895
    %v1904 = vmul.f32 %v1858, %v1896
    %v1905 = vmul.f32 %v1860, %v1897
    %v1906 = vmul.f32 %v1862, %v1898
    %v1907 = vmul.f32 %v1864, %v1899
    %v1908 = vmul.f32 %v1866, %v1900
    %v1909 = vmul.f32 %v1868, %v1901
    %v1910 = vmul.f32 %v1870, %v1902
    %v1912 = vsel %vm1238, %v1903, 0
    %1914 = vmatprep.subr.mxu0 0.0
    %1915 = vmatpush1.msra.mxu0 %v1166
    %1916 = vmatprep.subr.mxu0 0.0
    %1917 = vmatpush1.msra.mxu0 0.0
    %1918 = vmatprep.subr.mxu0 0.0
    %1919 = vmatpush1.msra.mxu0 0.0
    %1920 = vmatprep.subr.mxu0 0.0
    %1921 = vmatpush1.msra.mxu0 0.0
    %1922 = vmatprep.subr.mxu0 0.0
    %1923 = vmatpush1.msra.mxu0 0.0
    %1924 = vmatprep.subr.mxu0 0.0
    %1925 = vmatpush1.msra.mxu0 0.0
    %1926 = vmatprep.subr.mxu0 0.0
    %1927 = vmatpush1.msra.mxu0 0.0
    %1928 = vmatprep.subr.mxu0 0.0
    %1929 = vmatpush1.msra.mxu0 0.0
    %1930 = vmatprep.subr.mxu0 0.0
    %1931 = vmatpush1.msra.mxu0 0.0
    %1932 = vmatprep.subr.mxu0 0.0
    %1933 = vmatpush1.msra.mxu0 0.0
    %1934 = vmatprep.subr.mxu0 0.0
    %1935 = vmatpush1.msra.mxu0 0.0
    %1936 = vmatprep.subr.mxu0 0.0
    %1937 = vmatpush1.msra.mxu0 0.0
    %1938 = vmatprep.subr.mxu0 0.0
    %1939 = vmatpush1.msra.mxu0 0.0
    %1940 = vmatprep.subr.mxu0 0.0
    %1941 = vmatpush1.msra.mxu0 0.0
    %1942 = vmatprep.subr.mxu0 0.0
    %1943 = vmatpush1.msra.mxu0 0.0
    %1944 = vmatprep.subr.mxu0 0.0
    %1945 = vmatpush1.msra.mxu0 0.0
    %1946 = vmatprep.subr.mxu0 0.0
    %1947 = vmatpush1.msra.mxu0 0.0
    %1948 = vmatprep.subr.mxu0 0.0
    %1949 = vmatpush1.msra.mxu0 0.0
    %1950 = vmatprep.subr.mxu0 0.0
    %1951 = vmatpush1.msra.mxu0 0.0
    %1952 = vmatprep.subr.mxu0 0.0
    %1953 = vmatpush1.msra.mxu0 0.0
    %1954 = vmatprep.subr.mxu0 0.0
    %1955 = vmatpush1.msra.mxu0 0.0
    %1956 = vmatprep.subr.mxu0 0.0
    %1957 = vmatpush1.msra.mxu0 0.0
    %1958 = vmatprep.subr.mxu0 0.0
    %1959 = vmatpush1.msra.mxu0 0.0
    %1960 = vmatprep.subr.mxu0 0.0
    %1961 = vmatpush1.msra.mxu0 0.0
    %1962 = vmatprep.subr.mxu0 0.0
    %1963 = vmatpush1.msra.mxu0 0.0
    %1964 = vmatprep.subr.mxu0 0.0
    %1965 = vmatpush1.msra.mxu0 0.0
    %1966 = vmatprep.subr.mxu0 0.0
    %1967 = vmatpush1.msra.mxu0 0.0
    %1968 = vmatprep.subr.mxu0 0.0
    %1969 = vmatpush1.msra.mxu0 0.0
    %1970 = vmatprep.subr.mxu0 0.0
    %1971 = vmatpush1.msra.mxu0 0.0
    %1972 = vmatprep.subr.mxu0 0.0
    %1973 = vmatpush1.msra.mxu0 0.0
    %1974 = vmatprep.subr.mxu0 0.0
    %1975 = vmatpush1.msra.mxu0 0.0
    %1976 = vmatprep.subr.mxu0 0.0
    %1977 = vmatpush1.msra.mxu0 0.0
    %1978 = vmatprep.mubr.f32.mxu0 0.0
    %1979 = vmatmul.mubr.f32.gmra.mrb[0].mxu0 %v1912
    %v1980 = vpop.f32.mrb[0].mxu0
    %v1981 = vadd.f32 0.0, %v1980
    %v1982 = vpop.f32.mrb[0].mxu0
    %1983 = vdwg.mxu0
    %v1985 = vsel %vm1238, %v1904, 0
    %1987 = vmatprep.subr.mxu0 0.0
    %1988 = vmatpush1.msra.mxu0 %v1167
    %1989 = vmatprep.subr.mxu0 0.0
    %1990 = vmatpush1.msra.mxu0 0.0
    %1991 = vmatprep.subr.mxu0 0.0
    %1992 = vmatpush1.msra.mxu0 0.0
    %1993 = vmatprep.subr.mxu0 0.0
    %1994 = vmatpush1.msra.mxu0 0.0
    %1995 = vmatprep.subr.mxu0 0.0
    %1996 = vmatpush1.msra.mxu0 0.0
    %1997 = vmatprep.subr.mxu0 0.0
    %1998 = vmatpush1.msra.mxu0 0.0
    %1999 = vmatprep.subr.mxu0 0.0
    %2000 = vmatpush1.msra.mxu0 0.0
    %2001 = vmatprep.subr.mxu0 0.0
    %2002 = vmatpush1.msra.mxu0 0.0
    %2003 = vmatprep.subr.mxu0 0.0
    %2004 = vmatpush1.msra.mxu0 0.0
    %2005 = vmatprep.subr.mxu0 0.0
    %2006 = vmatpush1.msra.mxu0 0.0
    %2007 = vmatprep.subr.mxu0 0.0
    %2008 = vmatpush1.msra.mxu0 0.0
    %2009 = vmatprep.subr.mxu0 0.0
    %2010 = vmatpush1.msra.mxu0 0.0
    %2011 = vmatprep.subr.mxu0 0.0
    %2012 = vmatpush1.msra.mxu0 0.0
    %2013 = vmatprep.subr.mxu0 0.0
    %2014 = vmatpush1.msra.mxu0 0.0
    %2015 = vmatprep.subr.mxu0 0.0
    %2016 = vmatpush1.msra.mxu0 0.0
    %2017 = vmatprep.subr.mxu0 0.0
    %2018 = vmatpush1.msra.mxu0 0.0
    %2019 = vmatprep.subr.mxu0 0.0
    %2020 = vmatpush1.msra.mxu0 0.0
    %2021 = vmatprep.subr.mxu0 0.0
    %2022 = vmatpush1.msra.mxu0 0.0
    %2023 = vmatprep.subr.mxu0 0.0
    %2024 = vmatpush1.msra.mxu0 0.0
    %2025 = vmatprep.subr.mxu0 0.0
    %2026 = vmatpush1.msra.mxu0 0.0
    %2027 = vmatprep.subr.mxu0 0.0
    %2028 = vmatpush1.msra.mxu0 0.0
    %2029 = vmatprep.subr.mxu0 0.0
    %2030 = vmatpush1.msra.mxu0 0.0
    %2031 = vmatprep.subr.mxu0 0.0
    %2032 = vmatpush1.msra.mxu0 0.0
    %2033 = vmatprep.subr.mxu0 0.0
    %2034 = vmatpush1.msra.mxu0 0.0
    %2035 = vmatprep.subr.mxu0 0.0
    %2036 = vmatpush1.msra.mxu0 0.0
    %2037 = vmatprep.subr.mxu0 0.0
    %2038 = vmatpush1.msra.mxu0 0.0
    %2039 = vmatprep.subr.mxu0 0.0
    %2040 = vmatpush1.msra.mxu0 0.0
    %2041 = vmatprep.subr.mxu0 0.0
    %2042 = vmatpush1.msra.mxu0 0.0
    %2043 = vmatprep.subr.mxu0 0.0
    %2044 = vmatpush1.msra.mxu0 0.0
    %2045 = vmatprep.subr.mxu0 0.0
    %2046 = vmatpush1.msra.mxu0 0.0
    %2047 = vmatprep.subr.mxu0 0.0
    %2048 = vmatpush1.msra.mxu0 0.0
    %2049 = vmatprep.subr.mxu0 0.0
    %2050 = vmatpush1.msra.mxu0 0.0
    %2051 = vmatprep.mubr.f32.mxu0 0.0
    %2052 = vmatmul.mubr.f32.gmra.mrb[0].mxu0 %v1985
    %v2053 = vpop.f32.mrb[0].mxu0
    %v2054 = vadd.f32 0.0, %v2053
    %v2055 = vpop.f32.mrb[0].mxu0
    %2056 = vdwg.mxu0
    %v2058 = vsel %vm1238, %v1905, 0
    %2060 = vmatprep.subr.mxu0 0.0
    %2061 = vmatpush1.msra.mxu0 %v1168
    %2062 = vmatprep.subr.mxu0 0.0
    %2063 = vmatpush1.msra.mxu0 0.0
    %2064 = vmatprep.subr.mxu0 0.0
    %2065 = vmatpush1.msra.mxu0 0.0
    %2066 = vmatprep.subr.mxu0 0.0
    %2067 = vmatpush1.msra.mxu0 0.0
    %2068 = vmatprep.subr.mxu0 0.0
    %2069 = vmatpush1.msra.mxu0 0.0
    %2070 = vmatprep.subr.mxu0 0.0
    %2071 = vmatpush1.msra.mxu0 0.0
    %2072 = vmatprep.subr.mxu0 0.0
    %2073 = vmatpush1.msra.mxu0 0.0
    %2074 = vmatprep.subr.mxu0 0.0
    %2075 = vmatpush1.msra.mxu0 0.0
    %2076 = vmatprep.subr.mxu0 0.0
    %2077 = vmatpush1.msra.mxu0 0.0
    %2078 = vmatprep.subr.mxu0 0.0
    %2079 = vmatpush1.msra.mxu0 0.0
    %2080 = vmatprep.subr.mxu0 0.0
    %2081 = vmatpush1.msra.mxu0 0.0
    %2082 = vmatprep.subr.mxu0 0.0
    %2083 = vmatpush1.msra.mxu0 0.0
    %2084 = vmatprep.subr.mxu0 0.0
    %2085 = vmatpush1.msra.mxu0 0.0
    %2086 = vmatprep.subr.mxu0 0.0
    %2087 = vmatpush1.msra.mxu0 0.0
    %2088 = vmatprep.subr.mxu0 0.0
    %2089 = vmatpush1.msra.mxu0 0.0
    %2090 = vmatprep.subr.mxu0 0.0
    %2091 = vmatpush1.msra.mxu0 0.0
    %2092 = vmatprep.subr.mxu0 0.0
    %2093 = vmatpush1.msra.mxu0 0.0
    %2094 = vmatprep.subr.mxu0 0.0
    %2095 = vmatpush1.msra.mxu0 0.0
    %2096 = vmatprep.subr.mxu0 0.0
    %2097 = vmatpush1.msra.mxu0 0.0
    %2098 = vmatprep.subr.mxu0 0.0
    %2099 = vmatpush1.msra.mxu0 0.0
    %2100 = vmatprep.subr.mxu0 0.0
    %2101 = vmatpush1.msra.mxu0 0.0
    %2102 = vmatprep.subr.mxu0 0.0
    %2103 = vmatpush1.msra.mxu0 0.0
    %2104 = vmatprep.subr.mxu0 0.0
    %2105 = vmatpush1.msra.mxu0 0.0
    %2106 = vmatprep.subr.mxu0 0.0
    %2107 = vmatpush1.msra.mxu0 0.0
    %2108 = vmatprep.subr.mxu0 0.0
    %2109 = vmatpush1.msra.mxu0 0.0
    %2110 = vmatprep.subr.mxu0 0.0
    %2111 = vmatpush1.msra.mxu0 0.0
    %2112 = vmatprep.subr.mxu0 0.0
    %2113 = vmatpush1.msra.mxu0 0.0
    %2114 = vmatprep.subr.mxu0 0.0
    %2115 = vmatpush1.msra.mxu0 0.0
    %2116 = vmatprep.subr.mxu0 0.0
    %2117 = vmatpush1.msra.mxu0 0.0
    %2118 = vmatprep.subr.mxu0 0.0
    %2119 = vmatpush1.msra.mxu0 0.0
    %2120 = vmatprep.subr.mxu0 0.0
    %2121 = vmatpush1.msra.mxu0 0.0
    %2122 = vmatprep.subr.mxu0 0.0
    %2123 = vmatpush1.msra.mxu0 0.0
    %2124 = vmatprep.mubr.f32.mxu0 0.0
    %2125 = vmatmul.mubr.f32.gmra.mrb[0].mxu0 %v2058
    %v2126 = vpop.f32.mrb[0].mxu0
    %v2127 = vadd.f32 0.0, %v2126
    %v2128 = vpop.f32.mrb[0].mxu0
    %2129 = vdwg.mxu0
    %v2131 = vsel %vm1238, %v1906, 0
    %2133 = vmatprep.subr.mxu0 0.0
    %2134 = vmatpush1.msra.mxu0 %v1169
    %2135 = vmatprep.subr.mxu0 0.0
    %2136 = vmatpush1.msra.mxu0 0.0
    %2137 = vmatprep.subr.mxu0 0.0
    %2138 = vmatpush1.msra.mxu0 0.0
    %2139 = vmatprep.subr.mxu0 0.0
    %2140 = vmatpush1.msra.mxu0 0.0
    %2141 = vmatprep.subr.mxu0 0.0
    %2142 = vmatpush1.msra.mxu0 0.0
    %2143 = vmatprep.subr.mxu0 0.0
    %2144 = vmatpush1.msra.mxu0 0.0
    %2145 = vmatprep.subr.mxu0 0.0
    %2146 = vmatpush1.msra.mxu0 0.0
    %2147 = vmatprep.subr.mxu0 0.0
    %2148 = vmatpush1.msra.mxu0 0.0
    %2149 = vmatprep.subr.mxu0 0.0
    %2150 = vmatpush1.msra.mxu0 0.0
    %2151 = vmatprep.subr.mxu0 0.0
    %2152 = vmatpush1.msra.mxu0 0.0
    %2153 = vmatprep.subr.mxu0 0.0
    %2154 = vmatpush1.msra.mxu0 0.0
    %2155 = vmatprep.subr.mxu0 0.0
    %2156 = vmatpush1.msra.mxu0 0.0
    %2157 = vmatprep.subr.mxu0 0.0
    %2158 = vmatpush1.msra.mxu0 0.0
    %2159 = vmatprep.subr.mxu0 0.0
    %2160 = vmatpush1.msra.mxu0 0.0
    %2161 = vmatprep.subr.mxu0 0.0
    %2162 = vmatpush1.msra.mxu0 0.0
    %2163 = vmatprep.subr.mxu0 0.0
    %2164 = vmatpush1.msra.mxu0 0.0
    %2165 = vmatprep.subr.mxu0 0.0
    %2166 = vmatpush1.msra.mxu0 0.0
    %2167 = vmatprep.subr.mxu0 0.0
    %2168 = vmatpush1.msra.mxu0 0.0
    %2169 = vmatprep.subr.mxu0 0.0
    %2170 = vmatpush1.msra.mxu0 0.0
    %2171 = vmatprep.subr.mxu0 0.0
    %2172 = vmatpush1.msra.mxu0 0.0
    %2173 = vmatprep.subr.mxu0 0.0
    %2174 = vmatpush1.msra.mxu0 0.0
    %2175 = vmatprep.subr.mxu0 0.0
    %2176 = vmatpush1.msra.mxu0 0.0
    %2177 = vmatprep.subr.mxu0 0.0
    %2178 = vmatpush1.msra.mxu0 0.0
    %2179 = vmatprep.subr.mxu0 0.0
    %2180 = vmatpush1.msra.mxu0 0.0
    %2181 = vmatprep.subr.mxu0 0.0
    %2182 = vmatpush1.msra.mxu0 0.0
    %2183 = vmatprep.subr.mxu0 0.0
    %2184 = vmatpush1.msra.mxu0 0.0
    %2185 = vmatprep.subr.mxu0 0.0
    %2186 = vmatpush1.msra.mxu0 0.0
    %2187 = vmatprep.subr.mxu0 0.0
    %2188 = vmatpush1.msra.mxu0 0.0
    %2189 = vmatprep.subr.mxu0 0.0
    %2190 = vmatpush1.msra.mxu0 0.0
    %2191 = vmatprep.subr.mxu0 0.0
    %2192 = vmatpush1.msra.mxu0 0.0
    %2193 = vmatprep.subr.mxu0 0.0
    %2194 = vmatpush1.msra.mxu0 0.0
    %2195 = vmatprep.subr.mxu0 0.0
    %2196 = vmatpush1.msra.mxu0 0.0
    %2197 = vmatprep.mubr.f32.mxu0 0.0
    %2198 = vmatmul.mubr.f32.gmra.mrb[0].mxu0 %v2131
    %v2199 = vpop.f32.mrb[0].mxu0
    %v2200 = vadd.f32 0.0, %v2199
    %v2201 = vpop.f32.mrb[0].mxu0
    %2202 = vdwg.mxu0
    %v2204 = vsel %vm1238, %v1907, 0
    %2206 = vmatprep.subr.mxu0 0.0
    %2207 = vmatpush1.msra.mxu0 %v1234
    %2208 = vmatprep.subr.mxu0 0.0
    %2209 = vmatpush1.msra.mxu0 0.0
    %2210 = vmatprep.subr.mxu0 0.0
    %2211 = vmatpush1.msra.mxu0 0.0
    %2212 = vmatprep.subr.mxu0 0.0
    %2213 = vmatpush1.msra.mxu0 0.0
    %2214 = vmatprep.subr.mxu0 0.0
    %2215 = vmatpush1.msra.mxu0 0.0
    %2216 = vmatprep.subr.mxu0 0.0
    %2217 = vmatpush1.msra.mxu0 0.0
    %2218 = vmatprep.subr.mxu0 0.0
    %2219 = vmatpush1.msra.mxu0 0.0
    %2220 = vmatprep.subr.mxu0 0.0
    %2221 = vmatpush1.msra.mxu0 0.0
    %2222 = vmatprep.subr.mxu0 0.0
    %2223 = vmatpush1.msra.mxu0 0.0
    %2224 = vmatprep.subr.mxu0 0.0
    %2225 = vmatpush1.msra.mxu0 0.0
    %2226 = vmatprep.subr.mxu0 0.0
    %2227 = vmatpush1.msra.mxu0 0.0
    %2228 = vmatprep.subr.mxu0 0.0
    %2229 = vmatpush1.msra.mxu0 0.0
    %2230 = vmatprep.subr.mxu0 0.0
    %2231 = vmatpush1.msra.mxu0 0.0
    %2232 = vmatprep.subr.mxu0 0.0
    %2233 = vmatpush1.msra.mxu0 0.0
    %2234 = vmatprep.subr.mxu0 0.0
    %2235 = vmatpush1.msra.mxu0 0.0
    %2236 = vmatprep.subr.mxu0 0.0
    %2237 = vmatpush1.msra.mxu0 0.0
    %2238 = vmatprep.subr.mxu0 0.0
    %2239 = vmatpush1.msra.mxu0 0.0
    %2240 = vmatprep.subr.mxu0 0.0
    %2241 = vmatpush1.msra.mxu0 0.0
    %2242 = vmatprep.subr.mxu0 0.0
    %2243 = vmatpush1.msra.mxu0 0.0
    %2244 = vmatprep.subr.mxu0 0.0
    %2245 = vmatpush1.msra.mxu0 0.0
    %2246 = vmatprep.subr.mxu0 0.0
    %2247 = vmatpush1.msra.mxu0 0.0
    %2248 = vmatprep.subr.mxu0 0.0
    %2249 = vmatpush1.msra.mxu0 0.0
    %2250 = vmatprep.subr.mxu0 0.0
    %2251 = vmatpush1.msra.mxu0 0.0
    %2252 = vmatprep.subr.mxu0 0.0
    %2253 = vmatpush1.msra.mxu0 0.0
    %2254 = vmatprep.subr.mxu0 0.0
    %2255 = vmatpush1.msra.mxu0 0.0
    %2256 = vmatprep.subr.mxu0 0.0
    %2257 = vmatpush1.msra.mxu0 0.0
    %2258 = vmatprep.subr.mxu0 0.0
    %2259 = vmatpush1.msra.mxu0 0.0
    %2260 = vmatprep.subr.mxu0 0.0
    %2261 = vmatpush1.msra.mxu0 0.0
    %2262 = vmatprep.subr.mxu0 0.0
    %2263 = vmatpush1.msra.mxu0 0.0
    %2264 = vmatprep.subr.mxu0 0.0
    %2265 = vmatpush1.msra.mxu0 0.0
    %2266 = vmatprep.subr.mxu0 0.0
    %2267 = vmatpush1.msra.mxu0 0.0
    %2268 = vmatprep.subr.mxu0 0.0
    %2269 = vmatpush1.msra.mxu0 0.0
    %2270 = vmatprep.mubr.f32.mxu0 0.0
    %2271 = vmatmul.mubr.f32.gmra.mrb[0].mxu0 %v2204
    %v2272 = vpop.f32.mrb[0].mxu0
    %v2273 = vadd.f32 0.0, %v2272
    %v2274 = vpop.f32.mrb[0].mxu0
    %2275 = vdwg.mxu0
    %v2277 = vsel %vm1238, %v1908, 0
    %2279 = vmatprep.subr.mxu0 0.0
    %2280 = vmatpush1.msra.mxu0 %v1235
    %2281 = vmatprep.subr.mxu0 0.0
    %2282 = vmatpush1.msra.mxu0 0.0
    %2283 = vmatprep.subr.mxu0 0.0
    %2284 = vmatpush1.msra.mxu0 0.0
    %2285 = vmatprep.subr.mxu0 0.0
    %2286 = vmatpush1.msra.mxu0 0.0
    %2287 = vmatprep.subr.mxu0 0.0
    %2288 = vmatpush1.msra.mxu0 0.0
    %2289 = vmatprep.subr.mxu0 0.0
    %2290 = vmatpush1.msra.mxu0 0.0
    %2291 = vmatprep.subr.mxu0 0.0
    %2292 = vmatpush1.msra.mxu0 0.0
    %2293 = vmatprep.subr.mxu0 0.0
    %2294 = vmatpush1.msra.mxu0 0.0
    %2295 = vmatprep.subr.mxu0 0.0
    %2296 = vmatpush1.msra.mxu0 0.0
    %2297 = vmatprep.subr.mxu0 0.0
    %2298 = vmatpush1.msra.mxu0 0.0
    %2299 = vmatprep.subr.mxu0 0.0
    %2300 = vmatpush1.msra.mxu0 0.0
    %2301 = vmatprep.subr.mxu0 0.0
    %2302 = vmatpush1.msra.mxu0 0.0
    %2303 = vmatprep.subr.mxu0 0.0
    %2304 = vmatpush1.msra.mxu0 0.0
    %2305 = vmatprep.subr.mxu0 0.0
    %2306 = vmatpush1.msra.mxu0 0.0
    %2307 = vmatprep.subr.mxu0 0.0
    %2308 = vmatpush1.msra.mxu0 0.0
    %2309 = vmatprep.subr.mxu0 0.0
    %2310 = vmatpush1.msra.mxu0 0.0
    %2311 = vmatprep.subr.mxu0 0.0
    %2312 = vmatpush1.msra.mxu0 0.0
    %2313 = vmatprep.subr.mxu0 0.0
    %2314 = vmatpush1.msra.mxu0 0.0
    %2315 = vmatprep.subr.mxu0 0.0
    %2316 = vmatpush1.msra.mxu0 0.0
    %2317 = vmatprep.subr.mxu0 0.0
    %2318 = vmatpush1.msra.mxu0 0.0
    %2319 = vmatprep.subr.mxu0 0.0
    %2320 = vmatpush1.msra.mxu0 0.0
    %2321 = vmatprep.subr.mxu0 0.0
    %2322 = vmatpush1.msra.mxu0 0.0
    %2323 = vmatprep.subr.mxu0 0.0
    %2324 = vmatpush1.msra.mxu0 0.0
    %2325 = vmatprep.subr.mxu0 0.0
    %2326 = vmatpush1.msra.mxu0 0.0
    %2327 = vmatprep.subr.mxu0 0.0
    %2328 = vmatpush1.msra.mxu0 0.0
    %2329 = vmatprep.subr.mxu0 0.0
    %2330 = vmatpush1.msra.mxu0 0.0
    %2331 = vmatprep.subr.mxu0 0.0
    %2332 = vmatpush1.msra.mxu0 0.0
    %2333 = vmatprep.subr.mxu0 0.0
    %2334 = vmatpush1.msra.mxu0 0.0
    %2335 = vmatprep.subr.mxu0 0.0
    %2336 = vmatpush1.msra.mxu0 0.0
    %2337 = vmatprep.subr.mxu0 0.0
    %2338 = vmatpush1.msra.mxu0 0.0
    %2339 = vmatprep.subr.mxu0 0.0
    %2340 = vmatpush1.msra.mxu0 0.0
    %2341 = vmatprep.subr.mxu0 0.0
    %2342 = vmatpush1.msra.mxu0 0.0
    %2343 = vmatprep.mubr.f32.mxu0 0.0
    %2344 = vmatmul.mubr.f32.gmra.mrb[0].mxu0 %v2277
    %v2345 = vpop.f32.mrb[0].mxu0
    %v2346 = vadd.f32 0.0, %v2345
    %v2347 = vpop.f32.mrb[0].mxu0
    %2348 = vdwg.mxu0
    %v2350 = vsel %vm1238, %v1909, 0
    %2352 = vmatprep.subr.mxu0 0.0
    %2353 = vmatpush1.msra.mxu0 %v1236
    %2354 = vmatprep.subr.mxu0 0.0
    %2355 = vmatpush1.msra.mxu0 0.0
    %2356 = vmatprep.subr.mxu0 0.0
    %2357 = vmatpush1.msra.mxu0 0.0
    %2358 = vmatprep.subr.mxu0 0.0
    %2359 = vmatpush1.msra.mxu0 0.0
    %2360 = vmatprep.subr.mxu0 0.0
    %2361 = vmatpush1.msra.mxu0 0.0
    %2362 = vmatprep.subr.mxu0 0.0
    %2363 = vmatpush1.msra.mxu0 0.0
    %2364 = vmatprep.subr.mxu0 0.0
    %2365 = vmatpush1.msra.mxu0 0.0
    %2366 = vmatprep.subr.mxu0 0.0
    %2367 = vmatpush1.msra.mxu0 0.0
    %2368 = vmatprep.subr.mxu0 0.0
    %2369 = vmatpush1.msra.mxu0 0.0
    %2370 = vmatprep.subr.mxu0 0.0
    %2371 = vmatpush1.msra.mxu0 0.0
    %2372 = vmatprep.subr.mxu0 0.0
    %2373 = vmatpush1.msra.mxu0 0.0
    %2374 = vmatprep.subr.mxu0 0.0
    %2375 = vmatpush1.msra.mxu0 0.0
    %2376 = vmatprep.subr.mxu0 0.0
    %2377 = vmatpush1.msra.mxu0 0.0
    %2378 = vmatprep.subr.mxu0 0.0
    %2379 = vmatpush1.msra.mxu0 0.0
    %2380 = vmatprep.subr.mxu0 0.0
    %2381 = vmatpush1.msra.mxu0 0.0
    %2382 = vmatprep.subr.mxu0 0.0
    %2383 = vmatpush1.msra.mxu0 0.0
    %2384 = vmatprep.subr.mxu0 0.0
    %2385 = vmatpush1.msra.mxu0 0.0
    %2386 = vmatprep.subr.mxu0 0.0
    %2387 = vmatpush1.msra.mxu0 0.0
    %2388 = vmatprep.subr.mxu0 0.0
    %2389 = vmatpush1.msra.mxu0 0.0
    %2390 = vmatprep.subr.mxu0 0.0
    %2391 = vmatpush1.msra.mxu0 0.0
    %2392 = vmatprep.subr.mxu0 0.0
    %2393 = vmatpush1.msra.mxu0 0.0
    %2394 = vmatprep.subr.mxu0 0.0
    %2395 = vmatpush1.msra.mxu0 0.0
    %2396 = vmatprep.subr.mxu0 0.0
    %2397 = vmatpush1.msra.mxu0 0.0
    %2398 = vmatprep.subr.mxu0 0.0
    %2399 = vmatpush1.msra.mxu0 0.0
    %2400 = vmatprep.subr.mxu0 0.0
    %2401 = vmatpush1.msra.mxu0 0.0
    %2402 = vmatprep.subr.mxu0 0.0
    %2403 = vmatpush1.msra.mxu0 0.0
    %2404 = vmatprep.subr.mxu0 0.0
    %2405 = vmatpush1.msra.mxu0 0.0
    %2406 = vmatprep.subr.mxu0 0.0
    %2407 = vmatpush1.msra.mxu0 0.0
    %2408 = vmatprep.subr.mxu0 0.0
    %2409 = vmatpush1.msra.mxu0 0.0
    %2410 = vmatprep.subr.mxu0 0.0
    %2411 = vmatpush1.msra.mxu0 0.0
    %2412 = vmatprep.subr.mxu0 0.0
    %2413 = vmatpush1.msra.mxu0 0.0
    %2414 = vmatprep.subr.mxu0 0.0
    %2415 = vmatpush1.msra.mxu0 0.0
    %2416 = vmatprep.mubr.f32.mxu0 0.0
    %2417 = vmatmul.mubr.f32.gmra.mrb[0].mxu0 %v2350
    %v2418 = vpop.f32.mrb[0].mxu0
    %v2419 = vadd.f32 0.0, %v2418
    %v2420 = vpop.f32.mrb[0].mxu0
    %2421 = vdwg.mxu0
    %v2423 = vsel %vm1238, %v1910, 0
    %2425 = vmatprep.subr.mxu0 0.0
    %2426 = vmatpush1.msra.mxu0 %v1237
    %2427 = vmatprep.subr.mxu0 0.0
    %2428 = vmatpush1.msra.mxu0 0.0
    %2429 = vmatprep.subr.mxu0 0.0
    %2430 = vmatpush1.msra.mxu0 0.0
    %2431 = vmatprep.subr.mxu0 0.0
    %2432 = vmatpush1.msra.mxu0 0.0
    %2433 = vmatprep.subr.mxu0 0.0
    %2434 = vmatpush1.msra.mxu0 0.0
    %2435 = vmatprep.subr.mxu0 0.0
    %2436 = vmatpush1.msra.mxu0 0.0
    %2437 = vmatprep.subr.mxu0 0.0
    %2438 = vmatpush1.msra.mxu0 0.0
    %2439 = vmatprep.subr.mxu0 0.0
    %2440 = vmatpush1.msra.mxu0 0.0
    %2441 = vmatprep.subr.mxu0 0.0
    %2442 = vmatpush1.msra.mxu0 0.0
    %2443 = vmatprep.subr.mxu0 0.0
    %2444 = vmatpush1.msra.mxu0 0.0
    %2445 = vmatprep.subr.mxu0 0.0
    %2446 = vmatpush1.msra.mxu0 0.0
    %2447 = vmatprep.subr.mxu0 0.0
    %2448 = vmatpush1.msra.mxu0 0.0
    %2449 = vmatprep.subr.mxu0 0.0
    %2450 = vmatpush1.msra.mxu0 0.0
    %2451 = vmatprep.subr.mxu0 0.0
    %2452 = vmatpush1.msra.mxu0 0.0
    %2453 = vmatprep.subr.mxu0 0.0
    %2454 = vmatpush1.msra.mxu0 0.0
    %2455 = vmatprep.subr.mxu0 0.0
    %2456 = vmatpush1.msra.mxu0 0.0
    %2457 = vmatprep.subr.mxu0 0.0
    %2458 = vmatpush1.msra.mxu0 0.0
    %2459 = vmatprep.subr.mxu0 0.0
    %2460 = vmatpush1.msra.mxu0 0.0
    %2461 = vmatprep.subr.mxu0 0.0
    %2462 = vmatpush1.msra.mxu0 0.0
    %2463 = vmatprep.subr.mxu0 0.0
    %2464 = vmatpush1.msra.mxu0 0.0
    %2465 = vmatprep.subr.mxu0 0.0
    %2466 = vmatpush1.msra.mxu0 0.0
    %2467 = vmatprep.subr.mxu0 0.0
    %2468 = vmatpush1.msra.mxu0 0.0
    %2469 = vmatprep.subr.mxu0 0.0
    %2470 = vmatpush1.msra.mxu0 0.0
    %2471 = vmatprep.subr.mxu0 0.0
    %2472 = vmatpush1.msra.mxu0 0.0
    %2473 = vmatprep.subr.mxu0 0.0
    %2474 = vmatpush1.msra.mxu0 0.0
    %2475 = vmatprep.subr.mxu0 0.0
    %2476 = vmatpush1.msra.mxu0 0.0
    %2477 = vmatprep.subr.mxu0 0.0
    %2478 = vmatpush1.msra.mxu0 0.0
    %2479 = vmatprep.subr.mxu0 0.0
    %2480 = vmatpush1.msra.mxu0 0.0
    %2481 = vmatprep.subr.mxu0 0.0
    %2482 = vmatpush1.msra.mxu0 0.0
    %2483 = vmatprep.subr.mxu0 0.0
    %2484 = vmatpush1.msra.mxu0 0.0
    %2485 = vmatprep.subr.mxu0 0.0
    %2486 = vmatpush1.msra.mxu0 0.0
    %2487 = vmatprep.subr.mxu0 0.0
    %2488 = vmatpush1.msra.mxu0 0.0
    %2489 = vmatprep.mubr.f32.mxu0 0.0
    %2490 = vmatmul.mubr.f32.gmra.mrb[0].mxu0 %v2423
    %v2491 = vpop.f32.mrb[0].mxu0
    %v2492 = vadd.f32 0.0, %v2491
    %v2493 = vpop.f32.mrb[0].mxu0
    %2494 = vdwg.mxu0
    %v2496 = vsel %vm1238, %v1981, 0
    %v2499 = vsel %vm1238, %v2273, 0
    %2501 = vmatprep.subr.mxu0 0.0
    %2502 = vmatpush1.msra.mxu0 %v85
    %2503 = vmatprep.subr.mxu0 0.0
    %2504 = vmatpush1.msra.mxu0 0.0
    %2505 = vmatprep.subr.mxu0 0.0
    %2506 = vmatpush1.msra.mxu0 0.0
    %2507 = vmatprep.subr.mxu0 0.0
    %2508 = vmatpush1.msra.mxu0 0.0
    %2509 = vmatprep.subr.mxu0 0.0
    %2510 = vmatpush1.msra.mxu0 0.0
    %2511 = vmatprep.subr.mxu0 0.0
    %2512 = vmatpush1.msra.mxu0 0.0
    %2513 = vmatprep.subr.mxu0 0.0
    %2514 = vmatpush1.msra.mxu0 0.0
    %2515 = vmatprep.subr.mxu0 0.0
    %2516 = vmatpush1.msra.mxu0 0.0
    %2517 = vmatprep.subr.mxu0 0.0
    %2518 = vmatpush1.msra.mxu0 0.0
    %2519 = vmatprep.subr.mxu0 0.0
    %2520 = vmatpush1.msra.mxu0 0.0
    %2521 = vmatprep.subr.mxu0 0.0
    %2522 = vmatpush1.msra.mxu0 0.0
    %2523 = vmatprep.subr.mxu0 0.0
    %2524 = vmatpush1.msra.mxu0 0.0
    %2525 = vmatprep.subr.mxu0 0.0
    %2526 = vmatpush1.msra.mxu0 0.0
    %2527 = vmatprep.subr.mxu0 0.0
    %2528 = vmatpush1.msra.mxu0 0.0
    %2529 = vmatprep.subr.mxu0 0.0
    %2530 = vmatpush1.msra.mxu0 0.0
    %2531 = vmatprep.subr.mxu0 0.0
    %2532 = vmatpush1.msra.mxu0 0.0
    %2533 = vmatprep.subr.mxu0 0.0
    %2534 = vmatpush1.msra.mxu0 0.0
    %2535 = vmatprep.subr.mxu0 0.0
    %2536 = vmatpush1.msra.mxu0 0.0
    %2537 = vmatprep.subr.mxu0 0.0
    %2538 = vmatpush1.msra.mxu0 0.0
    %2539 = vmatprep.subr.mxu0 0.0
    %2540 = vmatpush1.msra.mxu0 0.0
    %2541 = vmatprep.subr.mxu0 0.0
    %2542 = vmatpush1.msra.mxu0 0.0
    %2543 = vmatprep.subr.mxu0 0.0
    %2544 = vmatpush1.msra.mxu0 0.0
    %2545 = vmatprep.subr.mxu0 0.0
    %2546 = vmatpush1.msra.mxu0 0.0
    %2547 = vmatprep.subr.mxu0 0.0
    %2548 = vmatpush1.msra.mxu0 0.0
    %2549 = vmatprep.subr.mxu0 0.0
    %2550 = vmatpush1.msra.mxu0 0.0
    %2551 = vmatprep.subr.mxu0 0.0
    %2552 = vmatpush1.msra.mxu0 0.0
    %2553 = vmatprep.subr.mxu0 0.0
    %2554 = vmatpush1.msra.mxu0 0.0
    %2555 = vmatprep.subr.mxu0 0.0
    %2556 = vmatpush1.msra.mxu0 0.0
    %2557 = vmatprep.subr.mxu0 0.0
    %2558 = vmatpush1.msra.mxu0 0.0
    %2559 = vmatprep.subr.mxu0 0.0
    %2560 = vmatpush1.msra.mxu0 0.0
    %2561 = vmatprep.subr.mxu0 0.0
    %2562 = vmatpush1.msra.mxu0 0.0
    %2563 = vmatprep.subr.mxu0 0.0
    %2564 = vmatpush1.msra.mxu0 0.0
    %2565 = vmatprep.mubr.f32.mxu0 0.0
    %2566 = vmatmul.mubr.f32.gmra.mrb[0].mxu0 %v2496
    %v2567 = vpop.f32.mrb[0].mxu0
    %v2568 = vadd.f32 0.0, %v2567
    %v2569 = vpop.f32.mrb[0].mxu0
    %2570 = vmatprep.mubr.f32.mxu0 0.0
    %2571 = vmatmul.mubr.f32.gmra.mrb[0].mxu0 %v2499
    %v2572 = vpop.f32.mrb[0].mxu0
    %v2573 = vadd.f32 0.0, %v2572
    %v2574 = vpop.f32.mrb[0].mxu0
    %2575 = vdwg.mxu0
    %v2576 = vadd.f32 %v110, %v2568
    %v2577 = vadd.f32 %v111, %v2573
    %v2579 = vsel %vm1238, %v2054, 0
    %v2582 = vsel %vm1238, %v2346, 0
    %2584 = vmatprep.subr.mxu0 0.0
    %2585 = vmatpush1.msra.mxu0 %v86
    %2586 = vmatprep.subr.mxu0 0.0
    %2587 = vmatpush1.msra.mxu0 0.0
    %2588 = vmatprep.subr.mxu0 0.0
    %2589 = vmatpush1.msra.mxu0 0.0
    %2590 = vmatprep.subr.mxu0 0.0
    %2591 = vmatpush1.msra.mxu0 0.0
    %2592 = vmatprep.subr.mxu0 0.0
    %2593 = vmatpush1.msra.mxu0 0.0
    %2594 = vmatprep.subr.mxu0 0.0
    %2595 = vmatpush1.msra.mxu0 0.0
    %2596 = vmatprep.subr.mxu0 0.0
    %2597 = vmatpush1.msra.mxu0 0.0
    %2598 = vmatprep.subr.mxu0 0.0
    %2599 = vmatpush1.msra.mxu0 0.0
    %2600 = vmatprep.subr.mxu0 0.0
    %2601 = vmatpush1.msra.mxu0 0.0
    %2602 = vmatprep.subr.mxu0 0.0
    %2603 = vmatpush1.msra.mxu0 0.0
    %2604 = vmatprep.subr.mxu0 0.0
    %2605 = vmatpush1.msra.mxu0 0.0
    %2606 = vmatprep.subr.mxu0 0.0
    %2607 = vmatpush1.msra.mxu0 0.0
    %2608 = vmatprep.subr.mxu0 0.0
    %2609 = vmatpush1.msra.mxu0 0.0
    %2610 = vmatprep.subr.mxu0 0.0
    %2611 = vmatpush1.msra.mxu0 0.0
    %2612 = vmatprep.subr.mxu0 0.0
    %2613 = vmatpush1.msra.mxu0 0.0
    %2614 = vmatprep.subr.mxu0 0.0
    %2615 = vmatpush1.msra.mxu0 0.0
    %2616 = vmatprep.subr.mxu0 0.0
    %2617 = vmatpush1.msra.mxu0 0.0
    %2618 = vmatprep.subr.mxu0 0.0
    %2619 = vmatpush1.msra.mxu0 0.0
    %2620 = vmatprep.subr.mxu0 0.0
    %2621 = vmatpush1.msra.mxu0 0.0
    %2622 = vmatprep.subr.mxu0 0.0
    %2623 = vmatpush1.msra.mxu0 0.0
    %2624 = vmatprep.subr.mxu0 0.0
    %2625 = vmatpush1.msra.mxu0 0.0
    %2626 = vmatprep.subr.mxu0 0.0
    %2627 = vmatpush1.msra.mxu0 0.0
    %2628 = vmatprep.subr.mxu0 0.0
    %2629 = vmatpush1.msra.mxu0 0.0
    %2630 = vmatprep.subr.mxu0 0.0
    %2631 = vmatpush1.msra.mxu0 0.0
    %2632 = vmatprep.subr.mxu0 0.0
    %2633 = vmatpush1.msra.mxu0 0.0
    %2634 = vmatprep.subr.mxu0 0.0
    %2635 = vmatpush1.msra.mxu0 0.0
    %2636 = vmatprep.subr.mxu0 0.0
    %2637 = vmatpush1.msra.mxu0 0.0
    %2638 = vmatprep.subr.mxu0 0.0
    %2639 = vmatpush1.msra.mxu0 0.0
    %2640 = vmatprep.subr.mxu0 0.0
    %2641 = vmatpush1.msra.mxu0 0.0
    %2642 = vmatprep.subr.mxu0 0.0
    %2643 = vmatpush1.msra.mxu0 0.0
    %2644 = vmatprep.subr.mxu0 0.0
    %2645 = vmatpush1.msra.mxu0 0.0
    %2646 = vmatprep.subr.mxu0 0.0
    %2647 = vmatpush1.msra.mxu0 0.0
    %2648 = vmatprep.mubr.f32.mxu0 0.0
    %2649 = vmatmul.mubr.f32.gmra.mrb[0].mxu0 %v2579
    %v2650 = vpop.f32.mrb[0].mxu0
    %v2651 = vadd.f32 0.0, %v2650
    %v2652 = vpop.f32.mrb[0].mxu0
    %2653 = vmatprep.mubr.f32.mxu0 0.0
    %2654 = vmatmul.mubr.f32.gmra.mrb[0].mxu0 %v2582
    %v2655 = vpop.f32.mrb[0].mxu0
    %v2656 = vadd.f32 0.0, %v2655
    %v2657 = vpop.f32.mrb[0].mxu0
    %2658 = vdwg.mxu0
    %v2659 = vadd.f32 %v2576, %v2651
    %v2660 = vadd.f32 %v2577, %v2656
    %v2662 = vsel %vm1238, %v2127, 0
    %v2665 = vsel %vm1238, %v2419, 0
    %2667 = vmatprep.subr.mxu0 0.0
    %2668 = vmatpush1.msra.mxu0 %v87
    %2669 = vmatprep.subr.mxu0 0.0
    %2670 = vmatpush1.msra.mxu0 0.0
    %2671 = vmatprep.subr.mxu0 0.0
    %2672 = vmatpush1.msra.mxu0 0.0
    %2673 = vmatprep.subr.mxu0 0.0
    %2674 = vmatpush1.msra.mxu0 0.0
    %2675 = vmatprep.subr.mxu0 0.0
    %2676 = vmatpush1.msra.mxu0 0.0
    %2677 = vmatprep.subr.mxu0 0.0
    %2678 = vmatpush1.msra.mxu0 0.0
    %2679 = vmatprep.subr.mxu0 0.0
    %2680 = vmatpush1.msra.mxu0 0.0
    %2681 = vmatprep.subr.mxu0 0.0
    %2682 = vmatpush1.msra.mxu0 0.0
    %2683 = vmatprep.subr.mxu0 0.0
    %2684 = vmatpush1.msra.mxu0 0.0
    %2685 = vmatprep.subr.mxu0 0.0
    %2686 = vmatpush1.msra.mxu0 0.0
    %2687 = vmatprep.subr.mxu0 0.0
    %2688 = vmatpush1.msra.mxu0 0.0
    %2689 = vmatprep.subr.mxu0 0.0
    %2690 = vmatpush1.msra.mxu0 0.0
    %2691 = vmatprep.subr.mxu0 0.0
    %2692 = vmatpush1.msra.mxu0 0.0
    %2693 = vmatprep.subr.mxu0 0.0
    %2694 = vmatpush1.msra.mxu0 0.0
    %2695 = vmatprep.subr.mxu0 0.0
    %2696 = vmatpush1.msra.mxu0 0.0
    %2697 = vmatprep.subr.mxu0 0.0
    %2698 = vmatpush1.msra.mxu0 0.0
    %2699 = vmatprep.subr.mxu0 0.0
    %2700 = vmatpush1.msra.mxu0 0.0
    %2701 = vmatprep.subr.mxu0 0.0
    %2702 = vmatpush1.msra.mxu0 0.0
    %2703 = vmatprep.subr.mxu0 0.0
    %2704 = vmatpush1.msra.mxu0 0.0
    %2705 = vmatprep.subr.mxu0 0.0
    %2706 = vmatpush1.msra.mxu0 0.0
    %2707 = vmatprep.subr.mxu0 0.0
    %2708 = vmatpush1.msra.mxu0 0.0
    %2709 = vmatprep.subr.mxu0 0.0
    %2710 = vmatpush1.msra.mxu0 0.0
    %2711 = vmatprep.subr.mxu0 0.0
    %2712 = vmatpush1.msra.mxu0 0.0
    %2713 = vmatprep.subr.mxu0 0.0
    %2714 = vmatpush1.msra.mxu0 0.0
    %2715 = vmatprep.subr.mxu0 0.0
    %2716 = vmatpush1.msra.mxu0 0.0
    %2717 = vmatprep.subr.mxu0 0.0
    %2718 = vmatpush1.msra.mxu0 0.0
    %2719 = vmatprep.subr.mxu0 0.0
    %2720 = vmatpush1.msra.mxu0 0.0
    %2721 = vmatprep.subr.mxu0 0.0
    %2722 = vmatpush1.msra.mxu0 0.0
    %2723 = vmatprep.subr.mxu0 0.0
    %2724 = vmatpush1.msra.mxu0 0.0
    %2725 = vmatprep.subr.mxu0 0.0
    %2726 = vmatpush1.msra.mxu0 0.0
    %2727 = vmatprep.subr.mxu0 0.0
    %2728 = vmatpush1.msra.mxu0 0.0
    %2729 = vmatprep.subr.mxu0 0.0
    %2730 = vmatpush1.msra.mxu0 0.0
    %2731 = vmatprep.mubr.f32.mxu0 0.0
    %2732 = vmatmul.mubr.f32.gmra.mrb[0].mxu0 %v2662
    %v2733 = vpop.f32.mrb[0].mxu0
    %v2734 = vadd.f32 0.0, %v2733
    %v2735 = vpop.f32.mrb[0].mxu0
    %2736 = vmatprep.mubr.f32.mxu0 0.0
    %2737 = vmatmul.mubr.f32.gmra.mrb[0].mxu0 %v2665
    %v2738 = vpop.f32.mrb[0].mxu0
    %v2739 = vadd.f32 0.0, %v2738
    %v2740 = vpop.f32.mrb[0].mxu0
    %2741 = vdwg.mxu0
    %v2742 = vadd.f32 %v2659, %v2734
    %v2743 = vadd.f32 %v2660, %v2739
    %v2745 = vsel %vm1238, %v2200, 0
    %v2748 = vsel %vm1238, %v2492, 0
    %2750 = vmatprep.subr.mxu0 0.0
    %2751 = vmatpush1.msra.mxu0 %v88
    %2752 = vmatprep.subr.mxu0 0.0
    %2753 = vmatpush1.msra.mxu0 0.0
    %2754 = vmatprep.subr.mxu0 0.0
    %2755 = vmatpush1.msra.mxu0 0.0
    %2756 = vmatprep.subr.mxu0 0.0
    %2757 = vmatpush1.msra.mxu0 0.0
    %2758 = vmatprep.subr.mxu0 0.0
    %2759 = vmatpush1.msra.mxu0 0.0
    %2760 = vmatprep.subr.mxu0 0.0
    %2761 = vmatpush1.msra.mxu0 0.0
    %2762 = vmatprep.subr.mxu0 0.0
    %2763 = vmatpush1.msra.mxu0 0.0
    %2764 = vmatprep.subr.mxu0 0.0
    %2765 = vmatpush1.msra.mxu0 0.0
    %2766 = vmatprep.subr.mxu0 0.0
    %2767 = vmatpush1.msra.mxu0 0.0
    %2768 = vmatprep.subr.mxu0 0.0
    %2769 = vmatpush1.msra.mxu0 0.0
    %2770 = vmatprep.subr.mxu0 0.0
    %2771 = vmatpush1.msra.mxu0 0.0
    %2772 = vmatprep.subr.mxu0 0.0
    %2773 = vmatpush1.msra.mxu0 0.0
    %2774 = vmatprep.subr.mxu0 0.0
    %2775 = vmatpush1.msra.mxu0 0.0
    %2776 = vmatprep.subr.mxu0 0.0
    %2777 = vmatpush1.msra.mxu0 0.0
    %2778 = vmatprep.subr.mxu0 0.0
    %2779 = vmatpush1.msra.mxu0 0.0
    %2780 = vmatprep.subr.mxu0 0.0
    %2781 = vmatpush1.msra.mxu0 0.0
    %2782 = vmatprep.subr.mxu0 0.0
    %2783 = vmatpush1.msra.mxu0 0.0
    %2784 = vmatprep.subr.mxu0 0.0
    %2785 = vmatpush1.msra.mxu0 0.0
    %2786 = vmatprep.subr.mxu0 0.0
    %2787 = vmatpush1.msra.mxu0 0.0
    %2788 = vmatprep.subr.mxu0 0.0
    %2789 = vmatpush1.msra.mxu0 0.0
    %2790 = vmatprep.subr.mxu0 0.0
    %2791 = vmatpush1.msra.mxu0 0.0
    %2792 = vmatprep.subr.mxu0 0.0
    %2793 = vmatpush1.msra.mxu0 0.0
    %2794 = vmatprep.subr.mxu0 0.0
    %2795 = vmatpush1.msra.mxu0 0.0
    %2796 = vmatprep.subr.mxu0 0.0
    %2797 = vmatpush1.msra.mxu0 0.0
    %2798 = vmatprep.subr.mxu0 0.0
    %2799 = vmatpush1.msra.mxu0 0.0
    %2800 = vmatprep.subr.mxu0 0.0
    %2801 = vmatpush1.msra.mxu0 0.0
    %2802 = vmatprep.subr.mxu0 0.0
    %2803 = vmatpush1.msra.mxu0 0.0
    %2804 = vmatprep.subr.mxu0 0.0
    %2805 = vmatpush1.msra.mxu0 0.0
    %2806 = vmatprep.subr.mxu0 0.0
    %2807 = vmatpush1.msra.mxu0 0.0
    %2808 = vmatprep.subr.mxu0 0.0
    %2809 = vmatpush1.msra.mxu0 0.0
    %2810 = vmatprep.subr.mxu0 0.0
    %2811 = vmatpush1.msra.mxu0 0.0
    %2812 = vmatprep.subr.mxu0 0.0
    %2813 = vmatpush1.msra.mxu0 0.0
    %2814 = vmatprep.mubr.f32.mxu0 0.0
    %2815 = vmatmul.mubr.f32.gmra.mrb[0].mxu0 %v2745
    %v2816 = vpop.f32.mrb[0].mxu0
    %v2817 = vadd.f32 0.0, %v2816
    %v2818 = vpop.f32.mrb[0].mxu0
    %2819 = vmatprep.mubr.f32.mxu0 0.0
    %2820 = vmatmul.mubr.f32.gmra.mrb[0].mxu0 %v2748
    %v2821 = vpop.f32.mrb[0].mxu0
    %v2822 = vadd.f32 0.0, %v2821
    %v2823 = vpop.f32.mrb[0].mxu0
    %2824 = vdwg.mxu0
    %v2825 = vadd.f32 %v2742, %v2817
    %v2826 = vadd.f32 %v2743, %v2822
    %v2827 = vadd.f32 %v71, %v2825
    %v2828 = vadd.f32 %v72, %v2826
    %v2829 = vsel %vm130, %v2827, 0.0
    %2830 = vadd.xlane.f32.xlu0 %v2829
    %v2831 = vpop.xlane.xlu0 %2830
    %v2832 = vsel %vm130, %v2828, 0.0
    %2833 = vadd.xlane.f32.xlu0 %v2832
    %v2834 = vpop.xlane.xlu0 %2833
    %v2835 = vrcp.pop 32.0
    %v2836 = vmul.f32 %v2831, %v2835
    %v2837 = vmul.f32 %v2834, %v2835
    %v2838 = vsub.f32 %v2827, %v2836
    %v2839 = vsub.f32 %v2828, %v2837
    %v2840 = vmul.f32 %v2838, %v2838
    %v2841 = vmul.f32 %v2839, %v2839
    %v2842 = vsel %vm130, %v2840, 0.0
    %2843 = vadd.xlane.f32.xlu0 %v2842
    %v2844 = vpop.xlane.xlu0 %2843
    %v2845 = vsel %vm130, %v2841, 0.0
    %2846 = vadd.xlane.f32.xlu0 %v2845
    %v2847 = vpop.xlane.xlu0 %2846
    %v2848 = vmul.f32 %v2844, %v2835
    %v2849 = vmul.f32 %v2847, %v2835
    %v2850 = vadd.f32 %v2848, 1e-05
    %v2851 = vadd.f32 %v2849, 1e-05
    %v2852 = vrsqrt.pop %v2850
    %v2853 = vrsqrt.pop %v2851
    %v2854 = vmul.f32 %v2838, %v2852
    %v2855 = vmul.f32 %v2839, %v2853
    %v2856 = vmul.f32 %v2854, %v119
    %v2857 = vmul.f32 %v2855, %v120
    %v2858 = vadd.f32 %v2856, %v122
    %v2859 = vadd.f32 %v2857, %v123
    %v2861 = vsel %vm130, %v2858, 0
    %v2864 = vsel %vm130, %v2859, 0
    %2866 = vmatprep.subr.mxu0 0.0
    %2867 = vmatpush1.msra.mxu0 %v89
    %2868 = vmatprep.subr.mxu0 0.0
    %2869 = vmatpush1.msra.mxu0 %v90
    %2870 = vmatprep.subr.mxu0 0.0
    %2871 = vmatpush1.msra.mxu0 %v91
    %2872 = vmatprep.subr.mxu0 0.0
    %2873 = vmatpush1.msra.mxu0 %v92
    %2874 = vmatprep.subr.mxu0 0.0
    %2875 = vmatpush1.msra.mxu0 0.0
    %2876 = vmatprep.subr.mxu0 0.0
    %2877 = vmatpush1.msra.mxu0 0.0
    %2878 = vmatprep.subr.mxu0 0.0
    %2879 = vmatpush1.msra.mxu0 0.0
    %2880 = vmatprep.subr.mxu0 0.0
    %2881 = vmatpush1.msra.mxu0 0.0
    %2882 = vmatprep.subr.mxu0 0.0
    %2883 = vmatpush1.msra.mxu0 0.0
    %2884 = vmatprep.subr.mxu0 0.0
    %2885 = vmatpush1.msra.mxu0 0.0
    %2886 = vmatprep.subr.mxu0 0.0
    %2887 = vmatpush1.msra.mxu0 0.0
    %2888 = vmatprep.subr.mxu0 0.0
    %2889 = vmatpush1.msra.mxu0 0.0
    %2890 = vmatprep.subr.mxu0 0.0
    %2891 = vmatpush1.msra.mxu0 0.0
    %2892 = vmatprep.subr.mxu0 0.0
    %2893 = vmatpush1.msra.mxu0 0.0
    %2894 = vmatprep.subr.mxu0 0.0
    %2895 = vmatpush1.msra.mxu0 0.0
    %2896 = vmatprep.subr.mxu0 0.0
    %2897 = vmatpush1.msra.mxu0 0.0
    %2898 = vmatprep.subr.mxu0 0.0
    %2899 = vmatpush1.msra.mxu0 0.0
    %2900 = vmatprep.subr.mxu0 0.0
    %2901 = vmatpush1.msra.mxu0 0.0
    %2902 = vmatprep.subr.mxu0 0.0
    %2903 = vmatpush1.msra.mxu0 0.0
    %2904 = vmatprep.subr.mxu0 0.0
    %2905 = vmatpush1.msra.mxu0 0.0
    %2906 = vmatprep.subr.mxu0 0.0
    %2907 = vmatpush1.msra.mxu0 0.0
    %2908 = vmatprep.subr.mxu0 0.0
    %2909 = vmatpush1.msra.mxu0 0.0
    %2910 = vmatprep.subr.mxu0 0.0
    %2911 = vmatpush1.msra.mxu0 0.0
    %2912 = vmatprep.subr.mxu0 0.0
    %2913 = vmatpush1.msra.mxu0 0.0
    %2914 = vmatprep.subr.mxu0 0.0
    %2915 = vmatpush1.msra.mxu0 0.0
    %2916 = vmatprep.subr.mxu0 0.0
    %2917 = vmatpush1.msra.mxu0 0.0
    %2918 = vmatprep.subr.mxu0 0.0
    %2919 = vmatpush1.msra.mxu0 0.0
    %2920 = vmatprep.subr.mxu0 0.0
    %2921 = vmatpush1.msra.mxu0 0.0
    %2922 = vmatprep.subr.mxu0 0.0
    %2923 = vmatpush1.msra.mxu0 0.0
    %2924 = vmatprep.subr.mxu0 0.0
    %2925 = vmatpush1.msra.mxu0 0.0
    %2926 = vmatprep.subr.mxu0 0.0
    %2927 = vmatpush1.msra.mxu0 0.0
    %2928 = vmatprep.subr.mxu0 0.0
    %2929 = vmatpush1.msra.mxu0 0.0
    %2930 = vmatprep.mubr.f32.mxu0 0.0
    %2931 = vmatmul.mubr.f32.gmra.mrb[0].mxu0 %v2861
    %v2932 = vpop.f32.mrb[0].mxu0
    %v2933 = vadd.f32 %v113, %v2932
    %v2934 = vpop.f32.mrb[0].mxu0
    %2935 = vmatprep.mubr.f32.mxu0 0.0
    %2936 = vmatmul.mubr.f32.gmra.mrb[0].mxu0 %v2864
    %v2937 = vpop.f32.mrb[0].mxu0
    %v2938 = vadd.f32 %v114, %v2937
    %v2939 = vpop.f32.mrb[0].mxu0
    %2940 = vdwg.mxu0
    %v2941 = vmax.f32 %v2933, 0.0
    %v2942 = vmax.f32 %v2938, 0.0
    %vm2943 = vcmask 523264
    %v2945 = vsel %vm2943, %v2941, 0
    %v2948 = vsel %vm2943, %v2942, 0
    %2950 = vmatprep.subr.mxu0 0.0
    %2951 = vmatpush1.msra.mxu0 %v93
    %2952 = vmatprep.subr.mxu0 0.0
    %2953 = vmatpush1.msra.mxu0 %v94
    %2954 = vmatprep.subr.mxu0 0.0
    %2955 = vmatpush1.msra.mxu0 %v95
    %2956 = vmatprep.subr.mxu0 0.0
    %2957 = vmatpush1.msra.mxu0 %v96
    %2958 = vmatprep.subr.mxu0 0.0
    %2959 = vmatpush1.msra.mxu0 %v97
    %2960 = vmatprep.subr.mxu0 0.0
    %2961 = vmatpush1.msra.mxu0 %v98
    %2962 = vmatprep.subr.mxu0 0.0
    %2963 = vmatpush1.msra.mxu0 %v99
    %2964 = vmatprep.subr.mxu0 0.0
    %2965 = vmatpush1.msra.mxu0 %v100
    %2966 = vmatprep.subr.mxu0 0.0
    %2967 = vmatpush1.msra.mxu0 0.0
    %2968 = vmatprep.subr.mxu0 0.0
    %2969 = vmatpush1.msra.mxu0 0.0
    %2970 = vmatprep.subr.mxu0 0.0
    %2971 = vmatpush1.msra.mxu0 0.0
    %2972 = vmatprep.subr.mxu0 0.0
    %2973 = vmatpush1.msra.mxu0 0.0
    %2974 = vmatprep.subr.mxu0 0.0
    %2975 = vmatpush1.msra.mxu0 0.0
    %2976 = vmatprep.subr.mxu0 0.0
    %2977 = vmatpush1.msra.mxu0 0.0
    %2978 = vmatprep.subr.mxu0 0.0
    %2979 = vmatpush1.msra.mxu0 0.0
    %2980 = vmatprep.subr.mxu0 0.0
    %2981 = vmatpush1.msra.mxu0 0.0
    %2982 = vmatprep.subr.mxu0 0.0
    %2983 = vmatpush1.msra.mxu0 0.0
    %2984 = vmatprep.subr.mxu0 0.0
    %2985 = vmatpush1.msra.mxu0 0.0
    %2986 = vmatprep.subr.mxu0 0.0
    %2987 = vmatpush1.msra.mxu0 0.0
    %2988 = vmatprep.subr.mxu0 0.0
    %2989 = vmatpush1.msra.mxu0 0.0
    %2990 = vmatprep.subr.mxu0 0.0
    %2991 = vmatpush1.msra.mxu0 0.0
    %2992 = vmatprep.subr.mxu0 0.0
    %2993 = vmatpush1.msra.mxu0 0.0
    %2994 = vmatprep.subr.mxu0 0.0
    %2995 = vmatpush1.msra.mxu0 0.0
    %2996 = vmatprep.subr.mxu0 0.0
    %2997 = vmatpush1.msra.mxu0 0.0
    %2998 = vmatprep.subr.mxu0 0.0
    %2999 = vmatpush1.msra.mxu0 0.0
    %3000 = vmatprep.subr.mxu0 0.0
    %3001 = vmatpush1.msra.mxu0 0.0
    %3002 = vmatprep.subr.mxu0 0.0
    %3003 = vmatpush1.msra.mxu0 0.0
    %3004 = vmatprep.subr.mxu0 0.0
    %3005 = vmatpush1.msra.mxu0 0.0
    %3006 = vmatprep.subr.mxu0 0.0
    %3007 = vmatpush1.msra.mxu0 0.0
    %3008 = vmatprep.subr.mxu0 0.0
    %3009 = vmatpush1.msra.mxu0 0.0
    %3010 = vmatprep.subr.mxu0 0.0
    %3011 = vmatpush1.msra.mxu0 0.0
    %3012 = vmatprep.subr.mxu0 0.0
    %3013 = vmatpush1.msra.mxu0 0.0
    %3014 = vmatprep.mubr.f32.mxu0 0.0
    %3015 = vmatmul.mubr.f32.gmra.mrb[0].mxu0 %v2945
    %v3016 = vpop.f32.mrb[0].mxu0
    %v3017 = vadd.f32 %v116, %v3016
    %v3018 = vpop.f32.mrb[0].mxu0
    %3019 = vmatprep.mubr.f32.mxu0 0.0
    %3020 = vmatmul.mubr.f32.gmra.mrb[0].mxu0 %v2948
    %v3021 = vpop.f32.mrb[0].mxu0
    %v3022 = vadd.f32 %v117, %v3021
    %v3023 = vpop.f32.mrb[0].mxu0
    %3024 = vdwg.mxu0
    %v3025 = vadd.f32 %v2858, %v3017
    %v3026 = vadd.f32 %v2859, %v3022
    %v3027 = vsel %vm130, %v3025, 0.0
    %3028 = vadd.xlane.f32.xlu0 %v3027
    %v3029 = vpop.xlane.xlu0 %3028
    %v3030 = vsel %vm130, %v3026, 0.0
    %3031 = vadd.xlane.f32.xlu0 %v3030
    %v3032 = vpop.xlane.xlu0 %3031
    %v3033 = vmul.f32 %v3029, %v2835
    %v3034 = vmul.f32 %v3032, %v2835
    %v3035 = vsub.f32 %v3025, %v3033
    %v3036 = vsub.f32 %v3026, %v3034
    %v3037 = vmul.f32 %v3035, %v3035
    %v3038 = vmul.f32 %v3036, %v3036
    %v3039 = vsel %vm130, %v3037, 0.0
    %3040 = vadd.xlane.f32.xlu0 %v3039
    %v3041 = vpop.xlane.xlu0 %3040
    %v3042 = vsel %vm130, %v3038, 0.0
    %3043 = vadd.xlane.f32.xlu0 %v3042
    %v3044 = vpop.xlane.xlu0 %3043
    %v3045 = vmul.f32 %v3041, %v2835
    %v3046 = vmul.f32 %v3044, %v2835
    %v3047 = vadd.f32 %v3045, 1e-05
    %v3048 = vadd.f32 %v3046, 1e-05
    %v3049 = vrsqrt.pop %v3047
    %v3050 = vrsqrt.pop %v3048
    %v3051 = vmul.f32 %v3035, %v3049
    %v3052 = vmul.f32 %v3036, %v3050
    %v3053 = vmul.f32 %v3051, %v125
    %v3054 = vmul.f32 %v3052, %v126
    %v3055 = vadd.f32 %v3053, %v128
    %v3056 = vadd.f32 %v3054, %v129
    %s3057 = scalar_lea.vmem %s1, 32
    %v3058 = vld [vmem:[%s3057] sm:$0xff]
    %v3059 = vld [vmem:[%s3057 + $0x8] sm:$0xff]
    %v3060 = vld [vmem:[%s3057 + $0x10] sm:$0xff]
    %v3061 = vld [vmem:[%s3057 + $0x18] sm:$0xff]
    %s3062 = scalar_lea.vmem [#allocation2], 32
    %v3063 = vld [vmem:[%s3062] sm:$0xff]
    %v3064 = vld [vmem:[%s3062 + $0x8] sm:$0xff]
    %v3065 = vld [vmem:[%s3062 + $0x10] sm:$0xff]
    %v3066 = vld [vmem:[%s3062 + $0x18] sm:$0xff]
    %s3067 = scalar_lea.vmem %s3, 32
    %v3068 = vld [vmem:[%s3067] sm:$0xff]
    %v3069 = vld [vmem:[%s3067 + $0x8] sm:$0xff]
    %v3070 = vld [vmem:[%s3067 + $0x10] sm:$0xff]
    %v3071 = vld [vmem:[%s3067 + $0x18] sm:$0xff]
    %s3072 = scalar_lea.vmem [#allocation5], 32
    %v3073 = vld [vmem:[%s3072] sm:$0xff]
    %v3074 = vld [vmem:[%s3072 + $0x8] sm:$0xff]
    %v3075 = vld [vmem:[%s3072 + $0x10] sm:$0xff]
    %v3076 = vld [vmem:[%s3072 + $0x18] sm:$0xff]
    %s3077 = scalar_lea.vmem [#allocation7], 32
    %v3078 = vld [vmem:[%s3077] sm:$0xff]
    %v3079 = vld [vmem:[%s3077 + $0x8] sm:$0xff]
    %v3080 = vld [vmem:[%s3077 + $0x10] sm:$0xff]
    %v3081 = vld [vmem:[%s3077 + $0x18] sm:$0xff]
    %s3082 = scalar_lea.vmem %s6, 64
    %v3083 = vld [vmem:[%s3082] sm:$0xff]
    %v3084 = vld [vmem:[%s3082 + $0x8] sm:$0xff]
    %v3085 = vld [vmem:[%s3082 + $0x10] sm:$0xff]
    %v3086 = vld [vmem:[%s3082 + $0x18] sm:$0xff]
    %v3087 = vld [vmem:[%s3082 + $0x20] sm:$0xff]
    %v3088 = vld [vmem:[%s3082 + $0x28] sm:$0xff]
    %v3089 = vld [vmem:[%s3082 + $0x30] sm:$0xff]
    %v3090 = vld [vmem:[%s3082 + $0x38] sm:$0xff]
    %s3091 = scalar_lea.vmem %s7, 160
    %v3092 = vld [vmem:[%s3091] sm:$0xff]
    %v3093 = vld [vmem:[%s3091 + $0x8] sm:$0xff]
    %s3094 = scalar_lea.vmem %s7, 176
    %v3095 = vld [vmem:[%s3094] sm:$0xff]
    %v3096 = vld [vmem:[%s3094 + $0x8] sm:$0xff]
    %s3097 = scalar_lea.vmem %s7, 192
    %v3098 = vld [vmem:[%s3097] sm:$0xff]
    %v3099 = vld [vmem:[%s3097 + $0x8] sm:$0xff]
    %s3100 = scalar_lea.vmem %s7, 208
    %v3101 = vld [vmem:[%s3100] sm:$0xff]
    %v3102 = vld [vmem:[%s3100 + $0x8] sm:$0xff]
    %s3103 = scalar_lea.vmem %s7, 224
    %v3104 = vld [vmem:[%s3103] sm:$0xff]
    %v3105 = vld [vmem:[%s3103 + $0x8] sm:$0xff]
    %s3106 = scalar_lea.vmem %s7, 240
    %v3107 = vld [vmem:[%s3106] sm:$0xff]
    %v3108 = vld [vmem:[%s3106 + $0x8] sm:$0xff]
    %s3109 = scalar_lea.vmem %s7, 256
    %v3110 = vld [vmem:[%s3109] sm:$0xff]
    %v3111 = vld [vmem:[%s3109 + $0x8] sm:$0xff]
    %s3112 = scalar_lea.vmem %s7, 272
    %v3113 = vld [vmem:[%s3112] sm:$0xff]
    %v3114 = vld [vmem:[%s3112 + $0x8] sm:$0xff]
    %s3115 = scalar_lea.vmem %s7, 288
    %v3116 = vld [vmem:[%s3115] sm:$0xff]
    %v3117 = vld [vmem:[%s3115 + $0x8] sm:$0xff]
    %s3118 = scalar_lea.vmem %s7, 304
    %v3119 = vld [vmem:[%s3118] sm:$0xff]
    %v3120 = vld [vmem:[%s3118 + $0x8] sm:$0xff]
    %v3122 = vsel %vm130, %v3055, 0
    %v3125 = vsel %vm130, %v3056, 0
    %3127 = vmatprep.subr.mxu0 0.0
    %3128 = vmatpush1.msra.mxu0 %v3058
    %3129 = vmatprep.subr.mxu0 0.0
    %3130 = vmatpush1.msra.mxu0 %v3059
    %3131 = vmatprep.subr.mxu0 0.0
    %3132 = vmatpush1.msra.mxu0 %v3060
    %3133 = vmatprep.subr.mxu0 0.0
    %3134 = vmatpush1.msra.mxu0 %v3061
    %3135 = vmatprep.subr.mxu0 0.0
    %3136 = vmatpush1.msra.mxu0 0.0
    %3137 = vmatprep.subr.mxu0 0.0
    %3138 = vmatpush1.msra.mxu0 0.0
    %3139 = vmatprep.subr.mxu0 0.0
    %3140 = vmatpush1.msra.mxu0 0.0
    %3141 = vmatprep.subr.mxu0 0.0
    %3142 = vmatpush1.msra.mxu0 0.0
    %3143 = vmatprep.subr.mxu0 0.0
    %3144 = vmatpush1.msra.mxu0 0.0
    %3145 = vmatprep.subr.mxu0 0.0
    %3146 = vmatpush1.msra.mxu0 0.0
    %3147 = vmatprep.subr.mxu0 0.0
    %3148 = vmatpush1.msra.mxu0 0.0
    %3149 = vmatprep.subr.mxu0 0.0
    %3150 = vmatpush1.msra.mxu0 0.0
    %3151 = vmatprep.subr.mxu0 0.0
    %3152 = vmatpush1.msra.mxu0 0.0
    %3153 = vmatprep.subr.mxu0 0.0
    %3154 = vmatpush1.msra.mxu0 0.0
    %3155 = vmatprep.subr.mxu0 0.0
    %3156 = vmatpush1.msra.mxu0 0.0
    %3157 = vmatprep.subr.mxu0 0.0
    %3158 = vmatpush1.msra.mxu0 0.0
    %3159 = vmatprep.subr.mxu0 0.0
    %3160 = vmatpush1.msra.mxu0 0.0
    %3161 = vmatprep.subr.mxu0 0.0
    %3162 = vmatpush1.msra.mxu0 0.0
    %3163 = vmatprep.subr.mxu0 0.0
    %3164 = vmatpush1.msra.mxu0 0.0
    %3165 = vmatprep.subr.mxu0 0.0
    %3166 = vmatpush1.msra.mxu0 0.0
    %3167 = vmatprep.subr.mxu0 0.0
    %3168 = vmatpush1.msra.mxu0 0.0
    %3169 = vmatprep.subr.mxu0 0.0
    %3170 = vmatpush1.msra.mxu0 0.0
    %3171 = vmatprep.subr.mxu0 0.0
    %3172 = vmatpush1.msra.mxu0 0.0
    %3173 = vmatprep.subr.mxu0 0.0
    %3174 = vmatpush1.msra.mxu0 0.0
    %3175 = vmatprep.subr.mxu0 0.0
    %3176 = vmatpush1.msra.mxu0 0.0
    %3177 = vmatprep.subr.mxu0 0.0
    %3178 = vmatpush1.msra.mxu0 0.0
    %3179 = vmatprep.subr.mxu0 0.0
    %3180 = vmatpush1.msra.mxu0 0.0
    %3181 = vmatprep.subr.mxu0 0.0
    %3182 = vmatpush1.msra.mxu0 0.0
    %3183 = vmatprep.subr.mxu0 0.0
    %3184 = vmatpush1.msra.mxu0 0.0
    %3185 = vmatprep.subr.mxu0 0.0
    %3186 = vmatpush1.msra.mxu0 0.0
    %3187 = vmatprep.subr.mxu0 0.0
    %3188 = vmatpush1.msra.mxu0 0.0
    %3189 = vmatprep.subr.mxu0 0.0
    %3190 = vmatpush1.msra.mxu0 0.0
    %3191 = vmatprep.mubr.f32.mxu0 0.0
    %3192 = vmatmul.mubr.f32.gmra.mrb[0].mxu0 %v3122
    %v3193 = vpop.f32.mrb[0].mxu0
    %v3194 = vadd.f32 %v3092, %v3193
    %v3195 = vpop.f32.mrb[0].mxu0
    %3196 = vmatprep.mubr.f32.mxu0 0.0
    %3197 = vmatmul.mubr.f32.gmra.mrb[0].mxu0 %v3125
    %v3198 = vpop.f32.mrb[0].mxu0
    %v3199 = vadd.f32 %v3093, %v3198
    %v3200 = vpop.f32.mrb[0].mxu0
    %3201 = vdwg.mxu0
    %3202 = vmatprep.subr.mxu0 0.0
    %3203 = vmatpush1.msra.mxu0 %v3063
    %3204 = vmatprep.subr.mxu0 0.0
    %3205 = vmatpush1.msra.mxu0 %v3064
    %3206 = vmatprep.subr.mxu0 0.0
    %3207 = vmatpush1.msra.mxu0 %v3065
    %3208 = vmatprep.subr.mxu0 0.0
    %3209 = vmatpush1.msra.mxu0 %v3066
    %3210 = vmatprep.subr.mxu0 0.0
    %3211 = vmatpush1.msra.mxu0 0.0
    %3212 = vmatprep.subr.mxu0 0.0
    %3213 = vmatpush1.msra.mxu0 0.0
    %3214 = vmatprep.subr.mxu0 0.0
    %3215 = vmatpush1.msra.mxu0 0.0
    %3216 = vmatprep.subr.mxu0 0.0
    %3217 = vmatpush1.msra.mxu0 0.0
    %3218 = vmatprep.subr.mxu0 0.0
    %3219 = vmatpush1.msra.mxu0 0.0
    %3220 = vmatprep.subr.mxu0 0.0
    %3221 = vmatpush1.msra.mxu0 0.0
    %3222 = vmatprep.subr.mxu0 0.0
    %3223 = vmatpush1.msra.mxu0 0.0
    %3224 = vmatprep.subr.mxu0 0.0
    %3225 = vmatpush1.msra.mxu0 0.0
    %3226 = vmatprep.subr.mxu0 0.0
    %3227 = vmatpush1.msra.mxu0 0.0
    %3228 = vmatprep.subr.mxu0 0.0
    %3229 = vmatpush1.msra.mxu0 0.0
    %3230 = vmatprep.subr.mxu0 0.0
    %3231 = vmatpush1.msra.mxu0 0.0
    %3232 = vmatprep.subr.mxu0 0.0
    %3233 = vmatpush1.msra.mxu0 0.0
    %3234 = vmatprep.subr.mxu0 0.0
    %3235 = vmatpush1.msra.mxu0 0.0
    %3236 = vmatprep.subr.mxu0 0.0
    %3237 = vmatpush1.msra.mxu0 0.0
    %3238 = vmatprep.subr.mxu0 0.0
    %3239 = vmatpush1.msra.mxu0 0.0
    %3240 = vmatprep.subr.mxu0 0.0
    %3241 = vmatpush1.msra.mxu0 0.0
    %3242 = vmatprep.subr.mxu0 0.0
    %3243 = vmatpush1.msra.mxu0 0.0
    %3244 = vmatprep.subr.mxu0 0.0
    %3245 = vmatpush1.msra.mxu0 0.0
    %3246 = vmatprep.subr.mxu0 0.0
    %3247 = vmatpush1.msra.mxu0 0.0
    %3248 = vmatprep.subr.mxu0 0.0
    %3249 = vmatpush1.msra.mxu0 0.0
    %3250 = vmatprep.subr.mxu0 0.0
    %3251 = vmatpush1.msra.mxu0 0.0
    %3252 = vmatprep.subr.mxu0 0.0
    %3253 = vmatpush1.msra.mxu0 0.0
    %3254 = vmatprep.subr.mxu0 0.0
    %3255 = vmatpush1.msra.mxu0 0.0
    %3256 = vmatprep.subr.mxu0 0.0
    %3257 = vmatpush1.msra.mxu0 0.0
    %3258 = vmatprep.subr.mxu0 0.0
    %3259 = vmatpush1.msra.mxu0 0.0
    %3260 = vmatprep.subr.mxu0 0.0
    %3261 = vmatpush1.msra.mxu0 0.0
    %3262 = vmatprep.subr.mxu0 0.0
    %3263 = vmatpush1.msra.mxu0 0.0
    %3264 = vmatprep.subr.mxu0 0.0
    %3265 = vmatpush1.msra.mxu0 0.0
    %3266 = vmatprep.mubr.f32.mxu0 0.0
    %3267 = vmatmul.mubr.f32.gmra.mrb[0].mxu0 %v3122
    %v3268 = vpop.f32.mrb[0].mxu0
    %v3269 = vadd.f32 %v3095, %v3268
    %v3270 = vpop.f32.mrb[0].mxu0
    %3271 = vmatprep.mubr.f32.mxu0 0.0
    %3272 = vmatmul.mubr.f32.gmra.mrb[0].mxu0 %v3125
    %v3273 = vpop.f32.mrb[0].mxu0
    %v3274 = vadd.f32 %v3096, %v3273
    %v3275 = vpop.f32.mrb[0].mxu0
    %3276 = vdwg.mxu0
    %3277 = vmatprep.subr.mxu0 0.0
    %3278 = vmatpush1.msra.mxu0 %v3068
    %3279 = vmatprep.subr.mxu0 0.0
    %3280 = vmatpush1.msra.mxu0 %v3069
    %3281 = vmatprep.subr.mxu0 0.0
    %3282 = vmatpush1.msra.mxu0 %v3070
    %3283 = vmatprep.subr.mxu0 0.0
    %3284 = vmatpush1.msra.mxu0 %v3071
    %3285 = vmatprep.subr.mxu0 0.0
    %3286 = vmatpush1.msra.mxu0 0.0
    %3287 = vmatprep.subr.mxu0 0.0
    %3288 = vmatpush1.msra.mxu0 0.0
    %3289 = vmatprep.subr.mxu0 0.0
    %3290 = vmatpush1.msra.mxu0 0.0
    %3291 = vmatprep.subr.mxu0 0.0
    %3292 = vmatpush1.msra.mxu0 0.0
    %3293 = vmatprep.subr.mxu0 0.0
    %3294 = vmatpush1.msra.mxu0 0.0
    %3295 = vmatprep.subr.mxu0 0.0
    %3296 = vmatpush1.msra.mxu0 0.0
    %3297 = vmatprep.subr.mxu0 0.0
    %3298 = vmatpush1.msra.mxu0 0.0
    %3299 = vmatprep.subr.mxu0 0.0
    %3300 = vmatpush1.msra.mxu0 0.0
    %3301 = vmatprep.subr.mxu0 0.0
    %3302 = vmatpush1.msra.mxu0 0.0
    %3303 = vmatprep.subr.mxu0 0.0
    %3304 = vmatpush1.msra.mxu0 0.0
    %3305 = vmatprep.subr.mxu0 0.0
    %3306 = vmatpush1.msra.mxu0 0.0
    %3307 = vmatprep.subr.mxu0 0.0
    %3308 = vmatpush1.msra.mxu0 0.0
    %3309 = vmatprep.subr.mxu0 0.0
    %3310 = vmatpush1.msra.mxu0 0.0
    %3311 = vmatprep.subr.mxu0 0.0
    %3312 = vmatpush1.msra.mxu0 0.0
    %3313 = vmatprep.subr.mxu0 0.0
    %3314 = vmatpush1.msra.mxu0 0.0
    %3315 = vmatprep.subr.mxu0 0.0
    %3316 = vmatpush1.msra.mxu0 0.0
    %3317 = vmatprep.subr.mxu0 0.0
    %3318 = vmatpush1.msra.mxu0 0.0
    %3319 = vmatprep.subr.mxu0 0.0
    %3320 = vmatpush1.msra.mxu0 0.0
    %3321 = vmatprep.subr.mxu0 0.0
    %3322 = vmatpush1.msra.mxu0 0.0
    %3323 = vmatprep.subr.mxu0 0.0
    %3324 = vmatpush1.msra.mxu0 0.0
    %3325 = vmatprep.subr.mxu0 0.0
    %3326 = vmatpush1.msra.mxu0 0.0
    %3327 = vmatprep.subr.mxu0 0.0
    %3328 = vmatpush1.msra.mxu0 0.0
    %3329 = vmatprep.subr.mxu0 0.0
    %3330 = vmatpush1.msra.mxu0 0.0
    %3331 = vmatprep.subr.mxu0 0.0
    %3332 = vmatpush1.msra.mxu0 0.0
    %3333 = vmatprep.subr.mxu0 0.0
    %3334 = vmatpush1.msra.mxu0 0.0
    %3335 = vmatprep.subr.mxu0 0.0
    %3336 = vmatpush1.msra.mxu0 0.0
    %3337 = vmatprep.subr.mxu0 0.0
    %3338 = vmatpush1.msra.mxu0 0.0
    %3339 = vmatprep.subr.mxu0 0.0
    %3340 = vmatpush1.msra.mxu0 0.0
    %3341 = vmatprep.mubr.f32.mxu0 0.0
    %3342 = vmatmul.mubr.f32.gmra.mrb[0].mxu0 %v3122
    %v3343 = vpop.f32.mrb[0].mxu0
    %v3344 = vadd.f32 %v3098, %v3343
    %v3345 = vpop.f32.mrb[0].mxu0
    %3346 = vmatprep.mubr.f32.mxu0 0.0
    %3347 = vmatmul.mubr.f32.gmra.mrb[0].mxu0 %v3125
    %v3348 = vpop.f32.mrb[0].mxu0
    %v3349 = vadd.f32 %v3099, %v3348
    %v3350 = vpop.f32.mrb[0].mxu0
    %3351 = vdwg.mxu0
    %3354 = vrot.lane.b32.xlu0 %v3194, 120
    %v3355 = vpop.permute.xlu0 %3354
    %3356 = vrot.lane.b32.xlu0 %v3199, 120
    %v3357 = vpop.permute.xlu0 %3356
    %3360 = vrot.lane.b32.xlu0 %v3194, 112
    %v3361 = vpop.permute.xlu0 %3360
    %3362 = vrot.lane.b32.xlu0 %v3199, 112
    %v3363 = vpop.permute.xlu0 %3362
    %3366 = vrot.lane.b32.xlu0 %v3194, 104
    %v3367 = vpop.permute.xlu0 %3366
    %3368 = vrot.lane.b32.xlu0 %v3199, 104
    %v3369 = vpop.permute.xlu0 %3368
    %v3372 = vcombine.low %v3194, %v3361
    %v3373 = vcombine.high %v3194, %v3361
    %v3375 = vunpack.c.l.s4 1983009808
    %v3376 = vunpack.c.0.s8 %v3375
    %v3377 = vlaneseq
    %v3378 = vshrl.u32 %v3377, 7
    %v3379 = vsub.s32 %v3376, %v3378
    %v3380 = vrot.slane %v3372, %v3379
    %v3382 = vunpack.c.l.s4 1983009808
    %v3383 = vunpack.c.0.s8 %v3382
    %v3384 = vlaneseq
    %v3385 = vshrl.u32 %v3384, 7
    %v3386 = vsub.s32 %v3383, %v3385
    %v3387 = vrot.slane %v3373, %v3386
    %v3388 = vcombine.low %v3355, %v3367
    %v3389 = vcombine.high %v3355, %v3367
    %v3391 = vunpack.c.l.s4 1983009808
    %v3392 = vunpack.c.0.s8 %v3391
    %v3393 = vlaneseq
    %v3394 = vshrl.u32 %v3393, 7
    %v3395 = vsub.s32 %v3392, %v3394
    %v3396 = vrot.slane %v3388, %v3395
    %v3398 = vunpack.c.l.s4 1983009808
    %v3399 = vunpack.c.0.s8 %v3398
    %v3400 = vlaneseq
    %v3401 = vshrl.u32 %v3400, 7
    %v3402 = vsub.s32 %v3399, %v3401
    %v3403 = vrot.slane %v3389, %v3402
    %v3404 = vcombine.low %v3380, %v3396
    %v3405 = vcombine.high %v3380, %v3396
    %v3407 = vunpack.c.l.s4 1934713408
    %v3408 = vunpack.c.0.s8 %v3407
    %v3409 = vlaneseq
    %v3410 = vshrl.u32 %v3409, 7
    %v3411 = vsub.s32 %v3408, %v3410
    %v3412 = vrot.slane %v3404, %v3411
    %v3414 = vunpack.c.l.s4 1934713408
    %v3415 = vunpack.c.0.s8 %v3414
    %v3416 = vlaneseq
    %v3417 = vshrl.u32 %v3416, 7
    %v3418 = vsub.s32 %v3415, %v3417
    %v3419 = vrot.slane %v3405, %v3418
    %v3420 = vcombine.low %v3387, %v3403
    %v3421 = vcombine.high %v3387, %v3403
    %v3423 = vunpack.c.l.s4 1934713408
    %v3424 = vunpack.c.0.s8 %v3423
    %v3425 = vlaneseq
    %v3426 = vshrl.u32 %v3425, 7
    %v3427 = vsub.s32 %v3424, %v3426
    %v3428 = vrot.slane %v3420, %v3427
    %v3430 = vunpack.c.l.s4 1934713408
    %v3431 = vunpack.c.0.s8 %v3430
    %v3432 = vlaneseq
    %v3433 = vshrl.u32 %v3432, 7
    %v3434 = vsub.s32 %v3431, %v3433
    %v3435 = vrot.slane %v3421, %v3434
    %v3436 = vcombine.high %v3412, 0.0
    %v3437 = vcombine.high %v3419, 0.0
    %v3438 = vcombine.high %v3428, 0.0
    %v3439 = vcombine.high %v3435, 0.0
    %v3440 = vcombine.low %v3199, %v3363
    %v3441 = vcombine.high %v3199, %v3363
    %v3443 = vunpack.c.l.s4 1983009808
    %v3444 = vunpack.c.0.s8 %v3443
    %v3445 = vlaneseq
    %v3446 = vshrl.u32 %v3445, 7
    %v3447 = vsub.s32 %v3444, %v3446
    %v3448 = vrot.slane %v3440, %v3447
    %v3450 = vunpack.c.l.s4 1983009808
    %v3451 = vunpack.c.0.s8 %v3450
    %v3452 = vlaneseq
    %v3453 = vshrl.u32 %v3452, 7
    %v3454 = vsub.s32 %v3451, %v3453
    %v3455 = vrot.slane %v3441, %v3454
    %v3456 = vcombine.low %v3357, %v3369
    %v3457 = vcombine.high %v3357, %v3369
    %v3459 = vunpack.c.l.s4 1983009808
    %v3460 = vunpack.c.0.s8 %v3459
    %v3461 = vlaneseq
    %v3462 = vshrl.u32 %v3461, 7
    %v3463 = vsub.s32 %v3460, %v3462
    %v3464 = vrot.slane %v3456, %v3463
    %v3466 = vunpack.c.l.s4 1983009808
    %v3467 = vunpack.c.0.s8 %v3466
    %v3468 = vlaneseq
    %v3469 = vshrl.u32 %v3468, 7
    %v3470 = vsub.s32 %v3467, %v3469
    %v3471 = vrot.slane %v3457, %v3470
    %v3472 = vcombine.low %v3448, %v3464
    %v3473 = vcombine.high %v3448, %v3464
    %v3475 = vunpack.c.l.s4 1934713408
    %v3476 = vunpack.c.0.s8 %v3475
    %v3477 = vlaneseq
    %v3478 = vshrl.u32 %v3477, 7
    %v3479 = vsub.s32 %v3476, %v3478
    %v3480 = vrot.slane %v3472, %v3479
    %v3482 = vunpack.c.l.s4 1934713408
    %v3483 = vunpack.c.0.s8 %v3482
    %v3484 = vlaneseq
    %v3485 = vshrl.u32 %v3484, 7
    %v3486 = vsub.s32 %v3483, %v3485
    %v3487 = vrot.slane %v3473, %v3486
    %v3488 = vcombine.low %v3455, %v3471
    %v3489 = vcombine.high %v3455, %v3471
    %v3491 = vunpack.c.l.s4 1934713408
    %v3492 = vunpack.c.0.s8 %v3491
    %v3493 = vlaneseq
    %v3494 = vshrl.u32 %v3493, 7
    %v3495 = vsub.s32 %v3492, %v3494
    %v3496 = vrot.slane %v3488, %v3495
    %v3498 = vunpack.c.l.s4 1934713408
    %v3499 = vunpack.c.0.s8 %v3498
    %v3500 = vlaneseq
    %v3501 = vshrl.u32 %v3500, 7
    %v3502 = vsub.s32 %v3499, %v3501
    %v3503 = vrot.slane %v3489, %v3502
    %v3504 = vcombine.high %v3480, 0.0
    %v3505 = vcombine.high %v3487, 0.0
    %v3506 = vcombine.high %v3496, 0.0
    %v3507 = vcombine.high %v3503, 0.0
    %v3508 = vcombine.low %v3412, %v3419
    %v3510 = vunpack.c.l.s4 1983009808
    %v3511 = vunpack.c.0.s8 %v3510
    %v3512 = vlaneseq
    %v3513 = vshrl.u32 %v3512, 7
    %v3514 = vsub.s32 %v3511, %v3513
    %v3515 = vrot.slane %v3508, %v3514
    %v3516 = vcombine.low %v3436, %v3437
    %v3518 = vunpack.c.l.s4 1983009808
    %v3519 = vunpack.c.0.s8 %v3518
    %v3520 = vlaneseq
    %v3521 = vshrl.u32 %v3520, 7
    %v3522 = vsub.s32 %v3519, %v3521
    %v3523 = vrot.slane %v3516, %v3522
    %v3524 = vcombine.low %v3428, %v3435
    %v3526 = vunpack.c.l.s4 1983009808
    %v3527 = vunpack.c.0.s8 %v3526
    %v3528 = vlaneseq
    %v3529 = vshrl.u32 %v3528, 7
    %v3530 = vsub.s32 %v3527, %v3529
    %v3531 = vrot.slane %v3524, %v3530
    %v3532 = vcombine.low %v3438, %v3439
    %v3534 = vunpack.c.l.s4 1983009808
    %v3535 = vunpack.c.0.s8 %v3534
    %v3536 = vlaneseq
    %v3537 = vshrl.u32 %v3536, 7
    %v3538 = vsub.s32 %v3535, %v3537
    %v3539 = vrot.slane %v3532, %v3538
    %v3540 = vcombine.low %v3515, %v3523
    %v3541 = vcombine.high %v3515, %v3523
    %v3543 = vunpack.c.l.s4 1934713408
    %v3544 = vunpack.c.0.s8 %v3543
    %v3545 = vlaneseq
    %v3546 = vshrl.u32 %v3545, 7
    %v3547 = vsub.s32 %v3544, %v3546
    %v3548 = vrot.slane %v3540, %v3547
    %v3550 = vunpack.c.l.s4 1934713408
    %v3551 = vunpack.c.0.s8 %v3550
    %v3552 = vlaneseq
    %v3553 = vshrl.u32 %v3552, 7
    %v3554 = vsub.s32 %v3551, %v3553
    %v3555 = vrot.slane %v3541, %v3554
    %v3556 = vcombine.low %v3531, %v3539
    %v3557 = vcombine.high %v3531, %v3539
    %v3559 = vunpack.c.l.s4 1934713408
    %v3560 = vunpack.c.0.s8 %v3559
    %v3561 = vlaneseq
    %v3562 = vshrl.u32 %v3561, 7
    %v3563 = vsub.s32 %v3560, %v3562
    %v3564 = vrot.slane %v3556, %v3563
    %v3566 = vunpack.c.l.s4 1934713408
    %v3567 = vunpack.c.0.s8 %v3566
    %v3568 = vlaneseq
    %v3569 = vshrl.u32 %v3568, 7
    %v3570 = vsub.s32 %v3567, %v3569
    %v3571 = vrot.slane %v3557, %v3570
    %v3572 = vcombine.low %v3548, %v3564
    %v3573 = vcombine.high %v3548, %v3564
    %v3574 = vcombine.low %v3555, %v3571
    %v3575 = vcombine.high %v3555, %v3571
    %v3576 = vcombine.low %v3480, %v3487
    %v3578 = vunpack.c.l.s4 1983009808
    %v3579 = vunpack.c.0.s8 %v3578
    %v3580 = vlaneseq
    %v3581 = vshrl.u32 %v3580, 7
    %v3582 = vsub.s32 %v3579, %v3581
    %v3583 = vrot.slane %v3576, %v3582
    %v3584 = vcombine.low %v3504, %v3505
    %v3586 = vunpack.c.l.s4 1983009808
    %v3587 = vunpack.c.0.s8 %v3586
    %v3588 = vlaneseq
    %v3589 = vshrl.u32 %v3588, 7
    %v3590 = vsub.s32 %v3587, %v3589
    %v3591 = vrot.slane %v3584, %v3590
    %v3592 = vcombine.low %v3496, %v3503
    %v3594 = vunpack.c.l.s4 1983009808
    %v3595 = vunpack.c.0.s8 %v3594
    %v3596 = vlaneseq
    %v3597 = vshrl.u32 %v3596, 7
    %v3598 = vsub.s32 %v3595, %v3597
    %v3599 = vrot.slane %v3592, %v3598
    %v3600 = vcombine.low %v3506, %v3507
    %v3602 = vunpack.c.l.s4 1983009808
    %v3603 = vunpack.c.0.s8 %v3602
    %v3604 = vlaneseq
    %v3605 = vshrl.u32 %v3604, 7
    %v3606 = vsub.s32 %v3603, %v3605
    %v3607 = vrot.slane %v3600, %v3606
    %v3608 = vcombine.low %v3583, %v3591
    %v3609 = vcombine.high %v3583, %v3591
    %v3611 = vunpack.c.l.s4 1934713408
    %v3612 = vunpack.c.0.s8 %v3611
    %v3613 = vlaneseq
    %v3614 = vshrl.u32 %v3613, 7
    %v3615 = vsub.s32 %v3612, %v3614
    %v3616 = vrot.slane %v3608, %v3615
    %v3618 = vunpack.c.l.s4 1934713408
    %v3619 = vunpack.c.0.s8 %v3618
    %v3620 = vlaneseq
    %v3621 = vshrl.u32 %v3620, 7
    %v3622 = vsub.s32 %v3619, %v3621
    %v3623 = vrot.slane %v3609, %v3622
    %v3624 = vcombine.low %v3599, %v3607
    %v3625 = vcombine.high %v3599, %v3607
    %v3627 = vunpack.c.l.s4 1934713408
    %v3628 = vunpack.c.0.s8 %v3627
    %v3629 = vlaneseq
    %v3630 = vshrl.u32 %v3629, 7
    %v3631 = vsub.s32 %v3628, %v3630
    %v3632 = vrot.slane %v3624, %v3631
    %v3634 = vunpack.c.l.s4 1934713408
    %v3635 = vunpack.c.0.s8 %v3634
    %v3636 = vlaneseq
    %v3637 = vshrl.u32 %v3636, 7
    %v3638 = vsub.s32 %v3635, %v3637
    %v3639 = vrot.slane %v3625, %v3638
    %v3640 = vcombine.low %v3616, %v3632
    %v3641 = vcombine.high %v3616, %v3632
    %v3642 = vcombine.low %v3623, %v3639
    %v3643 = vcombine.high %v3623, %v3639
    %3646 = vrot.lane.b32.xlu0 %v3269, 120
    %v3647 = vpop.permute.xlu0 %3646
    %3648 = vrot.lane.b32.xlu0 %v3274, 120
    %v3649 = vpop.permute.xlu0 %3648
    %3652 = vrot.lane.b32.xlu0 %v3269, 112
    %v3653 = vpop.permute.xlu0 %3652
    %3654 = vrot.lane.b32.xlu0 %v3274, 112
    %v3655 = vpop.permute.xlu0 %3654
    %3658 = vrot.lane.b32.xlu0 %v3269, 104
    %v3659 = vpop.permute.xlu0 %3658
    %3660 = vrot.lane.b32.xlu0 %v3274, 104
    %v3661 = vpop.permute.xlu0 %3660
    %v3664 = vcombine.low %v3269, %v3653
    %v3665 = vcombine.high %v3269, %v3653
    %v3667 = vunpack.c.l.s4 1983009808
    %v3668 = vunpack.c.0.s8 %v3667
    %v3669 = vlaneseq
    %v3670 = vshrl.u32 %v3669, 7
    %v3671 = vsub.s32 %v3668, %v3670
    %v3672 = vrot.slane %v3664, %v3671
    %v3674 = vunpack.c.l.s4 1983009808
    %v3675 = vunpack.c.0.s8 %v3674
    %v3676 = vlaneseq
    %v3677 = vshrl.u32 %v3676, 7
    %v3678 = vsub.s32 %v3675, %v3677
    %v3679 = vrot.slane %v3665, %v3678
    %v3680 = vcombine.low %v3647, %v3659
    %v3681 = vcombine.high %v3647, %v3659
    %v3683 = vunpack.c.l.s4 1983009808
    %v3684 = vunpack.c.0.s8 %v3683
    %v3685 = vlaneseq
    %v3686 = vshrl.u32 %v3685, 7
    %v3687 = vsub.s32 %v3684, %v3686
    %v3688 = vrot.slane %v3680, %v3687
    %v3690 = vunpack.c.l.s4 1983009808
    %v3691 = vunpack.c.0.s8 %v3690
    %v3692 = vlaneseq
    %v3693 = vshrl.u32 %v3692, 7
    %v3694 = vsub.s32 %v3691, %v3693
    %v3695 = vrot.slane %v3681, %v3694
    %v3696 = vcombine.low %v3672, %v3688
    %v3697 = vcombine.high %v3672, %v3688
    %v3699 = vunpack.c.l.s4 1934713408
    %v3700 = vunpack.c.0.s8 %v3699
    %v3701 = vlaneseq
    %v3702 = vshrl.u32 %v3701, 7
    %v3703 = vsub.s32 %v3700, %v3702
    %v3704 = vrot.slane %v3696, %v3703
    %v3706 = vunpack.c.l.s4 1934713408
    %v3707 = vunpack.c.0.s8 %v3706
    %v3708 = vlaneseq
    %v3709 = vshrl.u32 %v3708, 7
    %v3710 = vsub.s32 %v3707, %v3709
    %v3711 = vrot.slane %v3697, %v3710
    %v3712 = vcombine.low %v3679, %v3695
    %v3713 = vcombine.high %v3679, %v3695
    %v3715 = vunpack.c.l.s4 1934713408
    %v3716 = vunpack.c.0.s8 %v3715
    %v3717 = vlaneseq
    %v3718 = vshrl.u32 %v3717, 7
    %v3719 = vsub.s32 %v3716, %v3718
    %v3720 = vrot.slane %v3712, %v3719
    %v3722 = vunpack.c.l.s4 1934713408
    %v3723 = vunpack.c.0.s8 %v3722
    %v3724 = vlaneseq
    %v3725 = vshrl.u32 %v3724, 7
    %v3726 = vsub.s32 %v3723, %v3725
    %v3727 = vrot.slane %v3713, %v3726
    %v3728 = vcombine.high %v3704, 0.0
    %v3729 = vcombine.high %v3711, 0.0
    %v3730 = vcombine.high %v3720, 0.0
    %v3731 = vcombine.high %v3727, 0.0
    %v3732 = vcombine.low %v3274, %v3655
    %v3733 = vcombine.high %v3274, %v3655
    %v3735 = vunpack.c.l.s4 1983009808
    %v3736 = vunpack.c.0.s8 %v3735
    %v3737 = vlaneseq
    %v3738 = vshrl.u32 %v3737, 7
    %v3739 = vsub.s32 %v3736, %v3738
    %v3740 = vrot.slane %v3732, %v3739
    %v3742 = vunpack.c.l.s4 1983009808
    %v3743 = vunpack.c.0.s8 %v3742
    %v3744 = vlaneseq
    %v3745 = vshrl.u32 %v3744, 7
    %v3746 = vsub.s32 %v3743, %v3745
    %v3747 = vrot.slane %v3733, %v3746
    %v3748 = vcombine.low %v3649, %v3661
    %v3749 = vcombine.high %v3649, %v3661
    %v3751 = vunpack.c.l.s4 1983009808
    %v3752 = vunpack.c.0.s8 %v3751
    %v3753 = vlaneseq
    %v3754 = vshrl.u32 %v3753, 7
    %v3755 = vsub.s32 %v3752, %v3754
    %v3756 = vrot.slane %v3748, %v3755
    %v3758 = vunpack.c.l.s4 1983009808
    %v3759 = vunpack.c.0.s8 %v3758
    %v3760 = vlaneseq
    %v3761 = vshrl.u32 %v3760, 7
    %v3762 = vsub.s32 %v3759, %v3761
    %v3763 = vrot.slane %v3749, %v3762
    %v3764 = vcombine.low %v3740, %v3756
    %v3765 = vcombine.high %v3740, %v3756
    %v3767 = vunpack.c.l.s4 1934713408
    %v3768 = vunpack.c.0.s8 %v3767
    %v3769 = vlaneseq
    %v3770 = vshrl.u32 %v3769, 7
    %v3771 = vsub.s32 %v3768, %v3770
    %v3772 = vrot.slane %v3764, %v3771
    %v3774 = vunpack.c.l.s4 1934713408
    %v3775 = vunpack.c.0.s8 %v3774
    %v3776 = vlaneseq
    %v3777 = vshrl.u32 %v3776, 7
    %v3778 = vsub.s32 %v3775, %v3777
    %v3779 = vrot.slane %v3765, %v3778
    %v3780 = vcombine.low %v3747, %v3763
    %v3781 = vcombine.high %v3747, %v3763
    %v3783 = vunpack.c.l.s4 1934713408
    %v3784 = vunpack.c.0.s8 %v3783
    %v3785 = vlaneseq
    %v3786 = vshrl.u32 %v3785, 7
    %v3787 = vsub.s32 %v3784, %v3786
    %v3788 = vrot.slane %v3780, %v3787
    %v3790 = vunpack.c.l.s4 1934713408
    %v3791 = vunpack.c.0.s8 %v3790
    %v3792 = vlaneseq
    %v3793 = vshrl.u32 %v3792, 7
    %v3794 = vsub.s32 %v3791, %v3793
    %v3795 = vrot.slane %v3781, %v3794
    %v3796 = vcombine.high %v3772, 0.0
    %v3797 = vcombine.high %v3779, 0.0
    %v3798 = vcombine.high %v3788, 0.0
    %v3799 = vcombine.high %v3795, 0.0
    %v3800 = vcombine.low %v3704, %v3711
    %v3802 = vunpack.c.l.s4 1983009808
    %v3803 = vunpack.c.0.s8 %v3802
    %v3804 = vlaneseq
    %v3805 = vshrl.u32 %v3804, 7
    %v3806 = vsub.s32 %v3803, %v3805
    %v3807 = vrot.slane %v3800, %v3806
    %v3808 = vcombine.low %v3728, %v3729
    %v3810 = vunpack.c.l.s4 1983009808
    %v3811 = vunpack.c.0.s8 %v3810
    %v3812 = vlaneseq
    %v3813 = vshrl.u32 %v3812, 7
    %v3814 = vsub.s32 %v3811, %v3813
    %v3815 = vrot.slane %v3808, %v3814
    %v3816 = vcombine.low %v3720, %v3727
    %v3818 = vunpack.c.l.s4 1983009808
    %v3819 = vunpack.c.0.s8 %v3818
    %v3820 = vlaneseq
    %v3821 = vshrl.u32 %v3820, 7
    %v3822 = vsub.s32 %v3819, %v3821
    %v3823 = vrot.slane %v3816, %v3822
    %v3824 = vcombine.low %v3730, %v3731
    %v3826 = vunpack.c.l.s4 1983009808
    %v3827 = vunpack.c.0.s8 %v3826
    %v3828 = vlaneseq
    %v3829 = vshrl.u32 %v3828, 7
    %v3830 = vsub.s32 %v3827, %v3829
    %v3831 = vrot.slane %v3824, %v3830
    %v3832 = vcombine.low %v3807, %v3815
    %v3833 = vcombine.high %v3807, %v3815
    %v3835 = vunpack.c.l.s4 1934713408
    %v3836 = vunpack.c.0.s8 %v3835
    %v3837 = vlaneseq
    %v3838 = vshrl.u32 %v3837, 7
    %v3839 = vsub.s32 %v3836, %v3838
    %v3840 = vrot.slane %v3832, %v3839
    %v3842 = vunpack.c.l.s4 1934713408
    %v3843 = vunpack.c.0.s8 %v3842
    %v3844 = vlaneseq
    %v3845 = vshrl.u32 %v3844, 7
    %v3846 = vsub.s32 %v3843, %v3845
    %v3847 = vrot.slane %v3833, %v3846
    %v3848 = vcombine.low %v3823, %v3831
    %v3849 = vcombine.high %v3823, %v3831
    %v3851 = vunpack.c.l.s4 1934713408
    %v3852 = vunpack.c.0.s8 %v3851
    %v3853 = vlaneseq
    %v3854 = vshrl.u32 %v3853, 7
    %v3855 = vsub.s32 %v3852, %v3854
    %v3856 = vrot.slane %v3848, %v3855
    %v3858 = vunpack.c.l.s4 1934713408
    %v3859 = vunpack.c.0.s8 %v3858
    %v3860 = vlaneseq
    %v3861 = vshrl.u32 %v3860, 7
    %v3862 = vsub.s32 %v3859, %v3861
    %v3863 = vrot.slane %v3849, %v3862
    %v3864 = vcombine.low %v3840, %v3856
    %v3865 = vcombine.high %v3840, %v3856
    %v3866 = vcombine.low %v3847, %v3863
    %v3867 = vcombine.high %v3847, %v3863
    %v3868 = vcombine.low %v3772, %v3779
    %v3870 = vunpack.c.l.s4 1983009808
    %v3871 = vunpack.c.0.s8 %v3870
    %v3872 = vlaneseq
    %v3873 = vshrl.u32 %v3872, 7
    %v3874 = vsub.s32 %v3871, %v3873
    %v3875 = vrot.slane %v3868, %v3874
    %v3876 = vcombine.low %v3796, %v3797
    %v3878 = vunpack.c.l.s4 1983009808
    %v3879 = vunpack.c.0.s8 %v3878
    %v3880 = vlaneseq
    %v3881 = vshrl.u32 %v3880, 7
    %v3882 = vsub.s32 %v3879, %v3881
    %v3883 = vrot.slane %v3876, %v3882
    %v3884 = vcombine.low %v3788, %v3795
    %v3886 = vunpack.c.l.s4 1983009808
    %v3887 = vunpack.c.0.s8 %v3886
    %v3888 = vlaneseq
    %v3889 = vshrl.u32 %v3888, 7
    %v3890 = vsub.s32 %v3887, %v3889
    %v3891 = vrot.slane %v3884, %v3890
    %v3892 = vcombine.low %v3798, %v3799
    %v3894 = vunpack.c.l.s4 1983009808
    %v3895 = vunpack.c.0.s8 %v3894
    %v3896 = vlaneseq
    %v3897 = vshrl.u32 %v3896, 7
    %v3898 = vsub.s32 %v3895, %v3897
    %v3899 = vrot.slane %v3892, %v3898
    %v3900 = vcombine.low %v3875, %v3883
    %v3901 = vcombine.high %v3875, %v3883
    %v3903 = vunpack.c.l.s4 1934713408
    %v3904 = vunpack.c.0.s8 %v3903
    %v3905 = vlaneseq
    %v3906 = vshrl.u32 %v3905, 7
    %v3907 = vsub.s32 %v3904, %v3906
    %v3908 = vrot.slane %v3900, %v3907
    %v3910 = vunpack.c.l.s4 1934713408
    %v3911 = vunpack.c.0.s8 %v3910
    %v3912 = vlaneseq
    %v3913 = vshrl.u32 %v3912, 7
    %v3914 = vsub.s32 %v3911, %v3913
    %v3915 = vrot.slane %v3901, %v3914
    %v3916 = vcombine.low %v3891, %v3899
    %v3917 = vcombine.high %v3891, %v3899
    %v3919 = vunpack.c.l.s4 1934713408
    %v3920 = vunpack.c.0.s8 %v3919
    %v3921 = vlaneseq
    %v3922 = vshrl.u32 %v3921, 7
    %v3923 = vsub.s32 %v3920, %v3922
    %v3924 = vrot.slane %v3916, %v3923
    %v3926 = vunpack.c.l.s4 1934713408
    %v3927 = vunpack.c.0.s8 %v3926
    %v3928 = vlaneseq
    %v3929 = vshrl.u32 %v3928, 7
    %v3930 = vsub.s32 %v3927, %v3929
    %v3931 = vrot.slane %v3917, %v3930
    %v3932 = vcombine.low %v3908, %v3924
    %v3933 = vcombine.high %v3908, %v3924
    %v3934 = vcombine.low %v3915, %v3931
    %v3935 = vcombine.high %v3915, %v3931
    %3938 = vrot.lane.b32.xlu0 %v3344, 120
    %v3939 = vpop.permute.xlu0 %3938
    %3940 = vrot.lane.b32.xlu0 %v3349, 120
    %v3941 = vpop.permute.xlu0 %3940
    %3944 = vrot.lane.b32.xlu0 %v3344, 112
    %v3945 = vpop.permute.xlu0 %3944
    %3946 = vrot.lane.b32.xlu0 %v3349, 112
    %v3947 = vpop.permute.xlu0 %3946
    %3950 = vrot.lane.b32.xlu0 %v3344, 104
    %v3951 = vpop.permute.xlu0 %3950
    %3952 = vrot.lane.b32.xlu0 %v3349, 104
    %v3953 = vpop.permute.xlu0 %3952
    %v3956 = vcombine.low %v3344, %v3945
    %v3957 = vcombine.high %v3344, %v3945
    %v3959 = vunpack.c.l.s4 1983009808
    %v3960 = vunpack.c.0.s8 %v3959
    %v3961 = vlaneseq
    %v3962 = vshrl.u32 %v3961, 7
    %v3963 = vsub.s32 %v3960, %v3962
    %v3964 = vrot.slane %v3956, %v3963
    %v3966 = vunpack.c.l.s4 1983009808
    %v3967 = vunpack.c.0.s8 %v3966
    %v3968 = vlaneseq
    %v3969 = vshrl.u32 %v3968, 7
    %v3970 = vsub.s32 %v3967, %v3969
    %v3971 = vrot.slane %v3957, %v3970
    %v3972 = vcombine.low %v3939, %v3951
    %v3973 = vcombine.high %v3939, %v3951
    %v3975 = vunpack.c.l.s4 1983009808
    %v3976 = vunpack.c.0.s8 %v3975
    %v3977 = vlaneseq
    %v3978 = vshrl.u32 %v3977, 7
    %v3979 = vsub.s32 %v3976, %v3978
    %v3980 = vrot.slane %v3972, %v3979
    %v3982 = vunpack.c.l.s4 1983009808
    %v3983 = vunpack.c.0.s8 %v3982
    %v3984 = vlaneseq
    %v3985 = vshrl.u32 %v3984, 7
    %v3986 = vsub.s32 %v3983, %v3985
    %v3987 = vrot.slane %v3973, %v3986
    %v3988 = vcombine.low %v3964, %v3980
    %v3989 = vcombine.high %v3964, %v3980
    %v3991 = vunpack.c.l.s4 1934713408
    %v3992 = vunpack.c.0.s8 %v3991
    %v3993 = vlaneseq
    %v3994 = vshrl.u32 %v3993, 7
    %v3995 = vsub.s32 %v3992, %v3994
    %v3996 = vrot.slane %v3988, %v3995
    %v3998 = vunpack.c.l.s4 1934713408
    %v3999 = vunpack.c.0.s8 %v3998
    %v4000 = vlaneseq
    %v4001 = vshrl.u32 %v4000, 7
    %v4002 = vsub.s32 %v3999, %v4001
    %v4003 = vrot.slane %v3989, %v4002
    %v4004 = vcombine.low %v3971, %v3987
    %v4005 = vcombine.high %v3971, %v3987
    %v4007 = vunpack.c.l.s4 1934713408
    %v4008 = vunpack.c.0.s8 %v4007
    %v4009 = vlaneseq
    %v4010 = vshrl.u32 %v4009, 7
    %v4011 = vsub.s32 %v4008, %v4010
    %v4012 = vrot.slane %v4004, %v4011
    %v4014 = vunpack.c.l.s4 1934713408
    %v4015 = vunpack.c.0.s8 %v4014
    %v4016 = vlaneseq
    %v4017 = vshrl.u32 %v4016, 7
    %v4018 = vsub.s32 %v4015, %v4017
    %v4019 = vrot.slane %v4005, %v4018
    %v4020 = vcombine.high %v3996, 0.0
    %v4021 = vcombine.high %v4003, 0.0
    %v4022 = vcombine.high %v4012, 0.0
    %v4023 = vcombine.high %v4019, 0.0
    %v4024 = vcombine.low %v3349, %v3947
    %v4025 = vcombine.high %v3349, %v3947
    %v4027 = vunpack.c.l.s4 1983009808
    %v4028 = vunpack.c.0.s8 %v4027
    %v4029 = vlaneseq
    %v4030 = vshrl.u32 %v4029, 7
    %v4031 = vsub.s32 %v4028, %v4030
    %v4032 = vrot.slane %v4024, %v4031
    %v4034 = vunpack.c.l.s4 1983009808
    %v4035 = vunpack.c.0.s8 %v4034
    %v4036 = vlaneseq
    %v4037 = vshrl.u32 %v4036, 7
    %v4038 = vsub.s32 %v4035, %v4037
    %v4039 = vrot.slane %v4025, %v4038
    %v4040 = vcombine.low %v3941, %v3953
    %v4041 = vcombine.high %v3941, %v3953
    %v4043 = vunpack.c.l.s4 1983009808
    %v4044 = vunpack.c.0.s8 %v4043
    %v4045 = vlaneseq
    %v4046 = vshrl.u32 %v4045, 7
    %v4047 = vsub.s32 %v4044, %v4046
    %v4048 = vrot.slane %v4040, %v4047
    %v4050 = vunpack.c.l.s4 1983009808
    %v4051 = vunpack.c.0.s8 %v4050
    %v4052 = vlaneseq
    %v4053 = vshrl.u32 %v4052, 7
    %v4054 = vsub.s32 %v4051, %v4053
    %v4055 = vrot.slane %v4041, %v4054
    %v4056 = vcombine.low %v4032, %v4048
    %v4057 = vcombine.high %v4032, %v4048
    %v4059 = vunpack.c.l.s4 1934713408
    %v4060 = vunpack.c.0.s8 %v4059
    %v4061 = vlaneseq
    %v4062 = vshrl.u32 %v4061, 7
    %v4063 = vsub.s32 %v4060, %v4062
    %v4064 = vrot.slane %v4056, %v4063
    %v4066 = vunpack.c.l.s4 1934713408
    %v4067 = vunpack.c.0.s8 %v4066
    %v4068 = vlaneseq
    %v4069 = vshrl.u32 %v4068, 7
    %v4070 = vsub.s32 %v4067, %v4069
    %v4071 = vrot.slane %v4057, %v4070
    %v4072 = vcombine.low %v4039, %v4055
    %v4073 = vcombine.high %v4039, %v4055
    %v4075 = vunpack.c.l.s4 1934713408
    %v4076 = vunpack.c.0.s8 %v4075
    %v4077 = vlaneseq
    %v4078 = vshrl.u32 %v4077, 7
    %v4079 = vsub.s32 %v4076, %v4078
    %v4080 = vrot.slane %v4072, %v4079
    %v4082 = vunpack.c.l.s4 1934713408
    %v4083 = vunpack.c.0.s8 %v4082
    %v4084 = vlaneseq
    %v4085 = vshrl.u32 %v4084, 7
    %v4086 = vsub.s32 %v4083, %v4085
    %v4087 = vrot.slane %v4073, %v4086
    %v4088 = vcombine.high %v4064, 0.0
    %v4089 = vcombine.high %v4071, 0.0
    %v4090 = vcombine.high %v4080, 0.0
    %v4091 = vcombine.high %v4087, 0.0
    %v4092 = vcombine.low %v3996, %v4003
    %v4094 = vunpack.c.l.s4 1983009808
    %v4095 = vunpack.c.0.s8 %v4094
    %v4096 = vlaneseq
    %v4097 = vshrl.u32 %v4096, 7
    %v4098 = vsub.s32 %v4095, %v4097
    %v4099 = vrot.slane %v4092, %v4098
    %v4100 = vcombine.low %v4020, %v4021
    %v4102 = vunpack.c.l.s4 1983009808
    %v4103 = vunpack.c.0.s8 %v4102
    %v4104 = vlaneseq
    %v4105 = vshrl.u32 %v4104, 7
    %v4106 = vsub.s32 %v4103, %v4105
    %v4107 = vrot.slane %v4100, %v4106
    %v4108 = vcombine.low %v4012, %v4019
    %v4110 = vunpack.c.l.s4 1983009808
    %v4111 = vunpack.c.0.s8 %v4110
    %v4112 = vlaneseq
    %v4113 = vshrl.u32 %v4112, 7
    %v4114 = vsub.s32 %v4111, %v4113
    %v4115 = vrot.slane %v4108, %v4114
    %v4116 = vcombine.low %v4022, %v4023
    %v4118 = vunpack.c.l.s4 1983009808
    %v4119 = vunpack.c.0.s8 %v4118
    %v4120 = vlaneseq
    %v4121 = vshrl.u32 %v4120, 7
    %v4122 = vsub.s32 %v4119, %v4121
    %v4123 = vrot.slane %v4116, %v4122
    %v4124 = vcombine.low %v4099, %v4107
    %v4125 = vcombine.high %v4099, %v4107
    %v4127 = vunpack.c.l.s4 1934713408
    %v4128 = vunpack.c.0.s8 %v4127
    %v4129 = vlaneseq
    %v4130 = vshrl.u32 %v4129, 7
    %v4131 = vsub.s32 %v4128, %v4130
    %v4132 = vrot.slane %v4124, %v4131
    %v4134 = vunpack.c.l.s4 1934713408
    %v4135 = vunpack.c.0.s8 %v4134
    %v4136 = vlaneseq
    %v4137 = vshrl.u32 %v4136, 7
    %v4138 = vsub.s32 %v4135, %v4137
    %v4139 = vrot.slane %v4125, %v4138
    %v4140 = vcombine.low %v4115, %v4123
    %v4141 = vcombine.high %v4115, %v4123
    %v4143 = vunpack.c.l.s4 1934713408
    %v4144 = vunpack.c.0.s8 %v4143
    %v4145 = vlaneseq
    %v4146 = vshrl.u32 %v4145, 7
    %v4147 = vsub.s32 %v4144, %v4146
    %v4148 = vrot.slane %v4140, %v4147
    %v4150 = vunpack.c.l.s4 1934713408
    %v4151 = vunpack.c.0.s8 %v4150
    %v4152 = vlaneseq
    %v4153 = vshrl.u32 %v4152, 7
    %v4154 = vsub.s32 %v4151, %v4153
    %v4155 = vrot.slane %v4141, %v4154
    %v4156 = vcombine.low %v4132, %v4148
    %v4157 = vcombine.high %v4132, %v4148
    %v4158 = vcombine.low %v4139, %v4155
    %v4159 = vcombine.high %v4139, %v4155
    %v4160 = vcombine.low %v4064, %v4071
    %v4162 = vunpack.c.l.s4 1983009808
    %v4163 = vunpack.c.0.s8 %v4162
    %v4164 = vlaneseq
    %v4165 = vshrl.u32 %v4164, 7
    %v4166 = vsub.s32 %v4163, %v4165
    %v4167 = vrot.slane %v4160, %v4166
    %v4168 = vcombine.low %v4088, %v4089
    %v4170 = vunpack.c.l.s4 1983009808
    %v4171 = vunpack.c.0.s8 %v4170
    %v4172 = vlaneseq
    %v4173 = vshrl.u32 %v4172, 7
    %v4174 = vsub.s32 %v4171, %v4173
    %v4175 = vrot.slane %v4168, %v4174
    %v4176 = vcombine.low %v4080, %v4087
    %v4178 = vunpack.c.l.s4 1983009808
    %v4179 = vunpack.c.0.s8 %v4178
    %v4180 = vlaneseq
    %v4181 = vshrl.u32 %v4180, 7
    %v4182 = vsub.s32 %v4179, %v4181
    %v4183 = vrot.slane %v4176, %v4182
    %v4184 = vcombine.low %v4090, %v4091
    %v4186 = vunpack.c.l.s4 1983009808
    %v4187 = vunpack.c.0.s8 %v4186
    %v4188 = vlaneseq
    %v4189 = vshrl.u32 %v4188, 7
    %v4190 = vsub.s32 %v4187, %v4189
    %v4191 = vrot.slane %v4184, %v4190
    %v4192 = vcombine.low %v4167, %v4175
    %v4193 = vcombine.high %v4167, %v4175
    %v4195 = vunpack.c.l.s4 1934713408
    %v4196 = vunpack.c.0.s8 %v4195
    %v4197 = vlaneseq
    %v4198 = vshrl.u32 %v4197, 7
    %v4199 = vsub.s32 %v4196, %v4198
    %v4200 = vrot.slane %v4192, %v4199
    %v4202 = vunpack.c.l.s4 1934713408
    %v4203 = vunpack.c.0.s8 %v4202
    %v4204 = vlaneseq
    %v4205 = vshrl.u32 %v4204, 7
    %v4206 = vsub.s32 %v4203, %v4205
    %v4207 = vrot.slane %v4193, %v4206
    %v4208 = vcombine.low %v4183, %v4191
    %v4209 = vcombine.high %v4183, %v4191
    %v4211 = vunpack.c.l.s4 1934713408
    %v4212 = vunpack.c.0.s8 %v4211
    %v4213 = vlaneseq
    %v4214 = vshrl.u32 %v4213, 7
    %v4215 = vsub.s32 %v4212, %v4214
    %v4216 = vrot.slane %v4208, %v4215
    %v4218 = vunpack.c.l.s4 1934713408
    %v4219 = vunpack.c.0.s8 %v4218
    %v4220 = vlaneseq
    %v4221 = vshrl.u32 %v4220, 7
    %v4222 = vsub.s32 %v4219, %v4221
    %v4223 = vrot.slane %v4209, %v4222
    %v4224 = vcombine.low %v4200, %v4216
    %v4225 = vcombine.high %v4200, %v4216
    %v4226 = vcombine.low %v4207, %v4223
    %v4227 = vcombine.high %v4207, %v4223
    %v4229 = vsel %vm1238, %v3572, 0
    %v4232 = vsel %vm1238, %v3864, 0
    %4234 = vmatprep.subr.mxu0 0.0
    %4235 = vmatpush1.xpose.msra.mxu0 %v4232
    %4236 = vmatprep.subr.mxu0 0.0
    %4237 = vmatpush1.xpose.msra.mxu0 0.0
    %4238 = vmatprep.subr.mxu0 0.0
    %4239 = vmatpush1.xpose.msra.mxu0 0.0
    %4240 = vmatprep.subr.mxu0 0.0
    %4241 = vmatpush1.xpose.msra.mxu0 0.0
    %4242 = vmatprep.subr.mxu0 0.0
    %4243 = vmatpush1.xpose.msra.mxu0 0.0
    %4244 = vmatprep.subr.mxu0 0.0
    %4245 = vmatpush1.xpose.msra.mxu0 0.0
    %4246 = vmatprep.subr.mxu0 0.0
    %4247 = vmatpush1.xpose.msra.mxu0 0.0
    %4248 = vmatprep.subr.mxu0 0.0
    %4249 = vmatpush1.xpose.msra.mxu0 0.0
    %4250 = vmatprep.subr.mxu0 0.0
    %4251 = vmatpush1.xpose.msra.mxu0 0.0
    %4252 = vmatprep.subr.mxu0 0.0
    %4253 = vmatpush1.xpose.msra.mxu0 0.0
    %4254 = vmatprep.subr.mxu0 0.0
    %4255 = vmatpush1.xpose.msra.mxu0 0.0
    %4256 = vmatprep.subr.mxu0 0.0
    %4257 = vmatpush1.xpose.msra.mxu0 0.0
    %4258 = vmatprep.subr.mxu0 0.0
    %4259 = vmatpush1.xpose.msra.mxu0 0.0
    %4260 = vmatprep.subr.mxu0 0.0
    %4261 = vmatpush1.xpose.msra.mxu0 0.0
    %4262 = vmatprep.subr.mxu0 0.0
    %4263 = vmatpush1.xpose.msra.mxu0 0.0
    %4264 = vmatprep.subr.mxu0 0.0
    %4265 = vmatpush1.xpose.msra.mxu0 0.0
    %4266 = vmatprep.subr.mxu0 0.0
    %4267 = vmatpush1.xpose.msra.mxu0 0.0
    %4268 = vmatprep.subr.mxu0 0.0
    %4269 = vmatpush1.xpose.msra.mxu0 0.0
    %4270 = vmatprep.subr.mxu0 0.0
    %4271 = vmatpush1.xpose.msra.mxu0 0.0
    %4272 = vmatprep.subr.mxu0 0.0
    %4273 = vmatpush1.xpose.msra.mxu0 0.0
    %4274 = vmatprep.subr.mxu0 0.0
    %4275 = vmatpush1.xpose.msra.mxu0 0.0
    %4276 = vmatprep.subr.mxu0 0.0
    %4277 = vmatpush1.xpose.msra.mxu0 0.0
    %4278 = vmatprep.subr.mxu0 0.0
    %4279 = vmatpush1.xpose.msra.mxu0 0.0
    %4280 = vmatprep.subr.mxu0 0.0
    %4281 = vmatpush1.xpose.msra.mxu0 0.0
    %4282 = vmatprep.subr.mxu0 0.0
    %4283 = vmatpush1.xpose.msra.mxu0 0.0
    %4284 = vmatprep.subr.mxu0 0.0
    %4285 = vmatpush1.xpose.msra.mxu0 0.0
    %4286 = vmatprep.subr.mxu0 0.0
    %4287 = vmatpush1.xpose.msra.mxu0 0.0
    %4288 = vmatprep.subr.mxu0 0.0
    %4289 = vmatpush1.xpose.msra.mxu0 0.0
    %4290 = vmatprep.subr.mxu0 0.0
    %4291 = vmatpush1.xpose.msra.mxu0 0.0
    %4292 = vmatprep.subr.mxu0 0.0
    %4293 = vmatpush1.xpose.msra.mxu0 0.0
    %4294 = vmatprep.subr.mxu0 0.0
    %4295 = vmatpush1.xpose.msra.mxu0 0.0
    %4296 = vmatprep.subr.mxu0 0.0
    %4297 = vmatpush1.xpose.msra.mxu0 0.0
    %4298 = vmatprep.mubr.f32.mxu0 0.0
    %4299 = vmatmul.mubr.f32.gmra.mrb[0].mxu0 %v4229
    %v4300 = vpop.f32.mrb[0].mxu0
    %v4301 = vadd.f32 0.0, %v4300
    %v4302 = vpop.f32.mrb[0].mxu0
    %4303 = vdwg.mxu0
    %v4305 = vsel %vm1238, %v3573, 0
    %v4308 = vsel %vm1238, %v3865, 0
    %4310 = vmatprep.subr.mxu0 0.0
    %4311 = vmatpush1.xpose.msra.mxu0 %v4308
    %4312 = vmatprep.subr.mxu0 0.0
    %4313 = vmatpush1.xpose.msra.mxu0 0.0
    %4314 = vmatprep.subr.mxu0 0.0
    %4315 = vmatpush1.xpose.msra.mxu0 0.0
    %4316 = vmatprep.subr.mxu0 0.0
    %4317 = vmatpush1.xpose.msra.mxu0 0.0
    %4318 = vmatprep.subr.mxu0 0.0
    %4319 = vmatpush1.xpose.msra.mxu0 0.0
    %4320 = vmatprep.subr.mxu0 0.0
    %4321 = vmatpush1.xpose.msra.mxu0 0.0
    %4322 = vmatprep.subr.mxu0 0.0
    %4323 = vmatpush1.xpose.msra.mxu0 0.0
    %4324 = vmatprep.subr.mxu0 0.0
    %4325 = vmatpush1.xpose.msra.mxu0 0.0
    %4326 = vmatprep.subr.mxu0 0.0
    %4327 = vmatpush1.xpose.msra.mxu0 0.0
    %4328 = vmatprep.subr.mxu0 0.0
    %4329 = vmatpush1.xpose.msra.mxu0 0.0
    %4330 = vmatprep.subr.mxu0 0.0
    %4331 = vmatpush1.xpose.msra.mxu0 0.0
    %4332 = vmatprep.subr.mxu0 0.0
    %4333 = vmatpush1.xpose.msra.mxu0 0.0
    %4334 = vmatprep.subr.mxu0 0.0
    %4335 = vmatpush1.xpose.msra.mxu0 0.0
    %4336 = vmatprep.subr.mxu0 0.0
    %4337 = vmatpush1.xpose.msra.mxu0 0.0
    %4338 = vmatprep.subr.mxu0 0.0
    %4339 = vmatpush1.xpose.msra.mxu0 0.0
    %4340 = vmatprep.subr.mxu0 0.0
    %4341 = vmatpush1.xpose.msra.mxu0 0.0
    %4342 = vmatprep.subr.mxu0 0.0
    %4343 = vmatpush1.xpose.msra.mxu0 0.0
    %4344 = vmatprep.subr.mxu0 0.0
    %4345 = vmatpush1.xpose.msra.mxu0 0.0
    %4346 = vmatprep.subr.mxu0 0.0
    %4347 = vmatpush1.xpose.msra.mxu0 0.0
    %4348 = vmatprep.subr.mxu0 0.0
    %4349 = vmatpush1.xpose.msra.mxu0 0.0
    %4350 = vmatprep.subr.mxu0 0.0
    %4351 = vmatpush1.xpose.msra.mxu0 0.0
    %4352 = vmatprep.subr.mxu0 0.0
    %4353 = vmatpush1.xpose.msra.mxu0 0.0
    %4354 = vmatprep.subr.mxu0 0.0
    %4355 = vmatpush1.xpose.msra.mxu0 0.0
    %4356 = vmatprep.subr.mxu0 0.0
    %4357 = vmatpush1.xpose.msra.mxu0 0.0
    %4358 = vmatprep.subr.mxu0 0.0
    %4359 = vmatpush1.xpose.msra.mxu0 0.0
    %4360 = vmatprep.subr.mxu0 0.0
    %4361 = vmatpush1.xpose.msra.mxu0 0.0
    %4362 = vmatprep.subr.mxu0 0.0
    %4363 = vmatpush1.xpose.msra.mxu0 0.0
    %4364 = vmatprep.subr.mxu0 0.0
    %4365 = vmatpush1.xpose.msra.mxu0 0.0
    %4366 = vmatprep.subr.mxu0 0.0
    %4367 = vmatpush1.xpose.msra.mxu0 0.0
    %4368 = vmatprep.subr.mxu0 0.0
    %4369 = vmatpush1.xpose.msra.mxu0 0.0
    %4370 = vmatprep.subr.mxu0 0.0
    %4371 = vmatpush1.xpose.msra.mxu0 0.0
    %4372 = vmatprep.subr.mxu0 0.0
    %4373 = vmatpush1.xpose.msra.mxu0 0.0
    %4374 = vmatprep.mubr.f32.mxu0 0.0
    %4375 = vmatmul.mubr.f32.gmra.mrb[0].mxu0 %v4305
    %v4376 = vpop.f32.mrb[0].mxu0
    %v4377 = vadd.f32 0.0, %v4376
    %v4378 = vpop.f32.mrb[0].mxu0
    %4379 = vdwg.mxu0
    %v4381 = vsel %vm1238, %v3574, 0
    %v4384 = vsel %vm1238, %v3866, 0
    %4386 = vmatprep.subr.mxu0 0.0
    %4387 = vmatpush1.xpose.msra.mxu0 %v4384
    %4388 = vmatprep.subr.mxu0 0.0
    %4389 = vmatpush1.xpose.msra.mxu0 0.0
    %4390 = vmatprep.subr.mxu0 0.0
    %4391 = vmatpush1.xpose.msra.mxu0 0.0
    %4392 = vmatprep.subr.mxu0 0.0
    %4393 = vmatpush1.xpose.msra.mxu0 0.0
    %4394 = vmatprep.subr.mxu0 0.0
    %4395 = vmatpush1.xpose.msra.mxu0 0.0
    %4396 = vmatprep.subr.mxu0 0.0
    %4397 = vmatpush1.xpose.msra.mxu0 0.0
    %4398 = vmatprep.subr.mxu0 0.0
    %4399 = vmatpush1.xpose.msra.mxu0 0.0
    %4400 = vmatprep.subr.mxu0 0.0
    %4401 = vmatpush1.xpose.msra.mxu0 0.0
    %4402 = vmatprep.subr.mxu0 0.0
    %4403 = vmatpush1.xpose.msra.mxu0 0.0
    %4404 = vmatprep.subr.mxu0 0.0
    %4405 = vmatpush1.xpose.msra.mxu0 0.0
    %4406 = vmatprep.subr.mxu0 0.0
    %4407 = vmatpush1.xpose.msra.mxu0 0.0
    %4408 = vmatprep.subr.mxu0 0.0
    %4409 = vmatpush1.xpose.msra.mxu0 0.0
    %4410 = vmatprep.subr.mxu0 0.0
    %4411 = vmatpush1.xpose.msra.mxu0 0.0
    %4412 = vmatprep.subr.mxu0 0.0
    %4413 = vmatpush1.xpose.msra.mxu0 0.0
    %4414 = vmatprep.subr.mxu0 0.0
    %4415 = vmatpush1.xpose.msra.mxu0 0.0
    %4416 = vmatprep.subr.mxu0 0.0
    %4417 = vmatpush1.xpose.msra.mxu0 0.0
    %4418 = vmatprep.subr.mxu0 0.0
    %4419 = vmatpush1.xpose.msra.mxu0 0.0
    %4420 = vmatprep.subr.mxu0 0.0
    %4421 = vmatpush1.xpose.msra.mxu0 0.0
    %4422 = vmatprep.subr.mxu0 0.0
    %4423 = vmatpush1.xpose.msra.mxu0 0.0
    %4424 = vmatprep.subr.mxu0 0.0
    %4425 = vmatpush1.xpose.msra.mxu0 0.0
    %4426 = vmatprep.subr.mxu0 0.0
    %4427 = vmatpush1.xpose.msra.mxu0 0.0
    %4428 = vmatprep.subr.mxu0 0.0
    %4429 = vmatpush1.xpose.msra.mxu0 0.0
    %4430 = vmatprep.subr.mxu0 0.0
    %4431 = vmatpush1.xpose.msra.mxu0 0.0
    %4432 = vmatprep.subr.mxu0 0.0
    %4433 = vmatpush1.xpose.msra.mxu0 0.0
    %4434 = vmatprep.subr.mxu0 0.0
    %4435 = vmatpush1.xpose.msra.mxu0 0.0
    %4436 = vmatprep.subr.mxu0 0.0
    %4437 = vmatpush1.xpose.msra.mxu0 0.0
    %4438 = vmatprep.subr.mxu0 0.0
    %4439 = vmatpush1.xpose.msra.mxu0 0.0
    %4440 = vmatprep.subr.mxu0 0.0
    %4441 = vmatpush1.xpose.msra.mxu0 0.0
    %4442 = vmatprep.subr.mxu0 0.0
    %4443 = vmatpush1.xpose.msra.mxu0 0.0
    %4444 = vmatprep.subr.mxu0 0.0
    %4445 = vmatpush1.xpose.msra.mxu0 0.0
    %4446 = vmatprep.subr.mxu0 0.0
    %4447 = vmatpush1.xpose.msra.mxu0 0.0
    %4448 = vmatprep.subr.mxu0 0.0
    %4449 = vmatpush1.xpose.msra.mxu0 0.0
    %4450 = vmatprep.mubr.f32.mxu0 0.0
    %4451 = vmatmul.mubr.f32.gmra.mrb[0].mxu0 %v4381
    %v4452 = vpop.f32.mrb[0].mxu0
    %v4453 = vadd.f32 0.0, %v4452
    %v4454 = vpop.f32.mrb[0].mxu0
    %4455 = vdwg.mxu0
    %v4457 = vsel %vm1238, %v3575, 0
    %v4460 = vsel %vm1238, %v3867, 0
    %4462 = vmatprep.subr.mxu0 0.0
    %4463 = vmatpush1.xpose.msra.mxu0 %v4460
    %4464 = vmatprep.subr.mxu0 0.0
    %4465 = vmatpush1.xpose.msra.mxu0 0.0
    %4466 = vmatprep.subr.mxu0 0.0
    %4467 = vmatpush1.xpose.msra.mxu0 0.0
    %4468 = vmatprep.subr.mxu0 0.0
    %4469 = vmatpush1.xpose.msra.mxu0 0.0
    %4470 = vmatprep.subr.mxu0 0.0
    %4471 = vmatpush1.xpose.msra.mxu0 0.0
    %4472 = vmatprep.subr.mxu0 0.0
    %4473 = vmatpush1.xpose.msra.mxu0 0.0
    %4474 = vmatprep.subr.mxu0 0.0
    %4475 = vmatpush1.xpose.msra.mxu0 0.0
    %4476 = vmatprep.subr.mxu0 0.0
    %4477 = vmatpush1.xpose.msra.mxu0 0.0
    %4478 = vmatprep.subr.mxu0 0.0
    %4479 = vmatpush1.xpose.msra.mxu0 0.0
    %4480 = vmatprep.subr.mxu0 0.0
    %4481 = vmatpush1.xpose.msra.mxu0 0.0
    %4482 = vmatprep.subr.mxu0 0.0
    %4483 = vmatpush1.xpose.msra.mxu0 0.0
    %4484 = vmatprep.subr.mxu0 0.0
    %4485 = vmatpush1.xpose.msra.mxu0 0.0
    %4486 = vmatprep.subr.mxu0 0.0
    %4487 = vmatpush1.xpose.msra.mxu0 0.0
    %4488 = vmatprep.subr.mxu0 0.0
    %4489 = vmatpush1.xpose.msra.mxu0 0.0
    %4490 = vmatprep.subr.mxu0 0.0
    %4491 = vmatpush1.xpose.msra.mxu0 0.0
    %4492 = vmatprep.subr.mxu0 0.0
    %4493 = vmatpush1.xpose.msra.mxu0 0.0
    %4494 = vmatprep.subr.mxu0 0.0
    %4495 = vmatpush1.xpose.msra.mxu0 0.0
    %4496 = vmatprep.subr.mxu0 0.0
    %4497 = vmatpush1.xpose.msra.mxu0 0.0
    %4498 = vmatprep.subr.mxu0 0.0
    %4499 = vmatpush1.xpose.msra.mxu0 0.0
    %4500 = vmatprep.subr.mxu0 0.0
    %4501 = vmatpush1.xpose.msra.mxu0 0.0
    %4502 = vmatprep.subr.mxu0 0.0
    %4503 = vmatpush1.xpose.msra.mxu0 0.0
    %4504 = vmatprep.subr.mxu0 0.0
    %4505 = vmatpush1.xpose.msra.mxu0 0.0
    %4506 = vmatprep.subr.mxu0 0.0
    %4507 = vmatpush1.xpose.msra.mxu0 0.0
    %4508 = vmatprep.subr.mxu0 0.0
    %4509 = vmatpush1.xpose.msra.mxu0 0.0
    %4510 = vmatprep.subr.mxu0 0.0
    %4511 = vmatpush1.xpose.msra.mxu0 0.0
    %4512 = vmatprep.subr.mxu0 0.0
    %4513 = vmatpush1.xpose.msra.mxu0 0.0
    %4514 = vmatprep.subr.mxu0 0.0
    %4515 = vmatpush1.xpose.msra.mxu0 0.0
    %4516 = vmatprep.subr.mxu0 0.0
    %4517 = vmatpush1.xpose.msra.mxu0 0.0
    %4518 = vmatprep.subr.mxu0 0.0
    %4519 = vmatpush1.xpose.msra.mxu0 0.0
    %4520 = vmatprep.subr.mxu0 0.0
    %4521 = vmatpush1.xpose.msra.mxu0 0.0
    %4522 = vmatprep.subr.mxu0 0.0
    %4523 = vmatpush1.xpose.msra.mxu0 0.0
    %4524 = vmatprep.subr.mxu0 0.0
    %4525 = vmatpush1.xpose.msra.mxu0 0.0
    %4526 = vmatprep.mubr.f32.mxu0 0.0
    %4527 = vmatmul.mubr.f32.gmra.mrb[0].mxu0 %v4457
    %v4528 = vpop.f32.mrb[0].mxu0
    %v4529 = vadd.f32 0.0, %v4528
    %v4530 = vpop.f32.mrb[0].mxu0
    %4531 = vdwg.mxu0
    %v4533 = vsel %vm1238, %v3640, 0
    %v4536 = vsel %vm1238, %v3932, 0
    %4538 = vmatprep.subr.mxu0 0.0
    %4539 = vmatpush1.xpose.msra.mxu0 %v4536
    %4540 = vmatprep.subr.mxu0 0.0
    %4541 = vmatpush1.xpose.msra.mxu0 0.0
    %4542 = vmatprep.subr.mxu0 0.0
    %4543 = vmatpush1.xpose.msra.mxu0 0.0
    %4544 = vmatprep.subr.mxu0 0.0
    %4545 = vmatpush1.xpose.msra.mxu0 0.0
    %4546 = vmatprep.subr.mxu0 0.0
    %4547 = vmatpush1.xpose.msra.mxu0 0.0
    %4548 = vmatprep.subr.mxu0 0.0
    %4549 = vmatpush1.xpose.msra.mxu0 0.0
    %4550 = vmatprep.subr.mxu0 0.0
    %4551 = vmatpush1.xpose.msra.mxu0 0.0
    %4552 = vmatprep.subr.mxu0 0.0
    %4553 = vmatpush1.xpose.msra.mxu0 0.0
    %4554 = vmatprep.subr.mxu0 0.0
    %4555 = vmatpush1.xpose.msra.mxu0 0.0
    %4556 = vmatprep.subr.mxu0 0.0
    %4557 = vmatpush1.xpose.msra.mxu0 0.0
    %4558 = vmatprep.subr.mxu0 0.0
    %4559 = vmatpush1.xpose.msra.mxu0 0.0
    %4560 = vmatprep.subr.mxu0 0.0
    %4561 = vmatpush1.xpose.msra.mxu0 0.0
    %4562 = vmatprep.subr.mxu0 0.0
    %4563 = vmatpush1.xpose.msra.mxu0 0.0
    %4564 = vmatprep.subr.mxu0 0.0
    %4565 = vmatpush1.xpose.msra.mxu0 0.0
    %4566 = vmatprep.subr.mxu0 0.0
    %4567 = vmatpush1.xpose.msra.mxu0 0.0
    %4568 = vmatprep.subr.mxu0 0.0
    %4569 = vmatpush1.xpose.msra.mxu0 0.0
    %4570 = vmatprep.subr.mxu0 0.0
    %4571 = vmatpush1.xpose.msra.mxu0 0.0
    %4572 = vmatprep.subr.mxu0 0.0
    %4573 = vmatpush1.xpose.msra.mxu0 0.0
    %4574 = vmatprep.subr.mxu0 0.0
    %4575 = vmatpush1.xpose.msra.mxu0 0.0
    %4576 = vmatprep.subr.mxu0 0.0
    %4577 = vmatpush1.xpose.msra.mxu0 0.0
    %4578 = vmatprep.subr.mxu0 0.0
    %4579 = vmatpush1.xpose.msra.mxu0 0.0
    %4580 = vmatprep.subr.mxu0 0.0
    %4581 = vmatpush1.xpose.msra.mxu0 0.0
    %4582 = vmatprep.subr.mxu0 0.0
    %4583 = vmatpush1.xpose.msra.mxu0 0.0
    %4584 = vmatprep.subr.mxu0 0.0
    %4585 = vmatpush1.xpose.msra.mxu0 0.0
    %4586 = vmatprep.subr.mxu0 0.0
    %4587 = vmatpush1.xpose.msra.mxu0 0.0
    %4588 = vmatprep.subr.mxu0 0.0
    %4589 = vmatpush1.xpose.msra.mxu0 0.0
    %4590 = vmatprep.subr.mxu0 0.0
    %4591 = vmatpush1.xpose.msra.mxu0 0.0
    %4592 = vmatprep.subr.mxu0 0.0
    %4593 = vmatpush1.xpose.msra.mxu0 0.0
    %4594 = vmatprep.subr.mxu0 0.0
    %4595 = vmatpush1.xpose.msra.mxu0 0.0
    %4596 = vmatprep.subr.mxu0 0.0
    %4597 = vmatpush1.xpose.msra.mxu0 0.0
    %4598 = vmatprep.subr.mxu0 0.0
    %4599 = vmatpush1.xpose.msra.mxu0 0.0
    %4600 = vmatprep.subr.mxu0 0.0
    %4601 = vmatpush1.xpose.msra.mxu0 0.0
    %4602 = vmatprep.mubr.f32.mxu0 0.0
    %4603 = vmatmul.mubr.f32.gmra.mrb[0].mxu0 %v4533
    %v4604 = vpop.f32.mrb[0].mxu0
    %v4605 = vadd.f32 0.0, %v4604
    %v4606 = vpop.f32.mrb[0].mxu0
    %4607 = vdwg.mxu0
    %v4609 = vsel %vm1238, %v3641, 0
    %v4612 = vsel %vm1238, %v3933, 0
    %4614 = vmatprep.subr.mxu0 0.0
    %4615 = vmatpush1.xpose.msra.mxu0 %v4612
    %4616 = vmatprep.subr.mxu0 0.0
    %4617 = vmatpush1.xpose.msra.mxu0 0.0
    %4618 = vmatprep.subr.mxu0 0.0
    %4619 = vmatpush1.xpose.msra.mxu0 0.0
    %4620 = vmatprep.subr.mxu0 0.0
    %4621 = vmatpush1.xpose.msra.mxu0 0.0
    %4622 = vmatprep.subr.mxu0 0.0
    %4623 = vmatpush1.xpose.msra.mxu0 0.0
    %4624 = vmatprep.subr.mxu0 0.0
    %4625 = vmatpush1.xpose.msra.mxu0 0.0
    %4626 = vmatprep.subr.mxu0 0.0
    %4627 = vmatpush1.xpose.msra.mxu0 0.0
    %4628 = vmatprep.subr.mxu0 0.0
    %4629 = vmatpush1.xpose.msra.mxu0 0.0
    %4630 = vmatprep.subr.mxu0 0.0
    %4631 = vmatpush1.xpose.msra.mxu0 0.0
    %4632 = vmatprep.subr.mxu0 0.0
    %4633 = vmatpush1.xpose.msra.mxu0 0.0
    %4634 = vmatprep.subr.mxu0 0.0
    %4635 = vmatpush1.xpose.msra.mxu0 0.0
    %4636 = vmatprep.subr.mxu0 0.0
    %4637 = vmatpush1.xpose.msra.mxu0 0.0
    %4638 = vmatprep.subr.mxu0 0.0
    %4639 = vmatpush1.xpose.msra.mxu0 0.0
    %4640 = vmatprep.subr.mxu0 0.0
    %4641 = vmatpush1.xpose.msra.mxu0 0.0
    %4642 = vmatprep.subr.mxu0 0.0
    %4643 = vmatpush1.xpose.msra.mxu0 0.0
    %4644 = vmatprep.subr.mxu0 0.0
    %4645 = vmatpush1.xpose.msra.mxu0 0.0
    %4646 = vmatprep.subr.mxu0 0.0
    %4647 = vmatpush1.xpose.msra.mxu0 0.0
    %4648 = vmatprep.subr.mxu0 0.0
    %4649 = vmatpush1.xpose.msra.mxu0 0.0
    %4650 = vmatprep.subr.mxu0 0.0
    %4651 = vmatpush1.xpose.msra.mxu0 0.0
    %4652 = vmatprep.subr.mxu0 0.0
    %4653 = vmatpush1.xpose.msra.mxu0 0.0
    %4654 = vmatprep.subr.mxu0 0.0
    %4655 = vmatpush1.xpose.msra.mxu0 0.0
    %4656 = vmatprep.subr.mxu0 0.0
    %4657 = vmatpush1.xpose.msra.mxu0 0.0
    %4658 = vmatprep.subr.mxu0 0.0
    %4659 = vmatpush1.xpose.msra.mxu0 0.0
    %4660 = vmatprep.subr.mxu0 0.0
    %4661 = vmatpush1.xpose.msra.mxu0 0.0
    %4662 = vmatprep.subr.mxu0 0.0
    %4663 = vmatpush1.xpose.msra.mxu0 0.0
    %4664 = vmatprep.subr.mxu0 0.0
    %4665 = vmatpush1.xpose.msra.mxu0 0.0
    %4666 = vmatprep.subr.mxu0 0.0
    %4667 = vmatpush1.xpose.msra.mxu0 0.0
    %4668 = vmatprep.subr.mxu0 0.0
    %4669 = vmatpush1.xpose.msra.mxu0 0.0
    %4670 = vmatprep.subr.mxu0 0.0
    %4671 = vmatpush1.xpose.msra.mxu0 0.0
    %4672 = vmatprep.subr.mxu0 0.0
    %4673 = vmatpush1.xpose.msra.mxu0 0.0
    %4674 = vmatprep.subr.mxu0 0.0
    %4675 = vmatpush1.xpose.msra.mxu0 0.0
    %4676 = vmatprep.subr.mxu0 0.0
    %4677 = vmatpush1.xpose.msra.mxu0 0.0
    %4678 = vmatprep.mubr.f32.mxu0 0.0
    %4679 = vmatmul.mubr.f32.gmra.mrb[0].mxu0 %v4609
    %v4680 = vpop.f32.mrb[0].mxu0
    %v4681 = vadd.f32 0.0, %v4680
    %v4682 = vpop.f32.mrb[0].mxu0
    %4683 = vdwg.mxu0
    %v4685 = vsel %vm1238, %v3642, 0
    %v4688 = vsel %vm1238, %v3934, 0
    %4690 = vmatprep.subr.mxu0 0.0
    %4691 = vmatpush1.xpose.msra.mxu0 %v4688
    %4692 = vmatprep.subr.mxu0 0.0
    %4693 = vmatpush1.xpose.msra.mxu0 0.0
    %4694 = vmatprep.subr.mxu0 0.0
    %4695 = vmatpush1.xpose.msra.mxu0 0.0
    %4696 = vmatprep.subr.mxu0 0.0
    %4697 = vmatpush1.xpose.msra.mxu0 0.0
    %4698 = vmatprep.subr.mxu0 0.0
    %4699 = vmatpush1.xpose.msra.mxu0 0.0
    %4700 = vmatprep.subr.mxu0 0.0
    %4701 = vmatpush1.xpose.msra.mxu0 0.0
    %4702 = vmatprep.subr.mxu0 0.0
    %4703 = vmatpush1.xpose.msra.mxu0 0.0
    %4704 = vmatprep.subr.mxu0 0.0
    %4705 = vmatpush1.xpose.msra.mxu0 0.0
    %4706 = vmatprep.subr.mxu0 0.0
    %4707 = vmatpush1.xpose.msra.mxu0 0.0
    %4708 = vmatprep.subr.mxu0 0.0
    %4709 = vmatpush1.xpose.msra.mxu0 0.0
    %4710 = vmatprep.subr.mxu0 0.0
    %4711 = vmatpush1.xpose.msra.mxu0 0.0
    %4712 = vmatprep.subr.mxu0 0.0
    %4713 = vmatpush1.xpose.msra.mxu0 0.0
    %4714 = vmatprep.subr.mxu0 0.0
    %4715 = vmatpush1.xpose.msra.mxu0 0.0
    %4716 = vmatprep.subr.mxu0 0.0
    %4717 = vmatpush1.xpose.msra.mxu0 0.0
    %4718 = vmatprep.subr.mxu0 0.0
    %4719 = vmatpush1.xpose.msra.mxu0 0.0
    %4720 = vmatprep.subr.mxu0 0.0
    %4721 = vmatpush1.xpose.msra.mxu0 0.0
    %4722 = vmatprep.subr.mxu0 0.0
    %4723 = vmatpush1.xpose.msra.mxu0 0.0
    %4724 = vmatprep.subr.mxu0 0.0
    %4725 = vmatpush1.xpose.msra.mxu0 0.0
    %4726 = vmatprep.subr.mxu0 0.0
    %4727 = vmatpush1.xpose.msra.mxu0 0.0
    %4728 = vmatprep.subr.mxu0 0.0
    %4729 = vmatpush1.xpose.msra.mxu0 0.0
    %4730 = vmatprep.subr.mxu0 0.0
    %4731 = vmatpush1.xpose.msra.mxu0 0.0
    %4732 = vmatprep.subr.mxu0 0.0
    %4733 = vmatpush1.xpose.msra.mxu0 0.0
    %4734 = vmatprep.subr.mxu0 0.0
    %4735 = vmatpush1.xpose.msra.mxu0 0.0
    %4736 = vmatprep.subr.mxu0 0.0
    %4737 = vmatpush1.xpose.msra.mxu0 0.0
    %4738 = vmatprep.subr.mxu0 0.0
    %4739 = vmatpush1.xpose.msra.mxu0 0.0
    %4740 = vmatprep.subr.mxu0 0.0
    %4741 = vmatpush1.xpose.msra.mxu0 0.0
    %4742 = vmatprep.subr.mxu0 0.0
    %4743 = vmatpush1.xpose.msra.mxu0 0.0
    %4744 = vmatprep.subr.mxu0 0.0
    %4745 = vmatpush1.xpose.msra.mxu0 0.0
    %4746 = vmatprep.subr.mxu0 0.0
    %4747 = vmatpush1.xpose.msra.mxu0 0.0
    %4748 = vmatprep.subr.mxu0 0.0
    %4749 = vmatpush1.xpose.msra.mxu0 0.0
    %4750 = vmatprep.subr.mxu0 0.0
    %4751 = vmatpush1.xpose.msra.mxu0 0.0
    %4752 = vmatprep.subr.mxu0 0.0
    %4753 = vmatpush1.xpose.msra.mxu0 0.0
    %4754 = vmatprep.mubr.f32.mxu0 0.0
    %4755 = vmatmul.mubr.f32.gmra.mrb[0].mxu0 %v4685
    %v4756 = vpop.f32.mrb[0].mxu0
    %v4757 = vadd.f32 0.0, %v4756
    %v4758 = vpop.f32.mrb[0].mxu0
    %4759 = vdwg.mxu0
    %v4761 = vsel %vm1238, %v3643, 0
    %v4764 = vsel %vm1238, %v3935, 0
    %4766 = vmatprep.subr.mxu0 0.0
    %4767 = vmatpush1.xpose.msra.mxu0 %v4764
    %4768 = vmatprep.subr.mxu0 0.0
    %4769 = vmatpush1.xpose.msra.mxu0 0.0
    %4770 = vmatprep.subr.mxu0 0.0
    %4771 = vmatpush1.xpose.msra.mxu0 0.0
    %4772 = vmatprep.subr.mxu0 0.0
    %4773 = vmatpush1.xpose.msra.mxu0 0.0
    %4774 = vmatprep.subr.mxu0 0.0
    %4775 = vmatpush1.xpose.msra.mxu0 0.0
    %4776 = vmatprep.subr.mxu0 0.0
    %4777 = vmatpush1.xpose.msra.mxu0 0.0
    %4778 = vmatprep.subr.mxu0 0.0
    %4779 = vmatpush1.xpose.msra.mxu0 0.0
    %4780 = vmatprep.subr.mxu0 0.0
    %4781 = vmatpush1.xpose.msra.mxu0 0.0
    %4782 = vmatprep.subr.mxu0 0.0
    %4783 = vmatpush1.xpose.msra.mxu0 0.0
    %4784 = vmatprep.subr.mxu0 0.0
    %4785 = vmatpush1.xpose.msra.mxu0 0.0
    %4786 = vmatprep.subr.mxu0 0.0
    %4787 = vmatpush1.xpose.msra.mxu0 0.0
    %4788 = vmatprep.subr.mxu0 0.0
    %4789 = vmatpush1.xpose.msra.mxu0 0.0
    %4790 = vmatprep.subr.mxu0 0.0
    %4791 = vmatpush1.xpose.msra.mxu0 0.0
    %4792 = vmatprep.subr.mxu0 0.0
    %4793 = vmatpush1.xpose.msra.mxu0 0.0
    %4794 = vmatprep.subr.mxu0 0.0
    %4795 = vmatpush1.xpose.msra.mxu0 0.0
    %4796 = vmatprep.subr.mxu0 0.0
    %4797 = vmatpush1.xpose.msra.mxu0 0.0
    %4798 = vmatprep.subr.mxu0 0.0
    %4799 = vmatpush1.xpose.msra.mxu0 0.0
    %4800 = vmatprep.subr.mxu0 0.0
    %4801 = vmatpush1.xpose.msra.mxu0 0.0
    %4802 = vmatprep.subr.mxu0 0.0
    %4803 = vmatpush1.xpose.msra.mxu0 0.0
    %4804 = vmatprep.subr.mxu0 0.0
    %4805 = vmatpush1.xpose.msra.mxu0 0.0
    %4806 = vmatprep.subr.mxu0 0.0
    %4807 = vmatpush1.xpose.msra.mxu0 0.0
    %4808 = vmatprep.subr.mxu0 0.0
    %4809 = vmatpush1.xpose.msra.mxu0 0.0
    %4810 = vmatprep.subr.mxu0 0.0
    %4811 = vmatpush1.xpose.msra.mxu0 0.0
    %4812 = vmatprep.subr.mxu0 0.0
    %4813 = vmatpush1.xpose.msra.mxu0 0.0
    %4814 = vmatprep.subr.mxu0 0.0
    %4815 = vmatpush1.xpose.msra.mxu0 0.0
    %4816 = vmatprep.subr.mxu0 0.0
    %4817 = vmatpush1.xpose.msra.mxu0 0.0
    %4818 = vmatprep.subr.mxu0 0.0
    %4819 = vmatpush1.xpose.msra.mxu0 0.0
    %4820 = vmatprep.subr.mxu0 0.0
    %4821 = vmatpush1.xpose.msra.mxu0 0.0
    %4822 = vmatprep.subr.mxu0 0.0
    %4823 = vmatpush1.xpose.msra.mxu0 0.0
    %4824 = vmatprep.subr.mxu0 0.0
    %4825 = vmatpush1.xpose.msra.mxu0 0.0
    %4826 = vmatprep.subr.mxu0 0.0
    %4827 = vmatpush1.xpose.msra.mxu0 0.0
    %4828 = vmatprep.subr.mxu0 0.0
    %4829 = vmatpush1.xpose.msra.mxu0 0.0
    %4830 = vmatprep.mubr.f32.mxu0 0.0
    %4831 = vmatmul.mubr.f32.gmra.mrb[0].mxu0 %v4761
    %v4832 = vpop.f32.mrb[0].mxu0
    %v4833 = vadd.f32 0.0, %v4832
    %v4834 = vpop.f32.mrb[0].mxu0
    %4835 = vdwg.mxu0
    %v4836 = vmul.f32 %v4301, 0.35355338
    %v4837 = vmul.f32 %v4377, 0.35355338
    %v4838 = vmul.f32 %v4453, 0.35355338
    %v4839 = vmul.f32 %v4529, 0.35355338
    %v4840 = vmul.f32 %v4605, 0.35355338
    %v4841 = vmul.f32 %v4681, 0.35355338
    %v4842 = vmul.f32 %v4757, 0.35355338
    %v4843 = vmul.f32 %v4833, 0.35355338
    %v4844 = vmul.f32 %v4836, 1.442695
    %v4845 = vpow.pop %v4844
    %v4846 = vmul.f32 %v4837, 1.442695
    %v4847 = vpow.pop %v4846
    %v4848 = vmul.f32 %v4838, 1.442695
    %v4849 = vpow.pop %v4848
    %v4850 = vmul.f32 %v4839, 1.442695
    %v4851 = vpow.pop %v4850
    %v4852 = vmul.f32 %v4840, 1.442695
    %v4853 = vpow.pop %v4852
    %v4854 = vmul.f32 %v4841, 1.442695
    %v4855 = vpow.pop %v4854
    %v4856 = vmul.f32 %v4842, 1.442695
    %v4857 = vpow.pop %v4856
    %v4858 = vmul.f32 %v4843, 1.442695
    %v4859 = vpow.pop %v4858
    %v4860 = vsel %vm1238, %v4845, 0.0
    %4861 = vadd.xlane.f32.xlu0 %v4860
    %v4862 = vpop.xlane.xlu0 %4861
    %v4863 = vsel %vm1238, %v4847, 0.0
    %4864 = vadd.xlane.f32.xlu0 %v4863
    %v4865 = vpop.xlane.xlu0 %4864
    %v4866 = vsel %vm1238, %v4849, 0.0
    %4867 = vadd.xlane.f32.xlu0 %v4866
    %v4868 = vpop.xlane.xlu0 %4867
    %v4869 = vsel %vm1238, %v4851, 0.0
    %4870 = vadd.xlane.f32.xlu0 %v4869
    %v4871 = vpop.xlane.xlu0 %4870
    %v4872 = vsel %vm1238, %v4853, 0.0
    %4873 = vadd.xlane.f32.xlu0 %v4872
    %v4874 = vpop.xlane.xlu0 %4873
    %v4875 = vsel %vm1238, %v4855, 0.0
    %4876 = vadd.xlane.f32.xlu0 %v4875
    %v4877 = vpop.xlane.xlu0 %4876
    %v4878 = vsel %vm1238, %v4857, 0.0
    %4879 = vadd.xlane.f32.xlu0 %v4878
    %v4880 = vpop.xlane.xlu0 %4879
    %v4881 = vsel %vm1238, %v4859, 0.0
    %4882 = vadd.xlane.f32.xlu0 %v4881
    %v4883 = vpop.xlane.xlu0 %4882
    %v4884 = vrcp.pop %v4862
    %v4885 = vrcp.pop %v4865
    %v4886 = vrcp.pop %v4868
    %v4887 = vrcp.pop %v4871
    %v4888 = vrcp.pop %v4874
    %v4889 = vrcp.pop %v4877
    %v4890 = vrcp.pop %v4880
    %v4891 = vrcp.pop %v4883
    %v4892 = vmul.f32 %v4845, %v4884
    %v4893 = vmul.f32 %v4847, %v4885
    %v4894 = vmul.f32 %v4849, %v4886
    %v4895 = vmul.f32 %v4851, %v4887
    %v4896 = vmul.f32 %v4853, %v4888
    %v4897 = vmul.f32 %v4855, %v4889
    %v4898 = vmul.f32 %v4857, %v4890
    %v4899 = vmul.f32 %v4859, %v4891
    %v4901 = vsel %vm1238, %v4892, 0
    %4903 = vmatprep.subr.mxu0 0.0
    %4904 = vmatpush1.msra.mxu0 %v4156
    %4905 = vmatprep.subr.mxu0 0.0
    %4906 = vmatpush1.msra.mxu0 0.0
    %4907 = vmatprep.subr.mxu0 0.0
    %4908 = vmatpush1.msra.mxu0 0.0
    %4909 = vmatprep.subr.mxu0 0.0
    %4910 = vmatpush1.msra.mxu0 0.0
    %4911 = vmatprep.subr.mxu0 0.0
    %4912 = vmatpush1.msra.mxu0 0.0
    %4913 = vmatprep.subr.mxu0 0.0
    %4914 = vmatpush1.msra.mxu0 0.0
    %4915 = vmatprep.subr.mxu0 0.0
    %4916 = vmatpush1.msra.mxu0 0.0
    %4917 = vmatprep.subr.mxu0 0.0
    %4918 = vmatpush1.msra.mxu0 0.0
    %4919 = vmatprep.subr.mxu0 0.0
    %4920 = vmatpush1.msra.mxu0 0.0
    %4921 = vmatprep.subr.mxu0 0.0
    %4922 = vmatpush1.msra.mxu0 0.0
    %4923 = vmatprep.subr.mxu0 0.0
    %4924 = vmatpush1.msra.mxu0 0.0
    %4925 = vmatprep.subr.mxu0 0.0
    %4926 = vmatpush1.msra.mxu0 0.0
    %4927 = vmatprep.subr.mxu0 0.0
    %4928 = vmatpush1.msra.mxu0 0.0
    %4929 = vmatprep.subr.mxu0 0.0
    %4930 = vmatpush1.msra.mxu0 0.0
    %4931 = vmatprep.subr.mxu0 0.0
    %4932 = vmatpush1.msra.mxu0 0.0
    %4933 = vmatprep.subr.mxu0 0.0
    %4934 = vmatpush1.msra.mxu0 0.0
    %4935 = vmatprep.subr.mxu0 0.0
    %4936 = vmatpush1.msra.mxu0 0.0
    %4937 = vmatprep.subr.mxu0 0.0
    %4938 = vmatpush1.msra.mxu0 0.0
    %4939 = vmatprep.subr.mxu0 0.0
    %4940 = vmatpush1.msra.mxu0 0.0
    %4941 = vmatprep.subr.mxu0 0.0
    %4942 = vmatpush1.msra.mxu0 0.0
    %4943 = vmatprep.subr.mxu0 0.0
    %4944 = vmatpush1.msra.mxu0 0.0
    %4945 = vmatprep.subr.mxu0 0.0
    %4946 = vmatpush1.msra.mxu0 0.0
    %4947 = vmatprep.subr.mxu0 0.0
    %4948 = vmatpush1.msra.mxu0 0.0
    %4949 = vmatprep.subr.mxu0 0.0
    %4950 = vmatpush1.msra.mxu0 0.0
    %4951 = vmatprep.subr.mxu0 0.0
    %4952 = vmatpush1.msra.mxu0 0.0
    %4953 = vmatprep.subr.mxu0 0.0
    %4954 = vmatpush1.msra.mxu0 0.0
    %4955 = vmatprep.subr.mxu0 0.0
    %4956 = vmatpush1.msra.mxu0 0.0
    %4957 = vmatprep.subr.mxu0 0.0
    %4958 = vmatpush1.msra.mxu0 0.0
    %4959 = vmatprep.subr.mxu0 0.0
    %4960 = vmatpush1.msra.mxu0 0.0
    %4961 = vmatprep.subr.mxu0 0.0
    %4962 = vmatpush1.msra.mxu0 0.0
    %4963 = vmatprep.subr.mxu0 0.0
    %4964 = vmatpush1.msra.mxu0 0.0
    %4965 = vmatprep.subr.mxu0 0.0
    %4966 = vmatpush1.msra.mxu0 0.0
    %4967 = vmatprep.mubr.f32.mxu0 0.0
    %4968 = vmatmul.mubr.f32.gmra.mrb[0].mxu0 %v4901
    %v4969 = vpop.f32.mrb[0].mxu0
    %v4970 = vadd.f32 0.0, %v4969
    %v4971 = vpop.f32.mrb[0].mxu0
    %4972 = vdwg.mxu0
    %v4974 = vsel %vm1238, %v4893, 0
    %4976 = vmatprep.subr.mxu0 0.0
    %4977 = vmatpush1.msra.mxu0 %v4157
    %4978 = vmatprep.subr.mxu0 0.0
    %4979 = vmatpush1.msra.mxu0 0.0
    %4980 = vmatprep.subr.mxu0 0.0
    %4981 = vmatpush1.msra.mxu0 0.0
    %4982 = vmatprep.subr.mxu0 0.0
    %4983 = vmatpush1.msra.mxu0 0.0
    %4984 = vmatprep.subr.mxu0 0.0
    %4985 = vmatpush1.msra.mxu0 0.0
    %4986 = vmatprep.subr.mxu0 0.0
    %4987 = vmatpush1.msra.mxu0 0.0
    %4988 = vmatprep.subr.mxu0 0.0
    %4989 = vmatpush1.msra.mxu0 0.0
    %4990 = vmatprep.subr.mxu0 0.0
    %4991 = vmatpush1.msra.mxu0 0.0
    %4992 = vmatprep.subr.mxu0 0.0
    %4993 = vmatpush1.msra.mxu0 0.0
    %4994 = vmatprep.subr.mxu0 0.0
    %4995 = vmatpush1.msra.mxu0 0.0
    %4996 = vmatprep.subr.mxu0 0.0
    %4997 = vmatpush1.msra.mxu0 0.0
    %4998 = vmatprep.subr.mxu0 0.0
    %4999 = vmatpush1.msra.mxu0 0.0
    %5000 = vmatprep.subr.mxu0 0.0
    %5001 = vmatpush1.msra.mxu0 0.0
    %5002 = vmatprep.subr.mxu0 0.0
    %5003 = vmatpush1.msra.mxu0 0.0
    %5004 = vmatprep.subr.mxu0 0.0
    %5005 = vmatpush1.msra.mxu0 0.0
    %5006 = vmatprep.subr.mxu0 0.0
    %5007 = vmatpush1.msra.mxu0 0.0
    %5008 = vmatprep.subr.mxu0 0.0
    %5009 = vmatpush1.msra.mxu0 0.0
    %5010 = vmatprep.subr.mxu0 0.0
    %5011 = vmatpush1.msra.mxu0 0.0
    %5012 = vmatprep.subr.mxu0 0.0
    %5013 = vmatpush1.msra.mxu0 0.0
    %5014 = vmatprep.subr.mxu0 0.0
    %5015 = vmatpush1.msra.mxu0 0.0
    %5016 = vmatprep.subr.mxu0 0.0
    %5017 = vmatpush1.msra.mxu0 0.0
    %5018 = vmatprep.subr.mxu0 0.0
    %5019 = vmatpush1.msra.mxu0 0.0
    %5020 = vmatprep.subr.mxu0 0.0
    %5021 = vmatpush1.msra.mxu0 0.0
    %5022 = vmatprep.subr.mxu0 0.0
    %5023 = vmatpush1.msra.mxu0 0.0
    %5024 = vmatprep.subr.mxu0 0.0
    %5025 = vmatpush1.msra.mxu0 0.0
    %5026 = vmatprep.subr.mxu0 0.0
    %5027 = vmatpush1.msra.mxu0 0.0
    %5028 = vmatprep.subr.mxu0 0.0
    %5029 = vmatpush1.msra.mxu0 0.0
    %5030 = vmatprep.subr.mxu0 0.0
    %5031 = vmatpush1.msra.mxu0 0.0
    %5032 = vmatprep.subr.mxu0 0.0
    %5033 = vmatpush1.msra.mxu0 0.0
    %5034 = vmatprep.subr.mxu0 0.0
    %5035 = vmatpush1.msra.mxu0 0.0
    %5036 = vmatprep.subr.mxu0 0.0
    %5037 = vmatpush1.msra.mxu0 0.0
    %5038 = vmatprep.subr.mxu0 0.0
    %5039 = vmatpush1.msra.mxu0 0.0
    %5040 = vmatprep.mubr.f32.mxu0 0.0
    %5041 = vmatmul.mubr.f32.gmra.mrb[0].mxu0 %v4974
    %v5042 = vpop.f32.mrb[0].mxu0
    %v5043 = vadd.f32 0.0, %v5042
    %v5044 = vpop.f32.mrb[0].mxu0
    %5045 = vdwg.mxu0
    %v5047 = vsel %vm1238, %v4894, 0
    %5049 = vmatprep.subr.mxu0 0.0
    %5050 = vmatpush1.msra.mxu0 %v4158
    %5051 = vmatprep.subr.mxu0 0.0
    %5052 = vmatpush1.msra.mxu0 0.0
    %5053 = vmatprep.subr.mxu0 0.0
    %5054 = vmatpush1.msra.mxu0 0.0
    %5055 = vmatprep.subr.mxu0 0.0
    %5056 = vmatpush1.msra.mxu0 0.0
    %5057 = vmatprep.subr.mxu0 0.0
    %5058 = vmatpush1.msra.mxu0 0.0
    %5059 = vmatprep.subr.mxu0 0.0
    %5060 = vmatpush1.msra.mxu0 0.0
    %5061 = vmatprep.subr.mxu0 0.0
    %5062 = vmatpush1.msra.mxu0 0.0
    %5063 = vmatprep.subr.mxu0 0.0
    %5064 = vmatpush1.msra.mxu0 0.0
    %5065 = vmatprep.subr.mxu0 0.0
    %5066 = vmatpush1.msra.mxu0 0.0
    %5067 = vmatprep.subr.mxu0 0.0
    %5068 = vmatpush1.msra.mxu0 0.0
    %5069 = vmatprep.subr.mxu0 0.0
    %5070 = vmatpush1.msra.mxu0 0.0
    %5071 = vmatprep.subr.mxu0 0.0
    %5072 = vmatpush1.msra.mxu0 0.0
    %5073 = vmatprep.subr.mxu0 0.0
    %5074 = vmatpush1.msra.mxu0 0.0
    %5075 = vmatprep.subr.mxu0 0.0
    %5076 = vmatpush1.msra.mxu0 0.0
    %5077 = vmatprep.subr.mxu0 0.0
    %5078 = vmatpush1.msra.mxu0 0.0
    %5079 = vmatprep.subr.mxu0 0.0
    %5080 = vmatpush1.msra.mxu0 0.0
    %5081 = vmatprep.subr.mxu0 0.0
    %5082 = vmatpush1.msra.mxu0 0.0
    %5083 = vmatprep.subr.mxu0 0.0
    %5084 = vmatpush1.msra.mxu0 0.0
    %5085 = vmatprep.subr.mxu0 0.0
    %5086 = vmatpush1.msra.mxu0 0.0
    %5087 = vmatprep.subr.mxu0 0.0
    %5088 = vmatpush1.msra.mxu0 0.0
    %5089 = vmatprep.subr.mxu0 0.0
    %5090 = vmatpush1.msra.mxu0 0.0
    %5091 = vmatprep.subr.mxu0 0.0
    %5092 = vmatpush1.msra.mxu0 0.0
    %5093 = vmatprep.subr.mxu0 0.0
    %5094 = vmatpush1.msra.mxu0 0.0
    %5095 = vmatprep.subr.mxu0 0.0
    %5096 = vmatpush1.msra.mxu0 0.0
    %5097 = vmatprep.subr.mxu0 0.0
    %5098 = vmatpush1.msra.mxu0 0.0
    %5099 = vmatprep.subr.mxu0 0.0
    %5100 = vmatpush1.msra.mxu0 0.0
    %5101 = vmatprep.subr.mxu0 0.0
    %5102 = vmatpush1.msra.mxu0 0.0
    %5103 = vmatprep.subr.mxu0 0.0
    %5104 = vmatpush1.msra.mxu0 0.0
    %5105 = vmatprep.subr.mxu0 0.0
    %5106 = vmatpush1.msra.mxu0 0.0
    %5107 = vmatprep.subr.mxu0 0.0
    %5108 = vmatpush1.msra.mxu0 0.0
    %5109 = vmatprep.subr.mxu0 0.0
    %5110 = vmatpush1.msra.mxu0 0.0
    %5111 = vmatprep.subr.mxu0 0.0
    %5112 = vmatpush1.msra.mxu0 0.0
    %5113 = vmatprep.mubr.f32.mxu0 0.0
    %5114 = vmatmul.mubr.f32.gmra.mrb[0].mxu0 %v5047
    %v5115 = vpop.f32.mrb[0].mxu0
    %v5116 = vadd.f32 0.0, %v5115
    %v5117 = vpop.f32.mrb[0].mxu0
    %5118 = vdwg.mxu0
    %v5120 = vsel %vm1238, %v4895, 0
    %5122 = vmatprep.subr.mxu0 0.0
    %5123 = vmatpush1.msra.mxu0 %v4159
    %5124 = vmatprep.subr.mxu0 0.0
    %5125 = vmatpush1.msra.mxu0 0.0
    %5126 = vmatprep.subr.mxu0 0.0
    %5127 = vmatpush1.msra.mxu0 0.0
    %5128 = vmatprep.subr.mxu0 0.0
    %5129 = vmatpush1.msra.mxu0 0.0
    %5130 = vmatprep.subr.mxu0 0.0
    %5131 = vmatpush1.msra.mxu0 0.0
    %5132 = vmatprep.subr.mxu0 0.0
    %5133 = vmatpush1.msra.mxu0 0.0
    %5134 = vmatprep.subr.mxu0 0.0
    %5135 = vmatpush1.msra.mxu0 0.0
    %5136 = vmatprep.subr.mxu0 0.0
    %5137 = vmatpush1.msra.mxu0 0.0
    %5138 = vmatprep.subr.mxu0 0.0
    %5139 = vmatpush1.msra.mxu0 0.0
    %5140 = vmatprep.subr.mxu0 0.0
    %5141 = vmatpush1.msra.mxu0 0.0
    %5142 = vmatprep.subr.mxu0 0.0
    %5143 = vmatpush1.msra.mxu0 0.0
    %5144 = vmatprep.subr.mxu0 0.0
    %5145 = vmatpush1.msra.mxu0 0.0
    %5146 = vmatprep.subr.mxu0 0.0
    %5147 = vmatpush1.msra.mxu0 0.0
    %5148 = vmatprep.subr.mxu0 0.0
    %5149 = vmatpush1.msra.mxu0 0.0
    %5150 = vmatprep.subr.mxu0 0.0
    %5151 = vmatpush1.msra.mxu0 0.0
    %5152 = vmatprep.subr.mxu0 0.0
    %5153 = vmatpush1.msra.mxu0 0.0
    %5154 = vmatprep.subr.mxu0 0.0
    %5155 = vmatpush1.msra.mxu0 0.0
    %5156 = vmatprep.subr.mxu0 0.0
    %5157 = vmatpush1.msra.mxu0 0.0
    %5158 = vmatprep.subr.mxu0 0.0
    %5159 = vmatpush1.msra.mxu0 0.0
    %5160 = vmatprep.subr.mxu0 0.0
    %5161 = vmatpush1.msra.mxu0 0.0
    %5162 = vmatprep.subr.mxu0 0.0
    %5163 = vmatpush1.msra.mxu0 0.0
    %5164 = vmatprep.subr.mxu0 0.0
    %5165 = vmatpush1.msra.mxu0 0.0
    %5166 = vmatprep.subr.mxu0 0.0
    %5167 = vmatpush1.msra.mxu0 0.0
    %5168 = vmatprep.subr.mxu0 0.0
    %5169 = vmatpush1.msra.mxu0 0.0
    %5170 = vmatprep.subr.mxu0 0.0
    %5171 = vmatpush1.msra.mxu0 0.0
    %5172 = vmatprep.subr.mxu0 0.0
    %5173 = vmatpush1.msra.mxu0 0.0
    %5174 = vmatprep.subr.mxu0 0.0
    %5175 = vmatpush1.msra.mxu0 0.0
    %5176 = vmatprep.subr.mxu0 0.0
    %5177 = vmatpush1.msra.mxu0 0.0
    %5178 = vmatprep.subr.mxu0 0.0
    %5179 = vmatpush1.msra.mxu0 0.0
    %5180 = vmatprep.subr.mxu0 0.0
    %5181 = vmatpush1.msra.mxu0 0.0
    %5182 = vmatprep.subr.mxu0 0.0
    %5183 = vmatpush1.msra.mxu0 0.0
    %5184 = vmatprep.subr.mxu0 0.0
    %5185 = vmatpush1.msra.mxu0 0.0
    %5186 = vmatprep.mubr.f32.mxu0 0.0
    %5187 = vmatmul.mubr.f32.gmra.mrb[0].mxu0 %v5120
    %v5188 = vpop.f32.mrb[0].mxu0
    %v5189 = vadd.f32 0.0, %v5188
    %v5190 = vpop.f32.mrb[0].mxu0
    %5191 = vdwg.mxu0
    %v5193 = vsel %vm1238, %v4896, 0
    %5195 = vmatprep.subr.mxu0 0.0
    %5196 = vmatpush1.msra.mxu0 %v4224
    %5197 = vmatprep.subr.mxu0 0.0
    %5198 = vmatpush1.msra.mxu0 0.0
    %5199 = vmatprep.subr.mxu0 0.0
    %5200 = vmatpush1.msra.mxu0 0.0
    %5201 = vmatprep.subr.mxu0 0.0
    %5202 = vmatpush1.msra.mxu0 0.0
    %5203 = vmatprep.subr.mxu0 0.0
    %5204 = vmatpush1.msra.mxu0 0.0
    %5205 = vmatprep.subr.mxu0 0.0
    %5206 = vmatpush1.msra.mxu0 0.0
    %5207 = vmatprep.subr.mxu0 0.0
    %5208 = vmatpush1.msra.mxu0 0.0
    %5209 = vmatprep.subr.mxu0 0.0
    %5210 = vmatpush1.msra.mxu0 0.0
    %5211 = vmatprep.subr.mxu0 0.0
    %5212 = vmatpush1.msra.mxu0 0.0
    %5213 = vmatprep.subr.mxu0 0.0
    %5214 = vmatpush1.msra.mxu0 0.0
    %5215 = vmatprep.subr.mxu0 0.0
    %5216 = vmatpush1.msra.mxu0 0.0
    %5217 = vmatprep.subr.mxu0 0.0
    %5218 = vmatpush1.msra.mxu0 0.0
    %5219 = vmatprep.subr.mxu0 0.0
    %5220 = vmatpush1.msra.mxu0 0.0
    %5221 = vmatprep.subr.mxu0 0.0
    %5222 = vmatpush1.msra.mxu0 0.0
    %5223 = vmatprep.subr.mxu0 0.0
    %5224 = vmatpush1.msra.mxu0 0.0
    %5225 = vmatprep.subr.mxu0 0.0
    %5226 = vmatpush1.msra.mxu0 0.0
    %5227 = vmatprep.subr.mxu0 0.0
    %5228 = vmatpush1.msra.mxu0 0.0
    %5229 = vmatprep.subr.mxu0 0.0
    %5230 = vmatpush1.msra.mxu0 0.0
    %5231 = vmatprep.subr.mxu0 0.0
    %5232 = vmatpush1.msra.mxu0 0.0
    %5233 = vmatprep.subr.mxu0 0.0
    %5234 = vmatpush1.msra.mxu0 0.0
    %5235 = vmatprep.subr.mxu0 0.0
    %5236 = vmatpush1.msra.mxu0 0.0
    %5237 = vmatprep.subr.mxu0 0.0
    %5238 = vmatpush1.msra.mxu0 0.0
    %5239 = vmatprep.subr.mxu0 0.0
    %5240 = vmatpush1.msra.mxu0 0.0
    %5241 = vmatprep.subr.mxu0 0.0
    %5242 = vmatpush1.msra.mxu0 0.0
    %5243 = vmatprep.subr.mxu0 0.0
    %5244 = vmatpush1.msra.mxu0 0.0
    %5245 = vmatprep.subr.mxu0 0.0
    %5246 = vmatpush1.msra.mxu0 0.0
    %5247 = vmatprep.subr.mxu0 0.0
    %5248 = vmatpush1.msra.mxu0 0.0
    %5249 = vmatprep.subr.mxu0 0.0
    %5250 = vmatpush1.msra.mxu0 0.0
    %5251 = vmatprep.subr.mxu0 0.0
    %5252 = vmatpush1.msra.mxu0 0.0
    %5253 = vmatprep.subr.mxu0 0.0
    %5254 = vmatpush1.msra.mxu0 0.0
    %5255 = vmatprep.subr.mxu0 0.0
    %5256 = vmatpush1.msra.mxu0 0.0
    %5257 = vmatprep.subr.mxu0 0.0
    %5258 = vmatpush1.msra.mxu0 0.0
    %5259 = vmatprep.mubr.f32.mxu0 0.0
    %5260 = vmatmul.mubr.f32.gmra.mrb[0].mxu0 %v5193
    %v5261 = vpop.f32.mrb[0].mxu0
    %v5262 = vadd.f32 0.0, %v5261
    %v5263 = vpop.f32.mrb[0].mxu0
    %5264 = vdwg.mxu0
    %v5266 = vsel %vm1238, %v4897, 0
    %5268 = vmatprep.subr.mxu0 0.0
    %5269 = vmatpush1.msra.mxu0 %v4225
    %5270 = vmatprep.subr.mxu0 0.0
    %5271 = vmatpush1.msra.mxu0 0.0
    %5272 = vmatprep.subr.mxu0 0.0
    %5273 = vmatpush1.msra.mxu0 0.0
    %5274 = vmatprep.subr.mxu0 0.0
    %5275 = vmatpush1.msra.mxu0 0.0
    %5276 = vmatprep.subr.mxu0 0.0
    %5277 = vmatpush1.msra.mxu0 0.0
    %5278 = vmatprep.subr.mxu0 0.0
    %5279 = vmatpush1.msra.mxu0 0.0
    %5280 = vmatprep.subr.mxu0 0.0
    %5281 = vmatpush1.msra.mxu0 0.0
    %5282 = vmatprep.subr.mxu0 0.0
    %5283 = vmatpush1.msra.mxu0 0.0
    %5284 = vmatprep.subr.mxu0 0.0
    %5285 = vmatpush1.msra.mxu0 0.0
    %5286 = vmatprep.subr.mxu0 0.0
    %5287 = vmatpush1.msra.mxu0 0.0
    %5288 = vmatprep.subr.mxu0 0.0
    %5289 = vmatpush1.msra.mxu0 0.0
    %5290 = vmatprep.subr.mxu0 0.0
    %5291 = vmatpush1.msra.mxu0 0.0
    %5292 = vmatprep.subr.mxu0 0.0
    %5293 = vmatpush1.msra.mxu0 0.0
    %5294 = vmatprep.subr.mxu0 0.0
    %5295 = vmatpush1.msra.mxu0 0.0
    %5296 = vmatprep.subr.mxu0 0.0
    %5297 = vmatpush1.msra.mxu0 0.0
    %5298 = vmatprep.subr.mxu0 0.0
    %5299 = vmatpush1.msra.mxu0 0.0
    %5300 = vmatprep.subr.mxu0 0.0
    %5301 = vmatpush1.msra.mxu0 0.0
    %5302 = vmatprep.subr.mxu0 0.0
    %5303 = vmatpush1.msra.mxu0 0.0
    %5304 = vmatprep.subr.mxu0 0.0
    %5305 = vmatpush1.msra.mxu0 0.0
    %5306 = vmatprep.subr.mxu0 0.0
    %5307 = vmatpush1.msra.mxu0 0.0
    %5308 = vmatprep.subr.mxu0 0.0
    %5309 = vmatpush1.msra.mxu0 0.0
    %5310 = vmatprep.subr.mxu0 0.0
    %5311 = vmatpush1.msra.mxu0 0.0
    %5312 = vmatprep.subr.mxu0 0.0
    %5313 = vmatpush1.msra.mxu0 0.0
    %5314 = vmatprep.subr.mxu0 0.0
    %5315 = vmatpush1.msra.mxu0 0.0
    %5316 = vmatprep.subr.mxu0 0.0
    %5317 = vmatpush1.msra.mxu0 0.0
    %5318 = vmatprep.subr.mxu0 0.0
    %5319 = vmatpush1.msra.mxu0 0.0
    %5320 = vmatprep.subr.mxu0 0.0
    %5321 = vmatpush1.msra.mxu0 0.0
    %5322 = vmatprep.subr.mxu0 0.0
    %5323 = vmatpush1.msra.mxu0 0.0
    %5324 = vmatprep.subr.mxu0 0.0
    %5325 = vmatpush1.msra.mxu0 0.0
    %5326 = vmatprep.subr.mxu0 0.0
    %5327 = vmatpush1.msra.mxu0 0.0
    %5328 = vmatprep.subr.mxu0 0.0
    %5329 = vmatpush1.msra.mxu0 0.0
    %5330 = vmatprep.subr.mxu0 0.0
    %5331 = vmatpush1.msra.mxu0 0.0
    %5332 = vmatprep.mubr.f32.mxu0 0.0
    %5333 = vmatmul.mubr.f32.gmra.mrb[0].mxu0 %v5266
    %v5334 = vpop.f32.mrb[0].mxu0
    %v5335 = vadd.f32 0.0, %v5334
    %v5336 = vpop.f32.mrb[0].mxu0
    %5337 = vdwg.mxu0
    %v5339 = vsel %vm1238, %v4898, 0
    %5341 = vmatprep.subr.mxu0 0.0
    %5342 = vmatpush1.msra.mxu0 %v4226
    %5343 = vmatprep.subr.mxu0 0.0
    %5344 = vmatpush1.msra.mxu0 0.0
    %5345 = vmatprep.subr.mxu0 0.0
    %5346 = vmatpush1.msra.mxu0 0.0
    %5347 = vmatprep.subr.mxu0 0.0
    %5348 = vmatpush1.msra.mxu0 0.0
    %5349 = vmatprep.subr.mxu0 0.0
    %5350 = vmatpush1.msra.mxu0 0.0
    %5351 = vmatprep.subr.mxu0 0.0
    %5352 = vmatpush1.msra.mxu0 0.0
    %5353 = vmatprep.subr.mxu0 0.0
    %5354 = vmatpush1.msra.mxu0 0.0
    %5355 = vmatprep.subr.mxu0 0.0
    %5356 = vmatpush1.msra.mxu0 0.0
    %5357 = vmatprep.subr.mxu0 0.0
    %5358 = vmatpush1.msra.mxu0 0.0
    %5359 = vmatprep.subr.mxu0 0.0
    %5360 = vmatpush1.msra.mxu0 0.0
    %5361 = vmatprep.subr.mxu0 0.0
    %5362 = vmatpush1.msra.mxu0 0.0
    %5363 = vmatprep.subr.mxu0 0.0
    %5364 = vmatpush1.msra.mxu0 0.0
    %5365 = vmatprep.subr.mxu0 0.0
    %5366 = vmatpush1.msra.mxu0 0.0
    %5367 = vmatprep.subr.mxu0 0.0
    %5368 = vmatpush1.msra.mxu0 0.0
    %5369 = vmatprep.subr.mxu0 0.0
    %5370 = vmatpush1.msra.mxu0 0.0
    %5371 = vmatprep.subr.mxu0 0.0
    %5372 = vmatpush1.msra.mxu0 0.0
    %5373 = vmatprep.subr.mxu0 0.0
    %5374 = vmatpush1.msra.mxu0 0.0
    %5375 = vmatprep.subr.mxu0 0.0
    %5376 = vmatpush1.msra.mxu0 0.0
    %5377 = vmatprep.subr.mxu0 0.0
    %5378 = vmatpush1.msra.mxu0 0.0
    %5379 = vmatprep.subr.mxu0 0.0
    %5380 = vmatpush1.msra.mxu0 0.0
    %5381 = vmatprep.subr.mxu0 0.0
    %5382 = vmatpush1.msra.mxu0 0.0
    %5383 = vmatprep.subr.mxu0 0.0
    %5384 = vmatpush1.msra.mxu0 0.0
    %5385 = vmatprep.subr.mxu0 0.0
    %5386 = vmatpush1.msra.mxu0 0.0
    %5387 = vmatprep.subr.mxu0 0.0
    %5388 = vmatpush1.msra.mxu0 0.0
    %5389 = vmatprep.subr.mxu0 0.0
    %5390 = vmatpush1.msra.mxu0 0.0
    %5391 = vmatprep.subr.mxu0 0.0
    %5392 = vmatpush1.msra.mxu0 0.0
    %5393 = vmatprep.subr.mxu0 0.0
    %5394 = vmatpush1.msra.mxu0 0.0
    %5395 = vmatprep.subr.mxu0 0.0
    %5396 = vmatpush1.msra.mxu0 0.0
    %5397 = vmatprep.subr.mxu0 0.0
    %5398 = vmatpush1.msra.mxu0 0.0
    %5399 = vmatprep.subr.mxu0 0.0
    %5400 = vmatpush1.msra.mxu0 0.0
    %5401 = vmatprep.subr.mxu0 0.0
    %5402 = vmatpush1.msra.mxu0 0.0
    %5403 = vmatprep.subr.mxu0 0.0
    %5404 = vmatpush1.msra.mxu0 0.0
    %5405 = vmatprep.mubr.f32.mxu0 0.0
    %5406 = vmatmul.mubr.f32.gmra.mrb[0].mxu0 %v5339
    %v5407 = vpop.f32.mrb[0].mxu0
    %v5408 = vadd.f32 0.0, %v5407
    %v5409 = vpop.f32.mrb[0].mxu0
    %5410 = vdwg.mxu0
    %v5412 = vsel %vm1238, %v4899, 0
    %5414 = vmatprep.subr.mxu0 0.0
    %5415 = vmatpush1.msra.mxu0 %v4227
    %5416 = vmatprep.subr.mxu0 0.0
    %5417 = vmatpush1.msra.mxu0 0.0
    %5418 = vmatprep.subr.mxu0 0.0
    %5419 = vmatpush1.msra.mxu0 0.0
    %5420 = vmatprep.subr.mxu0 0.0
    %5421 = vmatpush1.msra.mxu0 0.0
    %5422 = vmatprep.subr.mxu0 0.0
    %5423 = vmatpush1.msra.mxu0 0.0
    %5424 = vmatprep.subr.mxu0 0.0
    %5425 = vmatpush1.msra.mxu0 0.0
    %5426 = vmatprep.subr.mxu0 0.0
    %5427 = vmatpush1.msra.mxu0 0.0
    %5428 = vmatprep.subr.mxu0 0.0
    %5429 = vmatpush1.msra.mxu0 0.0
    %5430 = vmatprep.subr.mxu0 0.0
    %5431 = vmatpush1.msra.mxu0 0.0
    %5432 = vmatprep.subr.mxu0 0.0
    %5433 = vmatpush1.msra.mxu0 0.0
    %5434 = vmatprep.subr.mxu0 0.0
    %5435 = vmatpush1.msra.mxu0 0.0
    %5436 = vmatprep.subr.mxu0 0.0
    %5437 = vmatpush1.msra.mxu0 0.0
    %5438 = vmatprep.subr.mxu0 0.0
    %5439 = vmatpush1.msra.mxu0 0.0
    %5440 = vmatprep.subr.mxu0 0.0
    %5441 = vmatpush1.msra.mxu0 0.0
    %5442 = vmatprep.subr.mxu0 0.0
    %5443 = vmatpush1.msra.mxu0 0.0
    %5444 = vmatprep.subr.mxu0 0.0
    %5445 = vmatpush1.msra.mxu0 0.0
    %5446 = vmatprep.subr.mxu0 0.0
    %5447 = vmatpush1.msra.mxu0 0.0
    %5448 = vmatprep.subr.mxu0 0.0
    %5449 = vmatpush1.msra.mxu0 0.0
    %5450 = vmatprep.subr.mxu0 0.0
    %5451 = vmatpush1.msra.mxu0 0.0
    %5452 = vmatprep.subr.mxu0 0.0
    %5453 = vmatpush1.msra.mxu0 0.0
    %5454 = vmatprep.subr.mxu0 0.0
    %5455 = vmatpush1.msra.mxu0 0.0
    %5456 = vmatprep.subr.mxu0 0.0
    %5457 = vmatpush1.msra.mxu0 0.0
    %5458 = vmatprep.subr.mxu0 0.0
    %5459 = vmatpush1.msra.mxu0 0.0
    %5460 = vmatprep.subr.mxu0 0.0
    %5461 = vmatpush1.msra.mxu0 0.0
    %5462 = vmatprep.subr.mxu0 0.0
    %5463 = vmatpush1.msra.mxu0 0.0
    %5464 = vmatprep.subr.mxu0 0.0
    %5465 = vmatpush1.msra.mxu0 0.0
    %5466 = vmatprep.subr.mxu0 0.0
    %5467 = vmatpush1.msra.mxu0 0.0
    %5468 = vmatprep.subr.mxu0 0.0
    %5469 = vmatpush1.msra.mxu0 0.0
    %5470 = vmatprep.subr.mxu0 0.0
    %5471 = vmatpush1.msra.mxu0 0.0
    %5472 = vmatprep.subr.mxu0 0.0
    %5473 = vmatpush1.msra.mxu0 0.0
    %5474 = vmatprep.subr.mxu0 0.0
    %5475 = vmatpush1.msra.mxu0 0.0
    %5476 = vmatprep.subr.mxu0 0.0
    %5477 = vmatpush1.msra.mxu0 0.0
    %5478 = vmatprep.mubr.f32.mxu0 0.0
    %5479 = vmatmul.mubr.f32.gmra.mrb[0].mxu0 %v5412
    %v5480 = vpop.f32.mrb[0].mxu0
    %v5481 = vadd.f32 0.0, %v5480
    %v5482 = vpop.f32.mrb[0].mxu0
    %5483 = vdwg.mxu0
    %v5485 = vsel %vm1238, %v4970, 0
    %v5488 = vsel %vm1238, %v5262, 0
    %5490 = vmatprep.subr.mxu0 0.0
    %5491 = vmatpush1.msra.mxu0 %v3073
    %5492 = vmatprep.subr.mxu0 0.0
    %5493 = vmatpush1.msra.mxu0 0.0
    %5494 = vmatprep.subr.mxu0 0.0
    %5495 = vmatpush1.msra.mxu0 0.0
    %5496 = vmatprep.subr.mxu0 0.0
    %5497 = vmatpush1.msra.mxu0 0.0
    %5498 = vmatprep.subr.mxu0 0.0
    %5499 = vmatpush1.msra.mxu0 0.0
    %5500 = vmatprep.subr.mxu0 0.0
    %5501 = vmatpush1.msra.mxu0 0.0
    %5502 = vmatprep.subr.mxu0 0.0
    %5503 = vmatpush1.msra.mxu0 0.0
    %5504 = vmatprep.subr.mxu0 0.0
    %5505 = vmatpush1.msra.mxu0 0.0
    %5506 = vmatprep.subr.mxu0 0.0
    %5507 = vmatpush1.msra.mxu0 0.0
    %5508 = vmatprep.subr.mxu0 0.0
    %5509 = vmatpush1.msra.mxu0 0.0
    %5510 = vmatprep.subr.mxu0 0.0
    %5511 = vmatpush1.msra.mxu0 0.0
    %5512 = vmatprep.subr.mxu0 0.0
    %5513 = vmatpush1.msra.mxu0 0.0
    %5514 = vmatprep.subr.mxu0 0.0
    %5515 = vmatpush1.msra.mxu0 0.0
    %5516 = vmatprep.subr.mxu0 0.0
    %5517 = vmatpush1.msra.mxu0 0.0
    %5518 = vmatprep.subr.mxu0 0.0
    %5519 = vmatpush1.msra.mxu0 0.0
    %5520 = vmatprep.subr.mxu0 0.0
    %5521 = vmatpush1.msra.mxu0 0.0
    %5522 = vmatprep.subr.mxu0 0.0
    %5523 = vmatpush1.msra.mxu0 0.0
    %5524 = vmatprep.subr.mxu0 0.0
    %5525 = vmatpush1.msra.mxu0 0.0
    %5526 = vmatprep.subr.mxu0 0.0
    %5527 = vmatpush1.msra.mxu0 0.0
    %5528 = vmatprep.subr.mxu0 0.0
    %5529 = vmatpush1.msra.mxu0 0.0
    %5530 = vmatprep.subr.mxu0 0.0
    %5531 = vmatpush1.msra.mxu0 0.0
    %5532 = vmatprep.subr.mxu0 0.0
    %5533 = vmatpush1.msra.mxu0 0.0
    %5534 = vmatprep.subr.mxu0 0.0
    %5535 = vmatpush1.msra.mxu0 0.0
    %5536 = vmatprep.subr.mxu0 0.0
    %5537 = vmatpush1.msra.mxu0 0.0
    %5538 = vmatprep.subr.mxu0 0.0
    %5539 = vmatpush1.msra.mxu0 0.0
    %5540 = vmatprep.subr.mxu0 0.0
    %5541 = vmatpush1.msra.mxu0 0.0
    %5542 = vmatprep.subr.mxu0 0.0
    %5543 = vmatpush1.msra.mxu0 0.0
    %5544 = vmatprep.subr.mxu0 0.0
    %5545 = vmatpush1.msra.mxu0 0.0
    %5546 = vmatprep.subr.mxu0 0.0
    %5547 = vmatpush1.msra.mxu0 0.0
    %5548 = vmatprep.subr.mxu0 0.0
    %5549 = vmatpush1.msra.mxu0 0.0
    %5550 = vmatprep.subr.mxu0 0.0
    %5551 = vmatpush1.msra.mxu0 0.0
    %5552 = vmatprep.subr.mxu0 0.0
    %5553 = vmatpush1.msra.mxu0 0.0
    %5554 = vmatprep.mubr.f32.mxu0 0.0
    %5555 = vmatmul.mubr.f32.gmra.mrb[0].mxu0 %v5485
    %v5556 = vpop.f32.mrb[0].mxu0
    %v5557 = vadd.f32 0.0, %v5556
    %v5558 = vpop.f32.mrb[0].mxu0
    %5559 = vmatprep.mubr.f32.mxu0 0.0
    %5560 = vmatmul.mubr.f32.gmra.mrb[0].mxu0 %v5488
    %v5561 = vpop.f32.mrb[0].mxu0
    %v5562 = vadd.f32 0.0, %v5561
    %v5563 = vpop.f32.mrb[0].mxu0
    %5564 = vdwg.mxu0
    %v5565 = vadd.f32 %v3101, %v5557
    %v5566 = vadd.f32 %v3102, %v5562
    %v5568 = vsel %vm1238, %v5043, 0
    %v5571 = vsel %vm1238, %v5335, 0
    %5573 = vmatprep.subr.mxu0 0.0
    %5574 = vmatpush1.msra.mxu0 %v3074
    %5575 = vmatprep.subr.mxu0 0.0
    %5576 = vmatpush1.msra.mxu0 0.0
    %5577 = vmatprep.subr.mxu0 0.0
    %5578 = vmatpush1.msra.mxu0 0.0
    %5579 = vmatprep.subr.mxu0 0.0
    %5580 = vmatpush1.msra.mxu0 0.0
    %5581 = vmatprep.subr.mxu0 0.0
    %5582 = vmatpush1.msra.mxu0 0.0
    %5583 = vmatprep.subr.mxu0 0.0
    %5584 = vmatpush1.msra.mxu0 0.0
    %5585 = vmatprep.subr.mxu0 0.0
    %5586 = vmatpush1.msra.mxu0 0.0
    %5587 = vmatprep.subr.mxu0 0.0
    %5588 = vmatpush1.msra.mxu0 0.0
    %5589 = vmatprep.subr.mxu0 0.0
    %5590 = vmatpush1.msra.mxu0 0.0
    %5591 = vmatprep.subr.mxu0 0.0
    %5592 = vmatpush1.msra.mxu0 0.0
    %5593 = vmatprep.subr.mxu0 0.0
    %5594 = vmatpush1.msra.mxu0 0.0
    %5595 = vmatprep.subr.mxu0 0.0
    %5596 = vmatpush1.msra.mxu0 0.0
    %5597 = vmatprep.subr.mxu0 0.0
    %5598 = vmatpush1.msra.mxu0 0.0
    %5599 = vmatprep.subr.mxu0 0.0
    %5600 = vmatpush1.msra.mxu0 0.0
    %5601 = vmatprep.subr.mxu0 0.0
    %5602 = vmatpush1.msra.mxu0 0.0
    %5603 = vmatprep.subr.mxu0 0.0
    %5604 = vmatpush1.msra.mxu0 0.0
    %5605 = vmatprep.subr.mxu0 0.0
    %5606 = vmatpush1.msra.mxu0 0.0
    %5607 = vmatprep.subr.mxu0 0.0
    %5608 = vmatpush1.msra.mxu0 0.0
    %5609 = vmatprep.subr.mxu0 0.0
    %5610 = vmatpush1.msra.mxu0 0.0
    %5611 = vmatprep.subr.mxu0 0.0
    %5612 = vmatpush1.msra.mxu0 0.0
    %5613 = vmatprep.subr.mxu0 0.0
    %5614 = vmatpush1.msra.mxu0 0.0
    %5615 = vmatprep.subr.mxu0 0.0
    %5616 = vmatpush1.msra.mxu0 0.0
    %5617 = vmatprep.subr.mxu0 0.0
    %5618 = vmatpush1.msra.mxu0 0.0
    %5619 = vmatprep.subr.mxu0 0.0
    %5620 = vmatpush1.msra.mxu0 0.0
    %5621 = vmatprep.subr.mxu0 0.0
    %5622 = vmatpush1.msra.mxu0 0.0
    %5623 = vmatprep.subr.mxu0 0.0
    %5624 = vmatpush1.msra.mxu0 0.0
    %5625 = vmatprep.subr.mxu0 0.0
    %5626 = vmatpush1.msra.mxu0 0.0
    %5627 = vmatprep.subr.mxu0 0.0
    %5628 = vmatpush1.msra.mxu0 0.0
    %5629 = vmatprep.subr.mxu0 0.0
    %5630 = vmatpush1.msra.mxu0 0.0
    %5631 = vmatprep.subr.mxu0 0.0
    %5632 = vmatpush1.msra.mxu0 0.0
    %5633 = vmatprep.subr.mxu0 0.0
    %5634 = vmatpush1.msra.mxu0 0.0
    %5635 = vmatprep.subr.mxu0 0.0
    %5636 = vmatpush1.msra.mxu0 0.0
    %5637 = vmatprep.mubr.f32.mxu0 0.0
    %5638 = vmatmul.mubr.f32.gmra.mrb[0].mxu0 %v5568
    %v5639 = vpop.f32.mrb[0].mxu0
    %v5640 = vadd.f32 0.0, %v5639
    %v5641 = vpop.f32.mrb[0].mxu0
    %5642 = vmatprep.mubr.f32.mxu0 0.0
    %5643 = vmatmul.mubr.f32.gmra.mrb[0].mxu0 %v5571
    %v5644 = vpop.f32.mrb[0].mxu0
    %v5645 = vadd.f32 0.0, %v5644
    %v5646 = vpop.f32.mrb[0].mxu0
    %5647 = vdwg.mxu0
    %v5648 = vadd.f32 %v5565, %v5640
    %v5649 = vadd.f32 %v5566, %v5645
    %v5651 = vsel %vm1238, %v5116, 0
    %v5654 = vsel %vm1238, %v5408, 0
    %5656 = vmatprep.subr.mxu0 0.0
    %5657 = vmatpush1.msra.mxu0 %v3075
    %5658 = vmatprep.subr.mxu0 0.0
    %5659 = vmatpush1.msra.mxu0 0.0
    %5660 = vmatprep.subr.mxu0 0.0
    %5661 = vmatpush1.msra.mxu0 0.0
    %5662 = vmatprep.subr.mxu0 0.0
    %5663 = vmatpush1.msra.mxu0 0.0
    %5664 = vmatprep.subr.mxu0 0.0
    %5665 = vmatpush1.msra.mxu0 0.0
    %5666 = vmatprep.subr.mxu0 0.0
    %5667 = vmatpush1.msra.mxu0 0.0
    %5668 = vmatprep.subr.mxu0 0.0
    %5669 = vmatpush1.msra.mxu0 0.0
    %5670 = vmatprep.subr.mxu0 0.0
    %5671 = vmatpush1.msra.mxu0 0.0
    %5672 = vmatprep.subr.mxu0 0.0
    %5673 = vmatpush1.msra.mxu0 0.0
    %5674 = vmatprep.subr.mxu0 0.0
    %5675 = vmatpush1.msra.mxu0 0.0
    %5676 = vmatprep.subr.mxu0 0.0
    %5677 = vmatpush1.msra.mxu0 0.0
    %5678 = vmatprep.subr.mxu0 0.0
    %5679 = vmatpush1.msra.mxu0 0.0
    %5680 = vmatprep.subr.mxu0 0.0
    %5681 = vmatpush1.msra.mxu0 0.0
    %5682 = vmatprep.subr.mxu0 0.0
    %5683 = vmatpush1.msra.mxu0 0.0
    %5684 = vmatprep.subr.mxu0 0.0
    %5685 = vmatpush1.msra.mxu0 0.0
    %5686 = vmatprep.subr.mxu0 0.0
    %5687 = vmatpush1.msra.mxu0 0.0
    %5688 = vmatprep.subr.mxu0 0.0
    %5689 = vmatpush1.msra.mxu0 0.0
    %5690 = vmatprep.subr.mxu0 0.0
    %5691 = vmatpush1.msra.mxu0 0.0
    %5692 = vmatprep.subr.mxu0 0.0
    %5693 = vmatpush1.msra.mxu0 0.0
    %5694 = vmatprep.subr.mxu0 0.0
    %5695 = vmatpush1.msra.mxu0 0.0
    %5696 = vmatprep.subr.mxu0 0.0
    %5697 = vmatpush1.msra.mxu0 0.0
    %5698 = vmatprep.subr.mxu0 0.0
    %5699 = vmatpush1.msra.mxu0 0.0
    %5700 = vmatprep.subr.mxu0 0.0
    %5701 = vmatpush1.msra.mxu0 0.0
    %5702 = vmatprep.subr.mxu0 0.0
    %5703 = vmatpush1.msra.mxu0 0.0
    %5704 = vmatprep.subr.mxu0 0.0
    %5705 = vmatpush1.msra.mxu0 0.0
    %5706 = vmatprep.subr.mxu0 0.0
    %5707 = vmatpush1.msra.mxu0 0.0
    %5708 = vmatprep.subr.mxu0 0.0
    %5709 = vmatpush1.msra.mxu0 0.0
    %5710 = vmatprep.subr.mxu0 0.0
    %5711 = vmatpush1.msra.mxu0 0.0
    %5712 = vmatprep.subr.mxu0 0.0
    %5713 = vmatpush1.msra.mxu0 0.0
    %5714 = vmatprep.subr.mxu0 0.0
    %5715 = vmatpush1.msra.mxu0 0.0
    %5716 = vmatprep.subr.mxu0 0.0
    %5717 = vmatpush1.msra.mxu0 0.0
    %5718 = vmatprep.subr.mxu0 0.0
    %5719 = vmatpush1.msra.mxu0 0.0
    %5720 = vmatprep.mubr.f32.mxu0 0.0
    %5721 = vmatmul.mubr.f32.gmra.mrb[0].mxu0 %v5651
    %v5722 = vpop.f32.mrb[0].mxu0
    %v5723 = vadd.f32 0.0, %v5722
    %v5724 = vpop.f32.mrb[0].mxu0
    %5725 = vmatprep.mubr.f32.mxu0 0.0
    %5726 = vmatmul.mubr.f32.gmra.mrb[0].mxu0 %v5654
    %v5727 = vpop.f32.mrb[0].mxu0
    %v5728 = vadd.f32 0.0, %v5727
    %v5729 = vpop.f32.mrb[0].mxu0
    %5730 = vdwg.mxu0
    %v5731 = vadd.f32 %v5648, %v5723
    %v5732 = vadd.f32 %v5649, %v5728
    %v5734 = vsel %vm1238, %v5189, 0
    %v5737 = vsel %vm1238, %v5481, 0
    %5739 = vmatprep.subr.mxu0 0.0
    %5740 = vmatpush1.msra.mxu0 %v3076
    %5741 = vmatprep.subr.mxu0 0.0
    %5742 = vmatpush1.msra.mxu0 0.0
    %5743 = vmatprep.subr.mxu0 0.0
    %5744 = vmatpush1.msra.mxu0 0.0
    %5745 = vmatprep.subr.mxu0 0.0
    %5746 = vmatpush1.msra.mxu0 0.0
    %5747 = vmatprep.subr.mxu0 0.0
    %5748 = vmatpush1.msra.mxu0 0.0
    %5749 = vmatprep.subr.mxu0 0.0
    %5750 = vmatpush1.msra.mxu0 0.0
    %5751 = vmatprep.subr.mxu0 0.0
    %5752 = vmatpush1.msra.mxu0 0.0
    %5753 = vmatprep.subr.mxu0 0.0
    %5754 = vmatpush1.msra.mxu0 0.0
    %5755 = vmatprep.subr.mxu0 0.0
    %5756 = vmatpush1.msra.mxu0 0.0
    %5757 = vmatprep.subr.mxu0 0.0
    %5758 = vmatpush1.msra.mxu0 0.0
    %5759 = vmatprep.subr.mxu0 0.0
    %5760 = vmatpush1.msra.mxu0 0.0
    %5761 = vmatprep.subr.mxu0 0.0
    %5762 = vmatpush1.msra.mxu0 0.0
    %5763 = vmatprep.subr.mxu0 0.0
    %5764 = vmatpush1.msra.mxu0 0.0
    %5765 = vmatprep.subr.mxu0 0.0
    %5766 = vmatpush1.msra.mxu0 0.0
    %5767 = vmatprep.subr.mxu0 0.0
    %5768 = vmatpush1.msra.mxu0 0.0
    %5769 = vmatprep.subr.mxu0 0.0
    %5770 = vmatpush1.msra.mxu0 0.0
    %5771 = vmatprep.subr.mxu0 0.0
    %5772 = vmatpush1.msra.mxu0 0.0
    %5773 = vmatprep.subr.mxu0 0.0
    %5774 = vmatpush1.msra.mxu0 0.0
    %5775 = vmatprep.subr.mxu0 0.0
    %5776 = vmatpush1.msra.mxu0 0.0
    %5777 = vmatprep.subr.mxu0 0.0
    %5778 = vmatpush1.msra.mxu0 0.0
    %5779 = vmatprep.subr.mxu0 0.0
    %5780 = vmatpush1.msra.mxu0 0.0
    %5781 = vmatprep.subr.mxu0 0.0
    %5782 = vmatpush1.msra.mxu0 0.0
    %5783 = vmatprep.subr.mxu0 0.0
    %5784 = vmatpush1.msra.mxu0 0.0
    %5785 = vmatprep.subr.mxu0 0.0
    %5786 = vmatpush1.msra.mxu0 0.0
    %5787 = vmatprep.subr.mxu0 0.0
    %5788 = vmatpush1.msra.mxu0 0.0
    %5789 = vmatprep.subr.mxu0 0.0
    %5790 = vmatpush1.msra.mxu0 0.0
    %5791 = vmatprep.subr.mxu0 0.0
    %5792 = vmatpush1.msra.mxu0 0.0
    %5793 = vmatprep.subr.mxu0 0.0
    %5794 = vmatpush1.msra.mxu0 0.0
    %5795 = vmatprep.subr.mxu0 0.0
    %5796 = vmatpush1.msra.mxu0 0.0
    %5797 = vmatprep.subr.mxu0 0.0
    %5798 = vmatpush1.msra.mxu0 0.0
    %5799 = vmatprep.subr.mxu0 0.0
    %5800 = vmatpush1.msra.mxu0 0.0
    %5801 = vmatprep.subr.mxu0 0.0
    %5802 = vmatpush1.msra.mxu0 0.0
    %5803 = vmatprep.mubr.f32.mxu0 0.0
    %5804 = vmatmul.mubr.f32.gmra.mrb[0].mxu0 %v5734
    %v5805 = vpop.f32.mrb[0].mxu0
    %v5806 = vadd.f32 0.0, %v5805
    %v5807 = vpop.f32.mrb[0].mxu0
    %5808 = vmatprep.mubr.f32.mxu0 0.0
    %5809 = vmatmul.mubr.f32.gmra.mrb[0].mxu0 %v5737
    %v5810 = vpop.f32.mrb[0].mxu0
    %v5811 = vadd.f32 0.0, %v5810
    %v5812 = vpop.f32.mrb[0].mxu0
    %5813 = vdwg.mxu0
    %v5814 = vadd.f32 %v5731, %v5806
    %v5815 = vadd.f32 %v5732, %v5811
    %v5816 = vadd.f32 %v3055, %v5814
    %v5817 = vadd.f32 %v3056, %v5815
    %v5818 = vsel %vm130, %v5816, 0.0
    %5819 = vadd.xlane.f32.xlu0 %v5818
    %v5820 = vpop.xlane.xlu0 %5819
    %v5821 = vsel %vm130, %v5817, 0.0
    %5822 = vadd.xlane.f32.xlu0 %v5821
    %v5823 = vpop.xlane.xlu0 %5822
    %v5824 = vmul.f32 %v5820, %v2835
    %v5825 = vmul.f32 %v5823, %v2835
    %v5826 = vsub.f32 %v5816, %v5824
    %v5827 = vsub.f32 %v5817, %v5825
    %v5828 = vmul.f32 %v5826, %v5826
    %v5829 = vmul.f32 %v5827, %v5827
    %v5830 = vsel %vm130, %v5828, 0.0
    %5831 = vadd.xlane.f32.xlu0 %v5830
    %v5832 = vpop.xlane.xlu0 %5831
    %v5833 = vsel %vm130, %v5829, 0.0
    %5834 = vadd.xlane.f32.xlu0 %v5833
    %v5835 = vpop.xlane.xlu0 %5834
    %v5836 = vmul.f32 %v5832, %v2835
    %v5837 = vmul.f32 %v5835, %v2835
    %v5838 = vadd.f32 %v5836, 1e-05
    %v5839 = vadd.f32 %v5837, 1e-05
    %v5840 = vrsqrt.pop %v5838
    %v5841 = vrsqrt.pop %v5839
    %v5842 = vmul.f32 %v5826, %v5840
    %v5843 = vmul.f32 %v5827, %v5841
    %v5844 = vmul.f32 %v5842, %v3110
    %v5845 = vmul.f32 %v5843, %v3111
    %v5846 = vadd.f32 %v5844, %v3113
    %v5847 = vadd.f32 %v5845, %v3114
    %v5849 = vsel %vm130, %v5846, 0
    %v5852 = vsel %vm130, %v5847, 0
    %5854 = vmatprep.subr.mxu0 0.0
    %5855 = vmatpush1.msra.mxu0 %v3078
    %5856 = vmatprep.subr.mxu0 0.0
    %5857 = vmatpush1.msra.mxu0 %v3079
    %5858 = vmatprep.subr.mxu0 0.0
    %5859 = vmatpush1.msra.mxu0 %v3080
    %5860 = vmatprep.subr.mxu0 0.0
    %5861 = vmatpush1.msra.mxu0 %v3081
    %5862 = vmatprep.subr.mxu0 0.0
    %5863 = vmatpush1.msra.mxu0 0.0
    %5864 = vmatprep.subr.mxu0 0.0
    %5865 = vmatpush1.msra.mxu0 0.0
    %5866 = vmatprep.subr.mxu0 0.0
    %5867 = vmatpush1.msra.mxu0 0.0
    %5868 = vmatprep.subr.mxu0 0.0
    %5869 = vmatpush1.msra.mxu0 0.0
    %5870 = vmatprep.subr.mxu0 0.0
    %5871 = vmatpush1.msra.mxu0 0.0
    %5872 = vmatprep.subr.mxu0 0.0
    %5873 = vmatpush1.msra.mxu0 0.0
    %5874 = vmatprep.subr.mxu0 0.0
    %5875 = vmatpush1.msra.mxu0 0.0
    %5876 = vmatprep.subr.mxu0 0.0
    %5877 = vmatpush1.msra.mxu0 0.0
    %5878 = vmatprep.subr.mxu0 0.0
    %5879 = vmatpush1.msra.mxu0 0.0
    %5880 = vmatprep.subr.mxu0 0.0
    %5881 = vmatpush1.msra.mxu0 0.0
    %5882 = vmatprep.subr.mxu0 0.0
    %5883 = vmatpush1.msra.mxu0 0.0
    %5884 = vmatprep.subr.mxu0 0.0
    %5885 = vmatpush1.msra.mxu0 0.0
    %5886 = vmatprep.subr.mxu0 0.0
    %5887 = vmatpush1.msra.mxu0 0.0
    %5888 = vmatprep.subr.mxu0 0.0
    %5889 = vmatpush1.msra.mxu0 0.0
    %5890 = vmatprep.subr.mxu0 0.0
    %5891 = vmatpush1.msra.mxu0 0.0
    %5892 = vmatprep.subr.mxu0 0.0
    %5893 = vmatpush1.msra.mxu0 0.0
    %5894 = vmatprep.subr.mxu0 0.0
    %5895 = vmatpush1.msra.mxu0 0.0
    %5896 = vmatprep.subr.mxu0 0.0
    %5897 = vmatpush1.msra.mxu0 0.0
    %5898 = vmatprep.subr.mxu0 0.0
    %5899 = vmatpush1.msra.mxu0 0.0
    %5900 = vmatprep.subr.mxu0 0.0
    %5901 = vmatpush1.msra.mxu0 0.0
    %5902 = vmatprep.subr.mxu0 0.0
    %5903 = vmatpush1.msra.mxu0 0.0
    %5904 = vmatprep.subr.mxu0 0.0
    %5905 = vmatpush1.msra.mxu0 0.0
    %5906 = vmatprep.subr.mxu0 0.0
    %5907 = vmatpush1.msra.mxu0 0.0
    %5908 = vmatprep.subr.mxu0 0.0
    %5909 = vmatpush1.msra.mxu0 0.0
    %5910 = vmatprep.subr.mxu0 0.0
    %5911 = vmatpush1.msra.mxu0 0.0
    %5912 = vmatprep.subr.mxu0 0.0
    %5913 = vmatpush1.msra.mxu0 0.0
    %5914 = vmatprep.subr.mxu0 0.0
    %5915 = vmatpush1.msra.mxu0 0.0
    %5916 = vmatprep.subr.mxu0 0.0
    %5917 = vmatpush1.msra.mxu0 0.0
    %5918 = vmatprep.mubr.f32.mxu0 0.0
    %5919 = vmatmul.mubr.f32.gmra.mrb[0].mxu0 %v5849
    %v5920 = vpop.f32.mrb[0].mxu0
    %v5921 = vadd.f32 %v3104, %v5920
    %v5922 = vpop.f32.mrb[0].mxu0
    %5923 = vmatprep.mubr.f32.mxu0 0.0
    %5924 = vmatmul.mubr.f32.gmra.mrb[0].mxu0 %v5852
    %v5925 = vpop.f32.mrb[0].mxu0
    %v5926 = vadd.f32 %v3105, %v5925
    %v5927 = vpop.f32.mrb[0].mxu0
    %5928 = vdwg.mxu0
    %v5929 = vmax.f32 %v5921, 0.0
    %v5930 = vmax.f32 %v5926, 0.0
    %v5932 = vsel %vm2943, %v5929, 0
    %v5935 = vsel %vm2943, %v5930, 0
    %5937 = vmatprep.subr.mxu0 0.0
    %5938 = vmatpush1.msra.mxu0 %v3083
    %5939 = vmatprep.subr.mxu0 0.0
    %5940 = vmatpush1.msra.mxu0 %v3084
    %5941 = vmatprep.subr.mxu0 0.0
    %5942 = vmatpush1.msra.mxu0 %v3085
    %5943 = vmatprep.subr.mxu0 0.0
    %5944 = vmatpush1.msra.mxu0 %v3086
    %5945 = vmatprep.subr.mxu0 0.0
    %5946 = vmatpush1.msra.mxu0 %v3087
    %5947 = vmatprep.subr.mxu0 0.0
    %5948 = vmatpush1.msra.mxu0 %v3088
    %5949 = vmatprep.subr.mxu0 0.0
    %5950 = vmatpush1.msra.mxu0 %v3089
    %5951 = vmatprep.subr.mxu0 0.0
    %5952 = vmatpush1.msra.mxu0 %v3090
    %5953 = vmatprep.subr.mxu0 0.0
    %5954 = vmatpush1.msra.mxu0 0.0
    %5955 = vmatprep.subr.mxu0 0.0
    %5956 = vmatpush1.msra.mxu0 0.0
    %5957 = vmatprep.subr.mxu0 0.0
    %5958 = vmatpush1.msra.mxu0 0.0
    %5959 = vmatprep.subr.mxu0 0.0
    %5960 = vmatpush1.msra.mxu0 0.0
    %5961 = vmatprep.subr.mxu0 0.0
    %5962 = vmatpush1.msra.mxu0 0.0
    %5963 = vmatprep.subr.mxu0 0.0
    %5964 = vmatpush1.msra.mxu0 0.0
    %5965 = vmatprep.subr.mxu0 0.0
    %5966 = vmatpush1.msra.mxu0 0.0
    %5967 = vmatprep.subr.mxu0 0.0
    %5968 = vmatpush1.msra.mxu0 0.0
    %5969 = vmatprep.subr.mxu0 0.0
    %5970 = vmatpush1.msra.mxu0 0.0
    %5971 = vmatprep.subr.mxu0 0.0
    %5972 = vmatpush1.msra.mxu0 0.0
    %5973 = vmatprep.subr.mxu0 0.0
    %5974 = vmatpush1.msra.mxu0 0.0
    %5975 = vmatprep.subr.mxu0 0.0
    %5976 = vmatpush1.msra.mxu0 0.0
    %5977 = vmatprep.subr.mxu0 0.0
    %5978 = vmatpush1.msra.mxu0 0.0
    %5979 = vmatprep.subr.mxu0 0.0
    %5980 = vmatpush1.msra.mxu0 0.0
    %5981 = vmatprep.subr.mxu0 0.0
    %5982 = vmatpush1.msra.mxu0 0.0
    %5983 = vmatprep.subr.mxu0 0.0
    %5984 = vmatpush1.msra.mxu0 0.0
    %5985 = vmatprep.subr.mxu0 0.0
    %5986 = vmatpush1.msra.mxu0 0.0
    %5987 = vmatprep.subr.mxu0 0.0
    %5988 = vmatpush1.msra.mxu0 0.0
    %5989 = vmatprep.subr.mxu0 0.0
    %5990 = vmatpush1.msra.mxu0 0.0
    %5991 = vmatprep.subr.mxu0 0.0
    %5992 = vmatpush1.msra.mxu0 0.0
    %5993 = vmatprep.subr.mxu0 0.0
    %5994 = vmatpush1.msra.mxu0 0.0
    %5995 = vmatprep.subr.mxu0 0.0
    %5996 = vmatpush1.msra.mxu0 0.0
    %5997 = vmatprep.subr.mxu0 0.0
    %5998 = vmatpush1.msra.mxu0 0.0
    %5999 = vmatprep.subr.mxu0 0.0
    %6000 = vmatpush1.msra.mxu0 0.0
    %6001 = vmatprep.mubr.f32.mxu0 0.0
    %6002 = vmatmul.mubr.f32.gmra.mrb[0].mxu0 %v5932
    %v6003 = vpop.f32.mrb[0].mxu0
    %v6004 = vadd.f32 %v3107, %v6003
    %v6005 = vpop.f32.mrb[0].mxu0
    %6006 = vmatprep.mubr.f32.mxu0 0.0
    %6007 = vmatmul.mubr.f32.gmra.mrb[0].mxu0 %v5935
    %v6008 = vpop.f32.mrb[0].mxu0
    %v6009 = vadd.f32 %v3108, %v6008
    %v6010 = vpop.f32.mrb[0].mxu0
    %6011 = vdwg.mxu0
    %v6012 = vadd.f32 %v5846, %v6004
    %v6013 = vadd.f32 %v5847, %v6009
    %v6014 = vsel %vm130, %v6012, 0.0
    %6015 = vadd.xlane.f32.xlu0 %v6014
    %v6016 = vpop.xlane.xlu0 %6015
    %v6017 = vsel %vm130, %v6013, 0.0
    %6018 = vadd.xlane.f32.xlu0 %v6017
    %v6019 = vpop.xlane.xlu0 %6018
    %v6020 = vmul.f32 %v6016, %v2835
    %v6021 = vmul.f32 %v6019, %v2835
    %v6022 = vsub.f32 %v6012, %v6020
    %v6023 = vsub.f32 %v6013, %v6021
    %v6024 = vmul.f32 %v6022, %v6022
    %v6025 = vmul.f32 %v6023, %v6023
    %v6026 = vsel %vm130, %v6024, 0.0
    %6027 = vadd.xlane.f32.xlu0 %v6026
    %v6028 = vpop.xlane.xlu0 %6027
    %v6029 = vsel %vm130, %v6025, 0.0
    %6030 = vadd.xlane.f32.xlu0 %v6029
    %v6031 = vpop.xlane.xlu0 %6030
    %v6032 = vmul.f32 %v6028, %v2835
    %v6033 = vmul.f32 %v6031, %v2835
    %v6034 = vadd.f32 %v6032, 1e-05
    %v6035 = vadd.f32 %v6033, 1e-05
    %v6036 = vrsqrt.pop %v6034
    %v6037 = vrsqrt.pop %v6035
    %v6038 = vmul.f32 %v6022, %v6036
    %v6039 = vmul.f32 %v6023, %v6037
    %v6040 = vmul.f32 %v6038, %v3116
    %v6041 = vmul.f32 %v6039, %v3117
    %v6042 = vadd.f32 %v6040, %v3119
    %v6043 = vadd.f32 %v6041, %v3120
    %6044 = vst.msk [vmem:[#allocation8] sm:$0xff] %vm130, %v6042
    %6045 = vst.msk [vmem:[#allocation8 + $0x8] sm:$0xff] %vm130, %v6043
    // Predicated region
    $region46: #{sequence_encoder_forward.1} parent=1 // pred_check
      _
    $region47: #{sequence_encoder_forward.1} parent=1 // pred_check_branch
      %6047 = sbr.rel (0) target = $region49
    $region48: #{sequence_encoder_forward.1} parent=1 // pred_region
      %s6049 = ssub.s32 256, 256
      %6050 = vsyncadd [#allocation4], %s6049
      %s6051 = sshll.u32 [#allocation8], 4
      %s6052 = int_to_ptr.vmem [resolvable:$true] %s6051
      %6057 = dma.vmem_to_hbm [thread:$0]  %s6052, 256, %s8, [#allocation4], 128, 128, 8
    $region49: #{sequence_encoder_forward.1} parent=1 // pred_fallthru
      _
    // Predicated region
    $region50: #{sequence_encoder_forward.1} parent=1 // pred_check
      _
    $region51: #{sequence_encoder_forward.1} parent=1 // pred_check_branch
      %6059 = sbr.rel (0) target = $region53
    $region52: #{sequence_encoder_forward.1} parent=1 // pred_region
      %6060 = dma.done [#allocation4], 256
    $region53: #{sequence_encoder_forward.1} parent=1 // pred_fallthru
      _
    %6061 = vsyncpa [#allocation3], 1
    %6062 = vsyncpa [#allocation6], 1
    %6063 = vsyncpa [#allocation4], 1

</llo_original>
